<compile_context>
chip_gen: v5e
topology: v5e:2x2
jax: 0.10.0
libtpu: 0.0.40
codegen_flags: <defaults>
</compile_context>

<pallas_src>
import jax
import jax.numpy as jnp
from jax import lax
from jax.experimental import pallas as pl
from jax.experimental.pallas import tpu as pltpu

NEG_SLOPE = 0.2
# Channel progression of the Discriminator: 6 -> 64 -> 128 -> 256 -> 256 -> 256 -> 1
CHANNELS = (6, 64, 128, 256, 256, 256, 1)
NUM_LAYERS = len(CHANNELS) - 1          # 6 convs; LeakyReLU after the first 5


def _out_channel_list():
    """Channel count of each of the 11 returned activations, in order."""
    chans = []
    for li in range(NUM_LAYERS):
        chans.append(CHANNELS[li + 1])          # conv output
        if li < NUM_LAYERS - 1:
            chans.append(CHANNELS[li + 1])      # LeakyReLU output
    return chans


def _disc_kernel(x_ref, *refs):
    """Fused 6x(1x1 conv) + 5xLeakyReLU on a channel-major (C, pixels) tile.

    refs layout: (w1, b1, ..., w6, b6, out0, ..., out10)
      w_i : (Cout_i, Cin_i) VMEM
      b_i : (Cout_i, 1)     VMEM (broadcast along lanes)
      out : (Cout, TN)      VMEM, one per intermediate activation
    """
    w_refs = refs[0:2 * NUM_LAYERS:2]
    b_refs = refs[1:2 * NUM_LAYERS:2]
    out_refs = refs[2 * NUM_LAYERS:]

    a = x_ref[...]                                       # (Cin0, TN)
    oi = 0
    for li in range(NUM_LAYERS):
        # 1x1 conv == channel matmul on the MXU, f32 accumulation.
        y = jnp.dot(w_refs[li][...], a,
                    preferred_element_type=jnp.float32) + b_refs[li][...]
        out_refs[oi][...] = y
        oi += 1
        if li < NUM_LAYERS - 1:
            # LeakyReLU(0.2): max(y, 0.2*y)  (VPU, one mul + one max).
            out_refs[oi][...] = jnp.maximum(y, NEG_SLOPE * y)
            # Re-read from VMEM so the activation doesn't stay vreg-live
            # across the next (up to 256x256) matmul.
            a = out_refs[oi][...]
            oi += 1


def _pick_tile(n):
    """Largest lane-dense pixel tile; prefer >=2 grid steps (v7x megacore)."""
    for t in (1024, 512, 256, 128):
        if n % t == 0 and n // t >= 2:
            return t
    for t in (1024, 512, 256, 128):
        if n % t == 0:
            return t
    return n


def discriminator_forward(x, params):
    """x: (B, 6, H, W) f32.  params: list of (w, b), w: (Cout, Cin, 1, 1)."""
    B, C0, H, W = x.shape
    assert C0 == CHANNELS[0], f"expected {CHANNELS[0]} input channels, got {C0}"
    N = B * H * W
    TN = _pick_tile(N)

    # Channel-major, lane-dense layout: (C, B*H*W). Pure layout plumbing.
    x_cm = jnp.transpose(x, (1, 0, 2, 3)).reshape(C0, N)

    flat_params = []
    for li, (w, b) in enumerate(params):
        cout, cin = CHANNELS[li + 1], CHANNELS[li]
        flat_params.append(w.reshape(cout, cin).astype(jnp.float32))
        flat_params.append(b.reshape(cout, 1).astype(jnp.float32))

    out_channels = _out_channel_list()
    out_shapes = tuple(jax.ShapeDtypeStruct((c, N), jnp.float32)
                       for c in out_channels)
    out_specs = tuple(pl.BlockSpec((c, TN), lambda i: (0, i))
                      for c in out_channels)

    in_specs = [pl.BlockSpec((C0, TN), lambda i: (0, i))]
    for li in range(NUM_LAYERS):
        cout, cin = CHANNELS[li + 1], CHANNELS[li]
        in_specs.append(pl.BlockSpec((cout, cin), lambda i: (0, 0)))  # weight
        in_specs.append(pl.BlockSpec((cout, 1), lambda i: (0, 0)))    # bias

    outs_flat = pl.pallas_call(
        _disc_kernel,
        out_shape=out_shapes,
        grid=(N // TN,),
        in_specs=in_specs,
        out_specs=out_specs,
        compiler_params=pltpu.CompilerParams(
            dimension_semantics=("parallel",)),
    )(x_cm, *flat_params)

    # Back to NCHW: (C, N) -> (C, B, H, W) -> (B, C, H, W).
    return [o.reshape(c, B, H, W).transpose(1, 0, 2, 3)
            for o, c in zip(outs_flat, out_channels)]


def reference(x, params):
    """Pure-JAX reference of the Discriminator forward (list of 11 tensors)."""
    outs = []
    a = x
    for li, (w, b) in enumerate(params):
        cout, cin = CHANNELS[li + 1], CHANNELS[li]
        a = jnp.einsum("oc,bchw->bohw", w.reshape(cout, cin), a,
                       precision=lax.Precision.HIGHEST)
        a = a + b[None, :, None, None]
        outs.append(a)
        if li < NUM_LAYERS - 1:
            a = jnp.where(a >= 0, a, NEG_SLOPE * a)
            outs.append(a)
    return outs


if __name__ == "__main__":
    B, H, W = 2, 16, 16        # input channels fixed at 6 by the module

    key = jax.random.PRNGKey(0)
    keys = jax.random.split(key, 1 + 2 * NUM_LAYERS)
    x = jax.random.normal(keys[0], (B, CHANNELS[0], H, W), jnp.float32)

    params = []
    for li in range(NUM_LAYERS):
        cout, cin = CHANNELS[li + 1], CHANNELS[li]
        w = jax.random.normal(keys[1 + 2 * li], (cout, cin, 1, 1),
                              jnp.float32) * (1.0 / float(cin) ** 0.5)
        b = 0.1 * jax.random.normal(keys[2 + 2 * li], (cout,), jnp.float32)
        params.append((w, b))

    outs = jax.block_until_ready(discriminator_forward(x, params))
    refs = reference(x, params)

    assert len(outs) == 11, len(outs)
    for idx, (o, r) in enumerate(zip(outs, refs)):
        assert o.shape == r.shape, (idx, o.shape, r.shape)
        err = float(jnp.max(jnp.abs(o - r)))
        scale = max(float(jnp.max(jnp.abs(r))), 1.0)
        # Scale-aware tolerance (robust to MXU f32 multi-pass vs XLA precision).
        assert err <= 1e-2 * scale + 1e-4, f"out[{idx}] max abs err {err} (scale {scale})"
    print("KERNEL_OK")
</pallas_src>

<mosaic_0001>
module attributes {stable_mosaic.version = 11 : i64} {
  func.func @_disc_kernel(%arg0: i32, %arg1: memref<6x256xf32, #tpu.memory_space<vmem>>, %arg2: memref<64x6xf32, #tpu.memory_space<vmem>>, %arg3: memref<64x1xf32, #tpu.memory_space<vmem>>, %arg4: memref<128x64xf32, #tpu.memory_space<vmem>>, %arg5: memref<128x1xf32, #tpu.memory_space<vmem>>, %arg6: memref<256x128xf32, #tpu.memory_space<vmem>>, %arg7: memref<256x1xf32, #tpu.memory_space<vmem>>, %arg8: memref<256x256xf32, #tpu.memory_space<vmem>>, %arg9: memref<256x1xf32, #tpu.memory_space<vmem>>, %arg10: memref<256x256xf32, #tpu.memory_space<vmem>>, %arg11: memref<256x1xf32, #tpu.memory_space<vmem>>, %arg12: memref<1x256xf32, #tpu.memory_space<vmem>>, %arg13: memref<1x1xf32, #tpu.memory_space<vmem>>, %arg14: memref<64x256xf32, #tpu.memory_space<vmem>>, %arg15: memref<64x256xf32, #tpu.memory_space<vmem>>, %arg16: memref<128x256xf32, #tpu.memory_space<vmem>>, %arg17: memref<128x256xf32, #tpu.memory_space<vmem>>, %arg18: memref<256x256xf32, #tpu.memory_space<vmem>>, %arg19: memref<256x256xf32, #tpu.memory_space<vmem>>, %arg20: memref<256x256xf32, #tpu.memory_space<vmem>>, %arg21: memref<256x256xf32, #tpu.memory_space<vmem>>, %arg22: memref<256x256xf32, #tpu.memory_space<vmem>>, %arg23: memref<256x256xf32, #tpu.memory_space<vmem>>, %arg24: memref<1x256xf32, #tpu.memory_space<vmem>>) attributes {dimension_semantics = [#tpu.dimension_semantics<parallel>], iteration_bounds = array<i64: 2>, scalar_prefetch = 0 : i64, scratch_operands = 0 : i64, tpu.core_type = #tpu.core_type<tc>, window_params = [{transform_indices = @transform_0, window_bounds = array<i64: 6, 256>}, {pipeline_mode = #tpu.pipeline_mode<synchronous>, transform_indices = @transform_1, window_bounds = array<i64: 64, 6>}, {pipeline_mode = #tpu.pipeline_mode<synchronous>, transform_indices = @transform_2, window_bounds = array<i64: 64, 1>}, {pipeline_mode = #tpu.pipeline_mode<synchronous>, transform_indices = @transform_3, window_bounds = array<i64: 128, 64>}, {pipeline_mode = #tpu.pipeline_mode<synchronous>, transform_indices = @transform_4, window_bounds = array<i64: 128, 1>}, {pipeline_mode = #tpu.pipeline_mode<synchronous>, transform_indices = @transform_5, window_bounds = array<i64: 256, 128>}, {pipeline_mode = #tpu.pipeline_mode<synchronous>, transform_indices = @transform_6, window_bounds = array<i64: 256, 1>}, {pipeline_mode = #tpu.pipeline_mode<synchronous>, transform_indices = @transform_7, window_bounds = array<i64: 256, 256>}, {pipeline_mode = #tpu.pipeline_mode<synchronous>, transform_indices = @transform_8, window_bounds = array<i64: 256, 1>}, {pipeline_mode = #tpu.pipeline_mode<synchronous>, transform_indices = @transform_9, window_bounds = array<i64: 256, 256>}, {pipeline_mode = #tpu.pipeline_mode<synchronous>, transform_indices = @transform_10, window_bounds = array<i64: 256, 1>}, {pipeline_mode = #tpu.pipeline_mode<synchronous>, transform_indices = @transform_11, window_bounds = array<i64: 1, 256>}, {pipeline_mode = #tpu.pipeline_mode<synchronous>, transform_indices = @transform_12, window_bounds = array<i64: 1, 1>}, {transform_indices = @transform_13, window_bounds = array<i64: 64, 256>}, {transform_indices = @transform_14, window_bounds = array<i64: 64, 256>}, {transform_indices = @transform_15, window_bounds = array<i64: 128, 256>}, {transform_indices = @transform_16, window_bounds = array<i64: 128, 256>}, {transform_indices = @transform_17, window_bounds = array<i64: 256, 256>}, {transform_indices = @transform_18, window_bounds = array<i64: 256, 256>}, {transform_indices = @transform_19, window_bounds = array<i64: 256, 256>}, {transform_indices = @transform_20, window_bounds = array<i64: 256, 256>}, {transform_indices = @transform_21, window_bounds = array<i64: 256, 256>}, {transform_indices = @transform_22, window_bounds = array<i64: 256, 256>}, {transform_indices = @transform_23, window_bounds = array<i64: 1, 256>}]} {
    %c0 = arith.constant 0 : index
    %c0_0 = arith.constant 0 : index
    %0 = vector.load %arg1[%c0, %c0_0] : memref<6x256xf32, #tpu.memory_space<vmem>>, vector<6x256xf32>
    %c0_1 = arith.constant 0 : index
    %c0_2 = arith.constant 0 : index
    %1 = vector.load %arg2[%c0_1, %c0_2] : memref<64x6xf32, #tpu.memory_space<vmem>>, vector<64x6xf32>
    %cst = arith.constant dense<0.000000e+00> : vector<64x256xf32>
    %2 = tpu.matmul %1, %0, %cst {dimension_numbers = #tpu.dot_dimension_numbers<[1], [0], [0], [1], [0, 0, 1, 1], [], []>} : vector<64x6xf32>, vector<6x256xf32>, vector<64x256xf32> -> vector<64x256xf32>
    %c0_3 = arith.constant 0 : index
    %c0_4 = arith.constant 0 : index
    %3 = vector.load %arg3[%c0_3, %c0_4] : memref<64x1xf32, #tpu.memory_space<vmem>>, vector<64x1xf32>
    %4 = vector.broadcast %3 : vector<64x1xf32> to vector<64x256xf32>
    %5 = arith.addf %2, %4 : vector<64x256xf32>
    %c0_5 = arith.constant 0 : index
    %c0_6 = arith.constant 0 : index
    %6 = vector.load %arg14[%c0_5, %c0_6] : memref<64x256xf32, #tpu.memory_space<vmem>>, vector<64x256xf32>
    tpu.vector_store %arg14[%c0_5, %c0_6], %5 {strides = array<i32>} : memref<64x256xf32, #tpu.memory_space<vmem>>, vector<64x256xf32>,
    %cst_7 = arith.constant 2.000000e-01 : f32
    %7 = vector.broadcast %cst_7 : f32 to vector<64x256xf32>
    %8 = arith.mulf %7, %5 : vector<64x256xf32>
    %9 = arith.maximumf %5, %8 : vector<64x256xf32>
    %c0_8 = arith.constant 0 : index
    %c0_9 = arith.constant 0 : index
    %10 = vector.load %arg15[%c0_8, %c0_9] : memref<64x256xf32, #tpu.memory_space<vmem>>, vector<64x256xf32>
    tpu.vector_store %arg15[%c0_8, %c0_9], %9 {strides = array<i32>} : memref<64x256xf32, #tpu.memory_space<vmem>>, vector<64x256xf32>,
    %c0_10 = arith.constant 0 : index
    %c0_11 = arith.constant 0 : index
    %11 = vector.load %arg15[%c0_10, %c0_11] : memref<64x256xf32, #tpu.memory_space<vmem>>, vector<64x256xf32>
    %c0_12 = arith.constant 0 : index
    %c0_13 = arith.constant 0 : index
    %12 = vector.load %arg4[%c0_12, %c0_13] : memref<128x64xf32, #tpu.memory_space<vmem>>, vector<128x64xf32>
    %cst_14 = arith.constant dense<0.000000e+00> : vector<128x256xf32>
    %13 = tpu.matmul %12, %11, %cst_14 {dimension_numbers = #tpu.dot_dimension_numbers<[1], [0], [0], [1], [0, 0, 1, 1], [], []>} : vector<128x64xf32>, vector<64x256xf32>, vector<128x256xf32> -> vector<128x256xf32>
    %c0_15 = arith.constant 0 : index
    %c0_16 = arith.constant 0 : index
    %14 = vector.load %arg5[%c0_15, %c0_16] : memref<128x1xf32, #tpu.memory_space<vmem>>, vector<128x1xf32>
    %15 = vector.broadcast %14 : vector<128x1xf32> to vector<128x256xf32>
    %16 = arith.addf %13, %15 : vector<128x256xf32>
    %c0_17 = arith.constant 0 : index
    %c0_18 = arith.constant 0 : index
    %17 = vector.load %arg16[%c0_17, %c0_18] : memref<128x256xf32, #tpu.memory_space<vmem>>, vector<128x256xf32>
    tpu.vector_store %arg16[%c0_17, %c0_18], %16 {strides = array<i32>} : memref<128x256xf32, #tpu.memory_space<vmem>>, vector<128x256xf32>,
    %cst_19 = arith.constant 2.000000e-01 : f32
    %18 = vector.broadcast %cst_19 : f32 to vector<128x256xf32>
    %19 = arith.mulf %18, %16 : vector<128x256xf32>
    %20 = arith.maximumf %16, %19 : vector<128x256xf32>
    %c0_20 = arith.constant 0 : index
    %c0_21 = arith.constant 0 : index
    %21 = vector.load %arg17[%c0_20, %c0_21] : memref<128x256xf32, #tpu.memory_space<vmem>>, vector<128x256xf32>
    tpu.vector_store %arg17[%c0_20, %c0_21], %20 {strides = array<i32>} : memref<128x256xf32, #tpu.memory_space<vmem>>, vector<128x256xf32>,
    %c0_22 = arith.constant 0 : index
    %c0_23 = arith.constant 0 : index
    %22 = vector.load %arg17[%c0_22, %c0_23] : memref<128x256xf32, #tpu.memory_space<vmem>>, vector<128x256xf32>
    %c0_24 = arith.constant 0 : index
    %c0_25 = arith.constant 0 : index
    %23 = vector.load %arg6[%c0_24, %c0_25] : memref<256x128xf32, #tpu.memory_space<vmem>>, vector<256x128xf32>
    %cst_26 = arith.constant dense<0.000000e+00> : vector<256x256xf32>
    %24 = tpu.matmul %23, %22, %cst_26 {dimension_numbers = #tpu.dot_dimension_numbers<[1], [0], [0], [1], [0, 0, 1, 1], [], []>} : vector<256x128xf32>, vector<128x256xf32>, vector<256x256xf32> -> vector<256x256xf32>
    %c0_27 = arith.constant 0 : index
    %c0_28 = arith.constant 0 : index
    %25 = vector.load %arg7[%c0_27, %c0_28] : memref<256x1xf32, #tpu.memory_space<vmem>>, vector<256x1xf32>
    %26 = vector.broadcast %25 : vector<256x1xf32> to vector<256x256xf32>
    %27 = arith.addf %24, %26 : vector<256x256xf32>
    %c0_29 = arith.constant 0 : index
    %c0_30 = arith.constant 0 : index
    %28 = vector.load %arg18[%c0_29, %c0_30] : memref<256x256xf32, #tpu.memory_space<vmem>>, vector<256x256xf32>
    tpu.vector_store %arg18[%c0_29, %c0_30], %27 {strides = array<i32>} : memref<256x256xf32, #tpu.memory_space<vmem>>, vector<256x256xf32>,
    %cst_31 = arith.constant 2.000000e-01 : f32
    %29 = vector.broadcast %cst_31 : f32 to vector<256x256xf32>
    %30 = arith.mulf %29, %27 : vector<256x256xf32>
    %31 = arith.maximumf %27, %30 : vector<256x256xf32>
    %c0_32 = arith.constant 0 : index
    %c0_33 = arith.constant 0 : index
    %32 = vector.load %arg19[%c0_32, %c0_33] : memref<256x256xf32, #tpu.memory_space<vmem>>, vector<256x256xf32>
    tpu.vector_store %arg19[%c0_32, %c0_33], %31 {strides = array<i32>} : memref<256x256xf32, #tpu.memory_space<vmem>>, vector<256x256xf32>,
    %c0_34 = arith.constant 0 : index
    %c0_35 = arith.constant 0 : index
    %33 = vector.load %arg19[%c0_34, %c0_35] : memref<256x256xf32, #tpu.memory_space<vmem>>, vector<256x256xf32>
    %c0_36 = arith.constant 0 : index
    %c0_37 = arith.constant 0 : index
    %34 = vector.load %arg8[%c0_36, %c0_37] : memref<256x256xf32, #tpu.memory_space<vmem>>, vector<256x256xf32>
    %cst_38 = arith.constant dense<0.000000e+00> : vector<256x256xf32>
    %35 = tpu.matmul %34, %33, %cst_38 {dimension_numbers = #tpu.dot_dimension_numbers<[1], [0], [0], [1], [0, 0, 1, 1], [], []>} : vector<256x256xf32>, vector<256x256xf32>, vector<256x256xf32> -> vector<256x256xf32>
    %c0_39 = arith.constant 0 : index
    %c0_40 = arith.constant 0 : index
    %36 = vector.load %arg9[%c0_39, %c0_40] : memref<256x1xf32, #tpu.memory_space<vmem>>, vector<256x1xf32>
    %37 = vector.broadcast %36 : vector<256x1xf32> to vector<256x256xf32>
    %38 = arith.addf %35, %37 : vector<256x256xf32>
    %c0_41 = arith.constant 0 : index
    %c0_42 = arith.constant 0 : index
    %39 = vector.load %arg20[%c0_41, %c0_42] : memref<256x256xf32, #tpu.memory_space<vmem>>, vector<256x256xf32>
    tpu.vector_store %arg20[%c0_41, %c0_42], %38 {strides = array<i32>} : memref<256x256xf32, #tpu.memory_space<vmem>>, vector<256x256xf32>,
    %cst_43 = arith.constant 2.000000e-01 : f32
    %40 = vector.broadcast %cst_43 : f32 to vector<256x256xf32>
    %41 = arith.mulf %40, %38 : vector<256x256xf32>
    %42 = arith.maximumf %38, %41 : vector<256x256xf32>
    %c0_44 = arith.constant 0 : index
    %c0_45 = arith.constant 0 : index
    %43 = vector.load %arg21[%c0_44, %c0_45] : memref<256x256xf32, #tpu.memory_space<vmem>>, vector<256x256xf32>
    tpu.vector_store %arg21[%c0_44, %c0_45], %42 {strides = array<i32>} : memref<256x256xf32, #tpu.memory_space<vmem>>, vector<256x256xf32>,
    %c0_46 = arith.constant 0 : index
    %c0_47 = arith.constant 0 : index
    %44 = vector.load %arg21[%c0_46, %c0_47] : memref<256x256xf32, #tpu.memory_space<vmem>>, vector<256x256xf32>
    %c0_48 = arith.constant 0 : index
    %c0_49 = arith.constant 0 : index
    %45 = vector.load %arg10[%c0_48, %c0_49] : memref<256x256xf32, #tpu.memory_space<vmem>>, vector<256x256xf32>
    %cst_50 = arith.constant dense<0.000000e+00> : vector<256x256xf32>
    %46 = tpu.matmul %45, %44, %cst_50 {dimension_numbers = #tpu.dot_dimension_numbers<[1], [0], [0], [1], [0, 0, 1, 1], [], []>} : vector<256x256xf32>, vector<256x256xf32>, vector<256x256xf32> -> vector<256x256xf32>
    %c0_51 = arith.constant 0 : index
    %c0_52 = arith.constant 0 : index
    %47 = vector.load %arg11[%c0_51, %c0_52] : memref<256x1xf32, #tpu.memory_space<vmem>>, vector<256x1xf32>
    %48 = vector.broadcast %47 : vector<256x1xf32> to vector<256x256xf32>
    %49 = arith.addf %46, %48 : vector<256x256xf32>
    %c0_53 = arith.constant 0 : index
    %c0_54 = arith.constant 0 : index
    %50 = vector.load %arg22[%c0_53, %c0_54] : memref<256x256xf32, #tpu.memory_space<vmem>>, vector<256x256xf32>
    tpu.vector_store %arg22[%c0_53, %c0_54], %49 {strides = array<i32>} : memref<256x256xf32, #tpu.memory_space<vmem>>, vector<256x256xf32>,
    %cst_55 = arith.constant 2.000000e-01 : f32
    %51 = vector.broadcast %cst_55 : f32 to vector<256x256xf32>
    %52 = arith.mulf %51, %49 : vector<256x256xf32>
    %53 = arith.maximumf %49, %52 : vector<256x256xf32>
    %c0_56 = arith.constant 0 : index
    %c0_57 = arith.constant 0 : index
    %54 = vector.load %arg23[%c0_56, %c0_57] : memref<256x256xf32, #tpu.memory_space<vmem>>, vector<256x256xf32>
    tpu.vector_store %arg23[%c0_56, %c0_57], %53 {strides = array<i32>} : memref<256x256xf32, #tpu.memory_space<vmem>>, vector<256x256xf32>,
    %c0_58 = arith.constant 0 : index
    %c0_59 = arith.constant 0 : index
    %55 = vector.load %arg23[%c0_58, %c0_59] : memref<256x256xf32, #tpu.memory_space<vmem>>, vector<256x256xf32>
    %c0_60 = arith.constant 0 : index
    %c0_61 = arith.constant 0 : index
    %56 = vector.load %arg12[%c0_60, %c0_61] : memref<1x256xf32, #tpu.memory_space<vmem>>, vector<1x256xf32>
    %cst_62 = arith.constant dense<0.000000e+00> : vector<1x256xf32>
    %57 = tpu.matmul %56, %55, %cst_62 {dimension_numbers = #tpu.dot_dimension_numbers<[1], [0], [0], [1], [0, 0, 1, 1], [], []>} : vector<1x256xf32>, vector<256x256xf32>, vector<1x256xf32> -> vector<1x256xf32>
    %c0_63 = arith.constant 0 : index
    %c0_64 = arith.constant 0 : index
    %58 = vector.load %arg13[%c0_63, %c0_64] : memref<1x1xf32, #tpu.memory_space<vmem>>, vector<1x1xf32>
    %59 = vector.broadcast %58 : vector<1x1xf32> to vector<1x256xf32>
    %60 = arith.addf %57, %59 : vector<1x256xf32>
    %c0_65 = arith.constant 0 : index
    %c0_66 = arith.constant 0 : index
    %61 = vector.load %arg24[%c0_65, %c0_66] : memref<1x256xf32, #tpu.memory_space<vmem>>, vector<1x256xf32>
    tpu.vector_store %arg24[%c0_65, %c0_66], %60 {strides = array<i32>} : memref<1x256xf32, #tpu.memory_space<vmem>>, vector<1x256xf32>,
    return
  }
  func.func @transform_0(%arg0: i32) -> (i32, i32) {
    %c0_i32 = arith.constant 0 : i32
    %c0_i32_0 = arith.constant 0 : i32
    return %c0_i32, %arg0 : i32, i32
  }
  func.func @transform_1(%arg0: i32) -> (i32, i32) {
    %c0_i32 = arith.constant 0 : i32
    %c0_i32_0 = arith.constant 0 : i32
    %c0_i32_1 = arith.constant 0 : i32
    return %c0_i32, %c0_i32_0 : i32, i32
  }
  func.func @transform_2(%arg0: i32) -> (i32, i32) {
    %c0_i32 = arith.constant 0 : i32
    %c0_i32_0 = arith.constant 0 : i32
    %c0_i32_1 = arith.constant 0 : i32
    return %c0_i32, %c0_i32_0 : i32, i32
  }
  func.func @transform_3(%arg0: i32) -> (i32, i32) {
    %c0_i32 = arith.constant 0 : i32
    %c0_i32_0 = arith.constant 0 : i32
    %c0_i32_1 = arith.constant 0 : i32
    return %c0_i32, %c0_i32_0 : i32, i32
  }
  func.func @transform_4(%arg0: i32) -> (i32, i32) {
    %c0_i32 = arith.constant 0 : i32
    %c0_i32_0 = arith.constant 0 : i32
    %c0_i32_1 = arith.constant 0 : i32
    return %c0_i32, %c0_i32_0 : i32, i32
  }
  func.func @transform_5(%arg0: i32) -> (i32, i32) {
    %c0_i32 = arith.constant 0 : i32
    %c0_i32_0 = arith.constant 0 : i32
    %c0_i32_1 = arith.constant 0 : i32
    return %c0_i32, %c0_i32_0 : i32, i32
  }
  func.func @transform_6(%arg0: i32) -> (i32, i32) {
    %c0_i32 = arith.constant 0 : i32
    %c0_i32_0 = arith.constant 0 : i32
    %c0_i32_1 = arith.constant 0 : i32
    return %c0_i32, %c0_i32_0 : i32, i32
  }
  func.func @transform_7(%arg0: i32) -> (i32, i32) {
    %c0_i32 = arith.constant 0 : i32
    %c0_i32_0 = arith.constant 0 : i32
    %c0_i32_1 = arith.constant 0 : i32
    return %c0_i32, %c0_i32_0 : i32, i32
  }
  func.func @transform_8(%arg0: i32) -> (i32, i32) {
    %c0_i32 = arith.constant 0 : i32
    %c0_i32_0 = arith.constant 0 : i32
    %c0_i32_1 = arith.constant 0 : i32
    return %c0_i32, %c0_i32_0 : i32, i32
  }
  func.func @transform_9(%arg0: i32) -> (i32, i32) {
    %c0_i32 = arith.constant 0 : i32
    %c0_i32_0 = arith.constant 0 : i32
    %c0_i32_1 = arith.constant 0 : i32
    return %c0_i32, %c0_i32_0 : i32, i32
  }
  func.func @transform_10(%arg0: i32) -> (i32, i32) {
    %c0_i32 = arith.constant 0 : i32
    %c0_i32_0 = arith.constant 0 : i32
    %c0_i32_1 = arith.constant 0 : i32
    return %c0_i32, %c0_i32_0 : i32, i32
  }
  func.func @transform_11(%arg0: i32) -> (i32, i32) {
    %c0_i32 = arith.constant 0 : i32
    %c0_i32_0 = arith.constant 0 : i32
    %c0_i32_1 = arith.constant 0 : i32
    return %c0_i32, %c0_i32_0 : i32, i32
  }
  func.func @transform_12(%arg0: i32) -> (i32, i32) {
    %c0_i32 = arith.constant 0 : i32
    %c0_i32_0 = arith.constant 0 : i32
    %c0_i32_1 = arith.constant 0 : i32
    return %c0_i32, %c0_i32_0 : i32, i32
  }
  func.func @transform_13(%arg0: i32) -> (i32, i32) {
    %c0_i32 = arith.constant 0 : i32
    %c0_i32_0 = arith.constant 0 : i32
    return %c0_i32, %arg0 : i32, i32
  }
  func.func @transform_14(%arg0: i32) -> (i32, i32) {
    %c0_i32 = arith.constant 0 : i32
    %c0_i32_0 = arith.constant 0 : i32
    return %c0_i32, %arg0 : i32, i32
  }
  func.func @transform_15(%arg0: i32) -> (i32, i32) {
    %c0_i32 = arith.constant 0 : i32
    %c0_i32_0 = arith.constant 0 : i32
    return %c0_i32, %arg0 : i32, i32
  }
  func.func @transform_16(%arg0: i32) -> (i32, i32) {
    %c0_i32 = arith.constant 0 : i32
    %c0_i32_0 = arith.constant 0 : i32
    return %c0_i32, %arg0 : i32, i32
  }
  func.func @transform_17(%arg0: i32) -> (i32, i32) {
    %c0_i32 = arith.constant 0 : i32
    %c0_i32_0 = arith.constant 0 : i32
    return %c0_i32, %arg0 : i32, i32
  }
  func.func @transform_18(%arg0: i32) -> (i32, i32) {
    %c0_i32 = arith.constant 0 : i32
    %c0_i32_0 = arith.constant 0 : i32
    return %c0_i32, %arg0 : i32, i32
  }
  func.func @transform_19(%arg0: i32) -> (i32, i32) {
    %c0_i32 = arith.constant 0 : i32
    %c0_i32_0 = arith.constant 0 : i32
    return %c0_i32, %arg0 : i32, i32
  }
  func.func @transform_20(%arg0: i32) -> (i32, i32) {
    %c0_i32 = arith.constant 0 : i32
    %c0_i32_0 = arith.constant 0 : i32
    return %c0_i32, %arg0 : i32, i32
  }
  func.func @transform_21(%arg0: i32) -> (i32, i32) {
    %c0_i32 = arith.constant 0 : i32
    %c0_i32_0 = arith.constant 0 : i32
    return %c0_i32, %arg0 : i32, i32
  }
  func.func @transform_22(%arg0: i32) -> (i32, i32) {
    %c0_i32 = arith.constant 0 : i32
    %c0_i32_0 = arith.constant 0 : i32
    return %c0_i32, %arg0 : i32, i32
  }
  func.func @transform_23(%arg0: i32) -> (i32, i32) {
    %c0_i32 = arith.constant 0 : i32
    %c0_i32_0 = arith.constant 0 : i32
    return %c0_i32, %arg0 : i32, i32
  }
}

</mosaic_0001>

<llo_original>
// kernel: tpu_custom_call.1
$region0: #{tpu_custom_call.1}
  #allocation0 [shape = 'u32[]', space=smem, size = 0x4, offset = 0x4, fixed_abs, tag = 'smem constant byte address 0x4 - core index']
  #allocation1 [shape = 'u32[72,128]{1,0:T(1,128)}', space=vmem, size = 0x9000, scoped, tag = 'internal scratch']
  #allocation2 [shape = 'f32[1,1]{1,0:T(1,128)S(1)}', space=vmem, size = 0x200, scoped, tag = 'scoped memory for tpu_custom_call.1']
  %s0 = inlined_call_operand.vmem [shape: f32[6,512], index: 0, kind: input, shape index: {}]
  %s1 = inlined_call_operand.vmem [shape: f32[64,6], index: 1, kind: input, shape index: {}]
  %s2 = inlined_call_operand.vmem [shape: f32[64,1], index: 2, kind: input, shape index: {}]
  %s3 = inlined_call_operand.vmem [shape: f32[128,64], index: 3, kind: input, shape index: {}]
  %s4 = inlined_call_operand.vmem [shape: f32[128,1], index: 4, kind: input, shape index: {}]
  %s5 = inlined_call_operand.vmem [shape: f32[256,128], index: 5, kind: input, shape index: {}]
  %s6 = inlined_call_operand.vmem [shape: f32[256,1], index: 6, kind: input, shape index: {}]
  %s7 = inlined_call_operand.vmem [shape: f32[256,256], index: 7, kind: input, shape index: {}]
  %s8 = inlined_call_operand.vmem [shape: f32[256,1], index: 8, kind: input, shape index: {}]
  %s9 = inlined_call_operand.hbm [shape: f32[256,256], index: 9, kind: input, shape index: {}]
  %s10 = inlined_call_operand.vmem [shape: f32[256,1], index: 10, kind: input, shape index: {}]
  %s11 = inlined_call_operand.vmem [shape: f32[1,256], index: 11, kind: input, shape index: {}]
  %s12 = inlined_call_operand.<no memory space> [shape: f32[1,1], index: 12, kind: input, shape index: {}]
  %s13 = inlined_call_operand.hbm [shape: f32[64,512], index: 13, kind: output, shape index: {0}]
  %s14 = inlined_call_operand.hbm [shape: f32[64,512], index: 14, kind: output, shape index: {1}]
  %s15 = inlined_call_operand.hbm [shape: f32[128,512], index: 15, kind: output, shape index: {2}]
  %s16 = inlined_call_operand.hbm [shape: f32[128,512], index: 16, kind: output, shape index: {3}]
  %s17 = inlined_call_operand.hbm [shape: f32[256,512], index: 17, kind: output, shape index: {4}]
  %s18 = inlined_call_operand.hbm [shape: f32[256,512], index: 18, kind: output, shape index: {5}]
  %s19 = inlined_call_operand.hbm [shape: f32[256,512], index: 19, kind: output, shape index: {6}]
  %s20 = inlined_call_operand.hbm [shape: f32[256,512], index: 20, kind: output, shape index: {7}]
  %s21 = inlined_call_operand.hbm [shape: f32[256,512], index: 21, kind: output, shape index: {8}]
  %s22 = inlined_call_operand.hbm [shape: f32[256,512], index: 22, kind: output, shape index: {9}]
  %s23 = inlined_call_operand.hbm [shape: f32[1,512], index: 23, kind: output, shape index: {10}]
  %24 = xla_tuple %s13, %s14, %s15, %s16, %s17, %s18, %s19, %s20, %s21, %s22, %s23
  %s25 = sld [smem:[#allocation0]]
  $region169: #{tpu_custom_call.1} parent=0
    _
  %s27 = ssub.s32 1, %s25
  %s28 = scalar_select 0, %s27, %s25
  %v29 = vstv %s12
  %30 = vst [vmem:[#allocation2] sm:$0x1] %v29
  $region1: #{tpu_custom_call.1} parent=0
    #allocation3 [shape = 'u8[262144]{0}', space=vmem, size = 0x40000, scoped, tag = 'input window, operand 9, single buffered']
    #allocation4 [shape = 's32[2]{0}', space=sflag, size = 0x8, scoped, tag = 'scoped memory for tpu_custom_call.1']
    #allocation5 [shape = 's32[2]{0}', space=sflag, size = 0x8, scoped, tag = 'scoped memory for tpu_custom_call.1']
    #allocation6 [shape = 'u8[131072]{0}', space=vmem, size = 0x20000, scoped, tag = 'output window, operand 0']
    #allocation7 [shape = 'u8[131072]{0}', space=vmem, size = 0x20000, scoped, tag = 'output window, operand 1']
    #allocation8 [shape = 's32[2]{0}', space=sflag, size = 0x8, scoped, tag = 'scoped memory for tpu_custom_call.1']
    #allocation9 [shape = 'u8[262144]{0}', space=vmem, size = 0x40000, scoped, tag = 'output window, operand 2']
    #allocation10 [shape = 'u8[262144]{0}', space=vmem, size = 0x40000, scoped, tag = 'output window, operand 3']
    #allocation11 [shape = 's32[2]{0}', space=sflag, size = 0x8, scoped, tag = 'scoped memory for tpu_custom_call.1']
    #allocation12 [shape = 'u8[524288]{0}', space=vmem, size = 0x80000, scoped, tag = 'output window, operand 4']
    #allocation13 [shape = 'u8[524288]{0}', space=vmem, size = 0x80000, scoped, tag = 'output window, operand 5']
    #allocation14 [shape = 's32[2]{0}', space=sflag, size = 0x8, scoped, tag = 'scoped memory for tpu_custom_call.1']
    #allocation15 [shape = 'u8[524288]{0}', space=vmem, size = 0x80000, scoped, tag = 'output window, operand 6']
    #allocation16 [shape = 'u8[524288]{0}', space=vmem, size = 0x80000, scoped, tag = 'output window, operand 7']
    #allocation17 [shape = 's32[2]{0}', space=sflag, size = 0x8, scoped, tag = 'scoped memory for tpu_custom_call.1']
    #allocation18 [shape = 'u8[524288]{0}', space=vmem, size = 0x80000, scoped, tag = 'output window, operand 8']
    #allocation19 [shape = 'u8[524288]{0}', space=vmem, size = 0x80000, scoped, tag = 'output window, operand 9']
    #allocation20 [shape = 's32[2]{0}', space=sflag, size = 0x8, scoped, tag = 'scoped memory for tpu_custom_call.1']
    #allocation21 [shape = 'u8[2048]{0}', space=vmem, size = 0x800, scoped, tag = 'output window, operand 10']
    %31 = vsyncpa [#allocation4], 0
    %32 = vsyncpa [#allocation5], 0
    %s33 = scalar_lea.sflag [#allocation5], 1
    %34 = vsyncpa %s33, 0
    %35 = vsyncpa [#allocation8], 0
    %s36 = scalar_lea.sflag [#allocation8], 1
    %37 = vsyncpa %s36, 0
    %38 = vsyncpa [#allocation11], 0
    %s39 = scalar_lea.sflag [#allocation11], 1
    %40 = vsyncpa %s39, 0
    %41 = vsyncpa [#allocation14], 0
    %s42 = scalar_lea.sflag [#allocation14], 1
    %43 = vsyncpa %s42, 0
    %44 = vsyncpa [#allocation17], 0
    %s45 = scalar_lea.sflag [#allocation17], 1
    %46 = vsyncpa %s45, 0
    %47 = vsyncpa [#allocation20], 0
    %s48 = scalar_lea.sflag [#allocation20], 1
    %49 = vsyncpa %s48, 0
    loop: start=0, step=1, limit=4
    $region2: #{tpu_custom_call.1} parent=1 // loop_pre_header
      _
    $region3: #{tpu_custom_call.1} parent=1 // loop_header
      %s51 = sphi 0, %s55
      %p52 = scmp.ge.s32.totalorder %s51, 4
      %s61 = sphi 0, %s63
      %s64 = sphi 0, %s61
      %s65 = sphi 0, %s64
      %s81 = sphi 0, %s65
      %s85 = sphi 0, %s85
      %s87 = sphi 0, %s85
      %s88 = sphi 0, %s87
      %s102 = sphi 0, %s88
      %s106 = sphi 0, %s106
      %s108 = sphi 0, %s106
      %s109 = sphi 0, %s108
      %s123 = sphi 0, %s109
      %s127 = sphi 0, %s127
      %s129 = sphi 0, %s127
      %s130 = sphi 0, %s129
      %s144 = sphi 0, %s130
      %s148 = sphi 0, %s148
      %s150 = sphi 0, %s148
      %s151 = sphi 0, %s150
      %s165 = sphi 0, %s151
      %s169 = sphi 0, %s169
      %s171 = sphi 0, %s169
      %s172 = sphi 0, %s171
      %s186 = sphi 0, %s172
      %s190 = sphi 0, %s190
      %s192 = sphi 0, %s190
      %s193 = sphi 0, %s192
      %s207 = sphi 0, %s193
      %s211 = sphi 0, %s211
      %s213 = sphi 0, %s211
      %s214 = sphi 0, %s213
      %s228 = sphi 0, %s214
      %s232 = sphi 0, %s232
      %s234 = sphi 0, %s232
      %s235 = sphi 0, %s234
      %s249 = sphi 0, %s235
      %s253 = sphi 0, %s253
      %s255 = sphi 0, %s253
      %s256 = sphi 0, %s255
      %s270 = sphi 0, %s256
      %s274 = sphi 0, %s274
      %s276 = sphi 0, %s274
      %s277 = sphi 0, %s276
      %s291 = sphi 0, %s277
      %s295 = sphi 0, %s295
      %s297 = sphi 0, %s295
      %s298 = sphi 0, %s297
      %s312 = sphi 0, %s298
      %s316 = sphi 0, %s316
      %s318 = sphi 0, %s316
      %s319 = sphi 0, %s318
      %s333 = sphi 0, %s319
      %s339 = sphi 0, %s341
      %s342 = sphi 0, %s339
      %s343 = sphi 0, %s342
      %s359 = sphi 0, %s343
      %s365 = sphi 0, %s367
      %s368 = sphi 0, %s365
      %s369 = sphi 0, %s368
      %s385 = sphi 0, %s369
      %s391 = sphi 0, %s393
      %s394 = sphi 0, %s391
      %s395 = sphi 0, %s394
      %s411 = sphi 0, %s395
      %s417 = sphi 0, %s419
      %s420 = sphi 0, %s417
      %s421 = sphi 0, %s420
      %s437 = sphi 0, %s421
      %s443 = sphi 0, %s445
      %s446 = sphi 0, %s443
      %s447 = sphi 0, %s446
      %s463 = sphi 0, %s447
      %s469 = sphi 0, %s471
      %s472 = sphi 0, %s469
      %s473 = sphi 0, %s472
      %s489 = sphi 0, %s473
      %s495 = sphi 0, %s497
      %s498 = sphi 0, %s495
      %s499 = sphi 0, %s498
      %s515 = sphi 0, %s499
      %s521 = sphi 0, %s523
      %s524 = sphi 0, %s521
      %s525 = sphi 0, %s524
      %s541 = sphi 0, %s525
      %s547 = sphi 0, %s549
      %s550 = sphi 0, %s547
      %s551 = sphi 0, %s550
      %s567 = sphi 0, %s551
      %s573 = sphi 0, %s575
      %s576 = sphi 0, %s573
      %s577 = sphi 0, %s576
      %s593 = sphi 0, %s577
      %s599 = sphi 0, %s601
      %s602 = sphi 0, %s599
      %s603 = sphi 0, %s602
      %s619 = sphi 0, %s603
    $region4: #{tpu_custom_call.1} parent=1 // loop_header_branch
      %54 = sbr.rel (%p52) target = $region8
    $region5: #{tpu_custom_call.1} parent=1 // loop_body
      %s56 = ssub.s32 %s51, 1
      %s57 = ssub.s32 %s51, 2
      %s58 = sadd.s32 %s51, 1
      %s59 = ssub.s32 %s51, %s58
      %p60 = scmp.eq.s32.totalorder %s59, 0
      %s62 = sadd.s32 %s61, 1
      %s63 = scalar_select %p60, %s61, %s62
      %p66 = pneg %p60
      %p67 = scmp.eq.s32.totalorder %s51, 1
      %p68 = por %p66, %p67
      %p69 = scmp.ne.s32.totalorder %s61, %s64
      %p70 = scmp.eq.s32.totalorder %s51, 0
      %p71 = por %p69, %p70
      %p72 = scmp.ne.s32.totalorder %s61, %s64
      %p73 = scmp.eq.s32.totalorder %s56, 1
      %p74 = por %p72, %p73
      %p75 = scmp.ne.s32.totalorder %s64, %s65
      %p76 = scmp.eq.s32.totalorder %s56, 0
      %p77 = por %p75, %p76
      %p78 = scmp.ne.s32.totalorder %s64, %s65
      %p79 = scmp.eq.s32.totalorder %s57, 1
      %p80 = por %p78, %p79
      %p82 = scmp.ne.s32.totalorder %s65, %s81
      %p83 = scmp.eq.s32.totalorder %s57, 0
      %p84 = por %p82, %p83
      %s86 = sadd.s32 %s85, 1
      %p89 = scmp.eq.s32.totalorder %s51, 1
      %p90 = scmp.ne.s32.totalorder %s85, %s87
      %p91 = scmp.eq.s32.totalorder %s51, 0
      %p92 = por %p90, %p91
      %p93 = scmp.ne.s32.totalorder %s85, %s87
      %p94 = scmp.eq.s32.totalorder %s56, 1
      %p95 = por %p93, %p94
      %p96 = scmp.ne.s32.totalorder %s87, %s88
      %p97 = scmp.eq.s32.totalorder %s56, 0
      %p98 = por %p96, %p97
      %p99 = scmp.ne.s32.totalorder %s87, %s88
      %p100 = scmp.eq.s32.totalorder %s57, 1
      %p101 = por %p99, %p100
      %p103 = scmp.ne.s32.totalorder %s88, %s102
      %p104 = scmp.eq.s32.totalorder %s57, 0
      %p105 = por %p103, %p104
      %s107 = sadd.s32 %s106, 1
      %p110 = scmp.eq.s32.totalorder %s51, 1
      %p111 = scmp.ne.s32.totalorder %s106, %s108
      %p112 = scmp.eq.s32.totalorder %s51, 0
      %p113 = por %p111, %p112
      %p114 = scmp.ne.s32.totalorder %s106, %s108
      %p115 = scmp.eq.s32.totalorder %s56, 1
      %p116 = por %p114, %p115
      %p117 = scmp.ne.s32.totalorder %s108, %s109
      %p118 = scmp.eq.s32.totalorder %s56, 0
      %p119 = por %p117, %p118
      %p120 = scmp.ne.s32.totalorder %s108, %s109
      %p121 = scmp.eq.s32.totalorder %s57, 1
      %p122 = por %p120, %p121
      %p124 = scmp.ne.s32.totalorder %s109, %s123
      %p125 = scmp.eq.s32.totalorder %s57, 0
      %p126 = por %p124, %p125
      %s128 = sadd.s32 %s127, 1
      %p131 = scmp.eq.s32.totalorder %s51, 1
      %p132 = scmp.ne.s32.totalorder %s127, %s129
      %p133 = scmp.eq.s32.totalorder %s51, 0
      %p134 = por %p132, %p133
      %p135 = scmp.ne.s32.totalorder %s127, %s129
      %p136 = scmp.eq.s32.totalorder %s56, 1
      %p137 = por %p135, %p136
      %p138 = scmp.ne.s32.totalorder %s129, %s130
      %p139 = scmp.eq.s32.totalorder %s56, 0
      %p140 = por %p138, %p139
      %p141 = scmp.ne.s32.totalorder %s129, %s130
      %p142 = scmp.eq.s32.totalorder %s57, 1
      %p143 = por %p141, %p142
      %p145 = scmp.ne.s32.totalorder %s130, %s144
      %p146 = scmp.eq.s32.totalorder %s57, 0
      %p147 = por %p145, %p146
      %s149 = sadd.s32 %s148, 1
      %p152 = scmp.eq.s32.totalorder %s51, 1
      %p153 = scmp.ne.s32.totalorder %s148, %s150
      %p154 = scmp.eq.s32.totalorder %s51, 0
      %p155 = por %p153, %p154
      %p156 = scmp.ne.s32.totalorder %s148, %s150
      %p157 = scmp.eq.s32.totalorder %s56, 1
      %p158 = por %p156, %p157
      %p159 = scmp.ne.s32.totalorder %s150, %s151
      %p160 = scmp.eq.s32.totalorder %s56, 0
      %p161 = por %p159, %p160
      %p162 = scmp.ne.s32.totalorder %s150, %s151
      %p163 = scmp.eq.s32.totalorder %s57, 1
      %p164 = por %p162, %p163
      %p166 = scmp.ne.s32.totalorder %s151, %s165
      %p167 = scmp.eq.s32.totalorder %s57, 0
      %p168 = por %p166, %p167
      %s170 = sadd.s32 %s169, 1
      %p173 = scmp.eq.s32.totalorder %s51, 1
      %p174 = scmp.ne.s32.totalorder %s169, %s171
      %p175 = scmp.eq.s32.totalorder %s51, 0
      %p176 = por %p174, %p175
      %p177 = scmp.ne.s32.totalorder %s169, %s171
      %p178 = scmp.eq.s32.totalorder %s56, 1
      %p179 = por %p177, %p178
      %p180 = scmp.ne.s32.totalorder %s171, %s172
      %p181 = scmp.eq.s32.totalorder %s56, 0
      %p182 = por %p180, %p181
      %p183 = scmp.ne.s32.totalorder %s171, %s172
      %p184 = scmp.eq.s32.totalorder %s57, 1
      %p185 = por %p183, %p184
      %p187 = scmp.ne.s32.totalorder %s172, %s186
      %p188 = scmp.eq.s32.totalorder %s57, 0
      %p189 = por %p187, %p188
      %s191 = sadd.s32 %s190, 1
      %p194 = scmp.eq.s32.totalorder %s51, 1
      %p195 = scmp.ne.s32.totalorder %s190, %s192
      %p196 = scmp.eq.s32.totalorder %s51, 0
      %p197 = por %p195, %p196
      %p198 = scmp.ne.s32.totalorder %s190, %s192
      %p199 = scmp.eq.s32.totalorder %s56, 1
      %p200 = por %p198, %p199
      %p201 = scmp.ne.s32.totalorder %s192, %s193
      %p202 = scmp.eq.s32.totalorder %s56, 0
      %p203 = por %p201, %p202
      %p204 = scmp.ne.s32.totalorder %s192, %s193
      %p205 = scmp.eq.s32.totalorder %s57, 1
      %p206 = por %p204, %p205
      %p208 = scmp.ne.s32.totalorder %s193, %s207
      %p209 = scmp.eq.s32.totalorder %s57, 0
      %p210 = por %p208, %p209
      %s212 = sadd.s32 %s211, 1
      %p215 = scmp.eq.s32.totalorder %s51, 1
      %p216 = scmp.ne.s32.totalorder %s211, %s213
      %p217 = scmp.eq.s32.totalorder %s51, 0
      %p218 = por %p216, %p217
      %p219 = scmp.ne.s32.totalorder %s211, %s213
      %p220 = scmp.eq.s32.totalorder %s56, 1
      %p221 = por %p219, %p220
      %p222 = scmp.ne.s32.totalorder %s213, %s214
      %p223 = scmp.eq.s32.totalorder %s56, 0
      %p224 = por %p222, %p223
      %p225 = scmp.ne.s32.totalorder %s213, %s214
      %p226 = scmp.eq.s32.totalorder %s57, 1
      %p227 = por %p225, %p226
      %p229 = scmp.ne.s32.totalorder %s214, %s228
      %p230 = scmp.eq.s32.totalorder %s57, 0
      %p231 = por %p229, %p230
      %s233 = sadd.s32 %s232, 1
      %p236 = scmp.eq.s32.totalorder %s51, 1
      %p237 = scmp.ne.s32.totalorder %s232, %s234
      %p238 = scmp.eq.s32.totalorder %s51, 0
      %p239 = por %p237, %p238
      %p240 = scmp.ne.s32.totalorder %s232, %s234
      %p241 = scmp.eq.s32.totalorder %s56, 1
      %p242 = por %p240, %p241
      %p243 = scmp.ne.s32.totalorder %s234, %s235
      %p244 = scmp.eq.s32.totalorder %s56, 0
      %p245 = por %p243, %p244
      %p246 = scmp.ne.s32.totalorder %s234, %s235
      %p247 = scmp.eq.s32.totalorder %s57, 1
      %p248 = por %p246, %p247
      %p250 = scmp.ne.s32.totalorder %s235, %s249
      %p251 = scmp.eq.s32.totalorder %s57, 0
      %p252 = por %p250, %p251
      %s254 = sadd.s32 %s253, 1
      %p257 = scmp.eq.s32.totalorder %s51, 1
      %p258 = scmp.ne.s32.totalorder %s253, %s255
      %p259 = scmp.eq.s32.totalorder %s51, 0
      %p260 = por %p258, %p259
      %p261 = scmp.ne.s32.totalorder %s253, %s255
      %p262 = scmp.eq.s32.totalorder %s56, 1
      %p263 = por %p261, %p262
      %p264 = scmp.ne.s32.totalorder %s255, %s256
      %p265 = scmp.eq.s32.totalorder %s56, 0
      %p266 = por %p264, %p265
      %p267 = scmp.ne.s32.totalorder %s255, %s256
      %p268 = scmp.eq.s32.totalorder %s57, 1
      %p269 = por %p267, %p268
      %p271 = scmp.ne.s32.totalorder %s256, %s270
      %p272 = scmp.eq.s32.totalorder %s57, 0
      %p273 = por %p271, %p272
      %s275 = sadd.s32 %s274, 1
      %p278 = scmp.eq.s32.totalorder %s51, 1
      %p279 = scmp.ne.s32.totalorder %s274, %s276
      %p280 = scmp.eq.s32.totalorder %s51, 0
      %p281 = por %p279, %p280
      %p282 = scmp.ne.s32.totalorder %s274, %s276
      %p283 = scmp.eq.s32.totalorder %s56, 1
      %p284 = por %p282, %p283
      %p285 = scmp.ne.s32.totalorder %s276, %s277
      %p286 = scmp.eq.s32.totalorder %s56, 0
      %p287 = por %p285, %p286
      %p288 = scmp.ne.s32.totalorder %s276, %s277
      %p289 = scmp.eq.s32.totalorder %s57, 1
      %p290 = por %p288, %p289
      %p292 = scmp.ne.s32.totalorder %s277, %s291
      %p293 = scmp.eq.s32.totalorder %s57, 0
      %p294 = por %p292, %p293
      %s296 = sadd.s32 %s295, 1
      %p299 = scmp.eq.s32.totalorder %s51, 1
      %p300 = scmp.ne.s32.totalorder %s295, %s297
      %p301 = scmp.eq.s32.totalorder %s51, 0
      %p302 = por %p300, %p301
      %p303 = scmp.ne.s32.totalorder %s295, %s297
      %p304 = scmp.eq.s32.totalorder %s56, 1
      %p305 = por %p303, %p304
      %p306 = scmp.ne.s32.totalorder %s297, %s298
      %p307 = scmp.eq.s32.totalorder %s56, 0
      %p308 = por %p306, %p307
      %p309 = scmp.ne.s32.totalorder %s297, %s298
      %p310 = scmp.eq.s32.totalorder %s57, 1
      %p311 = por %p309, %p310
      %p313 = scmp.ne.s32.totalorder %s298, %s312
      %p314 = scmp.eq.s32.totalorder %s57, 0
      %p315 = por %p313, %p314
      %s317 = sadd.s32 %s316, 1
      %p320 = scmp.eq.s32.totalorder %s51, 1
      %p321 = scmp.ne.s32.totalorder %s316, %s318
      %p322 = scmp.eq.s32.totalorder %s51, 0
      %p323 = por %p321, %p322
      %p324 = scmp.ne.s32.totalorder %s316, %s318
      %p325 = scmp.eq.s32.totalorder %s56, 1
      %p326 = por %p324, %p325
      %p327 = scmp.ne.s32.totalorder %s318, %s319
      %p328 = scmp.eq.s32.totalorder %s56, 0
      %p329 = por %p327, %p328
      %p330 = scmp.ne.s32.totalorder %s318, %s319
      %p331 = scmp.eq.s32.totalorder %s57, 1
      %p332 = por %p330, %p331
      %p334 = scmp.ne.s32.totalorder %s319, %s333
      %p335 = scmp.eq.s32.totalorder %s57, 0
      %p336 = por %p334, %p335
      %s337 = ssub.s32 %s51, %s58
      %p338 = scmp.eq.s32.totalorder %s337, 0
      %s340 = sadd.s32 %s339, 1
      %s341 = scalar_select %p338, %s339, %s340
      %p344 = pneg %p338
      %p345 = scmp.eq.s32.totalorder %s51, 1
      %p346 = por %p344, %p345
      %p347 = scmp.ne.s32.totalorder %s339, %s342
      %p348 = scmp.eq.s32.totalorder %s51, 0
      %p349 = por %p347, %p348
      %p350 = scmp.ne.s32.totalorder %s339, %s342
      %p351 = scmp.eq.s32.totalorder %s56, 1
      %p352 = por %p350, %p351
      %p353 = scmp.ne.s32.totalorder %s342, %s343
      %p354 = scmp.eq.s32.totalorder %s56, 0
      %p355 = por %p353, %p354
      %p356 = scmp.ne.s32.totalorder %s342, %s343
      %p357 = scmp.eq.s32.totalorder %s57, 1
      %p358 = por %p356, %p357
      %p360 = scmp.ne.s32.totalorder %s343, %s359
      %p361 = scmp.eq.s32.totalorder %s57, 0
      %p362 = por %p360, %p361
      %s363 = ssub.s32 %s51, %s58
      %p364 = scmp.eq.s32.totalorder %s363, 0
      %s366 = sadd.s32 %s365, 1
      %s367 = scalar_select %p364, %s365, %s366
      %p370 = pneg %p364
      %p371 = scmp.eq.s32.totalorder %s51, 1
      %p372 = por %p370, %p371
      %p373 = scmp.ne.s32.totalorder %s365, %s368
      %p374 = scmp.eq.s32.totalorder %s51, 0
      %p375 = por %p373, %p374
      %p376 = scmp.ne.s32.totalorder %s365, %s368
      %p377 = scmp.eq.s32.totalorder %s56, 1
      %p378 = por %p376, %p377
      %p379 = scmp.ne.s32.totalorder %s368, %s369
      %p380 = scmp.eq.s32.totalorder %s56, 0
      %p381 = por %p379, %p380
      %p382 = scmp.ne.s32.totalorder %s368, %s369
      %p383 = scmp.eq.s32.totalorder %s57, 1
      %p384 = por %p382, %p383
      %p386 = scmp.ne.s32.totalorder %s369, %s385
      %p387 = scmp.eq.s32.totalorder %s57, 0
      %p388 = por %p386, %p387
      %s389 = ssub.s32 %s51, %s58
      %p390 = scmp.eq.s32.totalorder %s389, 0
      %s392 = sadd.s32 %s391, 1
      %s393 = scalar_select %p390, %s391, %s392
      %p396 = pneg %p390
      %p397 = scmp.eq.s32.totalorder %s51, 1
      %p398 = por %p396, %p397
      %p399 = scmp.ne.s32.totalorder %s391, %s394
      %p400 = scmp.eq.s32.totalorder %s51, 0
      %p401 = por %p399, %p400
      %p402 = scmp.ne.s32.totalorder %s391, %s394
      %p403 = scmp.eq.s32.totalorder %s56, 1
      %p404 = por %p402, %p403
      %p405 = scmp.ne.s32.totalorder %s394, %s395
      %p406 = scmp.eq.s32.totalorder %s56, 0
      %p407 = por %p405, %p406
      %p408 = scmp.ne.s32.totalorder %s394, %s395
      %p409 = scmp.eq.s32.totalorder %s57, 1
      %p410 = por %p408, %p409
      %p412 = scmp.ne.s32.totalorder %s395, %s411
      %p413 = scmp.eq.s32.totalorder %s57, 0
      %p414 = por %p412, %p413
      %s415 = ssub.s32 %s51, %s58
      %p416 = scmp.eq.s32.totalorder %s415, 0
      %s418 = sadd.s32 %s417, 1
      %s419 = scalar_select %p416, %s417, %s418
      %p422 = pneg %p416
      %p423 = scmp.eq.s32.totalorder %s51, 1
      %p424 = por %p422, %p423
      %p425 = scmp.ne.s32.totalorder %s417, %s420
      %p426 = scmp.eq.s32.totalorder %s51, 0
      %p427 = por %p425, %p426
      %p428 = scmp.ne.s32.totalorder %s417, %s420
      %p429 = scmp.eq.s32.totalorder %s56, 1
      %p430 = por %p428, %p429
      %p431 = scmp.ne.s32.totalorder %s420, %s421
      %p432 = scmp.eq.s32.totalorder %s56, 0
      %p433 = por %p431, %p432
      %p434 = scmp.ne.s32.totalorder %s420, %s421
      %p435 = scmp.eq.s32.totalorder %s57, 1
      %p436 = por %p434, %p435
      %p438 = scmp.ne.s32.totalorder %s421, %s437
      %p439 = scmp.eq.s32.totalorder %s57, 0
      %p440 = por %p438, %p439
      %s441 = ssub.s32 %s51, %s58
      %p442 = scmp.eq.s32.totalorder %s441, 0
      %s444 = sadd.s32 %s443, 1
      %s445 = scalar_select %p442, %s443, %s444
      %p448 = pneg %p442
      %p449 = scmp.eq.s32.totalorder %s51, 1
      %p450 = por %p448, %p449
      %p451 = scmp.ne.s32.totalorder %s443, %s446
      %p452 = scmp.eq.s32.totalorder %s51, 0
      %p453 = por %p451, %p452
      %p454 = scmp.ne.s32.totalorder %s443, %s446
      %p455 = scmp.eq.s32.totalorder %s56, 1
      %p456 = por %p454, %p455
      %p457 = scmp.ne.s32.totalorder %s446, %s447
      %p458 = scmp.eq.s32.totalorder %s56, 0
      %p459 = por %p457, %p458
      %p460 = scmp.ne.s32.totalorder %s446, %s447
      %p461 = scmp.eq.s32.totalorder %s57, 1
      %p462 = por %p460, %p461
      %p464 = scmp.ne.s32.totalorder %s447, %s463
      %p465 = scmp.eq.s32.totalorder %s57, 0
      %p466 = por %p464, %p465
      %s467 = ssub.s32 %s51, %s58
      %p468 = scmp.eq.s32.totalorder %s467, 0
      %s470 = sadd.s32 %s469, 1
      %s471 = scalar_select %p468, %s469, %s470
      %p474 = pneg %p468
      %p475 = scmp.eq.s32.totalorder %s51, 1
      %p476 = por %p474, %p475
      %p477 = scmp.ne.s32.totalorder %s469, %s472
      %p478 = scmp.eq.s32.totalorder %s51, 0
      %p479 = por %p477, %p478
      %p480 = scmp.ne.s32.totalorder %s469, %s472
      %p481 = scmp.eq.s32.totalorder %s56, 1
      %p482 = por %p480, %p481
      %p483 = scmp.ne.s32.totalorder %s472, %s473
      %p484 = scmp.eq.s32.totalorder %s56, 0
      %p485 = por %p483, %p484
      %p486 = scmp.ne.s32.totalorder %s472, %s473
      %p487 = scmp.eq.s32.totalorder %s57, 1
      %p488 = por %p486, %p487
      %p490 = scmp.ne.s32.totalorder %s473, %s489
      %p491 = scmp.eq.s32.totalorder %s57, 0
      %p492 = por %p490, %p491
      %s493 = ssub.s32 %s51, %s58
      %p494 = scmp.eq.s32.totalorder %s493, 0
      %s496 = sadd.s32 %s495, 1
      %s497 = scalar_select %p494, %s495, %s496
      %p500 = pneg %p494
      %p501 = scmp.eq.s32.totalorder %s51, 1
      %p502 = por %p500, %p501
      %p503 = scmp.ne.s32.totalorder %s495, %s498
      %p504 = scmp.eq.s32.totalorder %s51, 0
      %p505 = por %p503, %p504
      %p506 = scmp.ne.s32.totalorder %s495, %s498
      %p507 = scmp.eq.s32.totalorder %s56, 1
      %p508 = por %p506, %p507
      %p509 = scmp.ne.s32.totalorder %s498, %s499
      %p510 = scmp.eq.s32.totalorder %s56, 0
      %p511 = por %p509, %p510
      %p512 = scmp.ne.s32.totalorder %s498, %s499
      %p513 = scmp.eq.s32.totalorder %s57, 1
      %p514 = por %p512, %p513
      %p516 = scmp.ne.s32.totalorder %s499, %s515
      %p517 = scmp.eq.s32.totalorder %s57, 0
      %p518 = por %p516, %p517
      %s519 = ssub.s32 %s51, %s58
      %p520 = scmp.eq.s32.totalorder %s519, 0
      %s522 = sadd.s32 %s521, 1
      %s523 = scalar_select %p520, %s521, %s522
      %p526 = pneg %p520
      %p527 = scmp.eq.s32.totalorder %s51, 1
      %p528 = por %p526, %p527
      %p529 = scmp.ne.s32.totalorder %s521, %s524
      %p530 = scmp.eq.s32.totalorder %s51, 0
      %p531 = por %p529, %p530
      %p532 = scmp.ne.s32.totalorder %s521, %s524
      %p533 = scmp.eq.s32.totalorder %s56, 1
      %p534 = por %p532, %p533
      %p535 = scmp.ne.s32.totalorder %s524, %s525
      %p536 = scmp.eq.s32.totalorder %s56, 0
      %p537 = por %p535, %p536
      %p538 = scmp.ne.s32.totalorder %s524, %s525
      %p539 = scmp.eq.s32.totalorder %s57, 1
      %p540 = por %p538, %p539
      %p542 = scmp.ne.s32.totalorder %s525, %s541
      %p543 = scmp.eq.s32.totalorder %s57, 0
      %p544 = por %p542, %p543
      %s545 = ssub.s32 %s51, %s58
      %p546 = scmp.eq.s32.totalorder %s545, 0
      %s548 = sadd.s32 %s547, 1
      %s549 = scalar_select %p546, %s547, %s548
      %p552 = pneg %p546
      %p553 = scmp.eq.s32.totalorder %s51, 1
      %p554 = por %p552, %p553
      %p555 = scmp.ne.s32.totalorder %s547, %s550
      %p556 = scmp.eq.s32.totalorder %s51, 0
      %p557 = por %p555, %p556
      %p558 = scmp.ne.s32.totalorder %s547, %s550
      %p559 = scmp.eq.s32.totalorder %s56, 1
      %p560 = por %p558, %p559
      %p561 = scmp.ne.s32.totalorder %s550, %s551
      %p562 = scmp.eq.s32.totalorder %s56, 0
      %p563 = por %p561, %p562
      %p564 = scmp.ne.s32.totalorder %s550, %s551
      %p565 = scmp.eq.s32.totalorder %s57, 1
      %p566 = por %p564, %p565
      %p568 = scmp.ne.s32.totalorder %s551, %s567
      %p569 = scmp.eq.s32.totalorder %s57, 0
      %p570 = por %p568, %p569
      %s571 = ssub.s32 %s51, %s58
      %p572 = scmp.eq.s32.totalorder %s571, 0
      %s574 = sadd.s32 %s573, 1
      %s575 = scalar_select %p572, %s573, %s574
      %p578 = pneg %p572
      %p579 = scmp.eq.s32.totalorder %s51, 1
      %p580 = por %p578, %p579
      %p581 = scmp.ne.s32.totalorder %s573, %s576
      %p582 = scmp.eq.s32.totalorder %s51, 0
      %p583 = por %p581, %p582
      %p584 = scmp.ne.s32.totalorder %s573, %s576
      %p585 = scmp.eq.s32.totalorder %s56, 1
      %p586 = por %p584, %p585
      %p587 = scmp.ne.s32.totalorder %s576, %s577
      %p588 = scmp.eq.s32.totalorder %s56, 0
      %p589 = por %p587, %p588
      %p590 = scmp.ne.s32.totalorder %s576, %s577
      %p591 = scmp.eq.s32.totalorder %s57, 1
      %p592 = por %p590, %p591
      %p594 = scmp.ne.s32.totalorder %s577, %s593
      %p595 = scmp.eq.s32.totalorder %s57, 0
      %p596 = por %p594, %p595
      %s597 = ssub.s32 %s51, %s58
      %p598 = scmp.eq.s32.totalorder %s597, 0
      %s600 = sadd.s32 %s599, 1
      %s601 = scalar_select %p598, %s599, %s600
      %p604 = pneg %p598
      %p605 = scmp.eq.s32.totalorder %s51, 1
      %p606 = por %p604, %p605
      %p607 = scmp.ne.s32.totalorder %s599, %s602
      %p608 = scmp.eq.s32.totalorder %s51, 0
      %p609 = por %p607, %p608
      %p610 = scmp.ne.s32.totalorder %s599, %s602
      %p611 = scmp.eq.s32.totalorder %s56, 1
      %p612 = por %p610, %p611
      %p613 = scmp.ne.s32.totalorder %s602, %s603
      %p614 = scmp.eq.s32.totalorder %s56, 0
      %p615 = por %p613, %p614
      %p616 = scmp.ne.s32.totalorder %s602, %s603
      %p617 = scmp.eq.s32.totalorder %s57, 1
      %p618 = por %p616, %p617
      %p620 = scmp.ne.s32.totalorder %s603, %s619
      %p621 = scmp.eq.s32.totalorder %s57, 0
      %p622 = por %p620, %p621
      %p623 = scmp.le.s32.totalorder 1, %s51
      %p624 = scmp.lt.s32.totalorder %s51, 3
      %p625 = pnand %p623, %p624
      %p626 = pneg %p625
      // Predicated region
      $region9: #{tpu_custom_call.1} parent=5 // pred_check
        _
      $region10: #{tpu_custom_call.1} parent=5 // pred_check_branch
        %628 = sbr.rel (%p625) target = $region12
      $region11: #{tpu_custom_call.1} parent=5 // pred_region
        %s629 = ssub.s32 %s51, 1
        // Predicated region
        $region13: #{tpu_custom_call.1} parent=11 // pred_check
          %p630 = pneg %p98
        $region14: #{tpu_custom_call.1} parent=11 // pred_check_branch
          %632 = sbr.rel (%p630) target = $region16
        $region15: #{tpu_custom_call.1} parent=11 // pred_region
          _
        $region16: #{tpu_custom_call.1} parent=11 // pred_fallthru
          _
        // Predicated region
        $region17: #{tpu_custom_call.1} parent=11 // pred_check
          %p633 = pneg %p119
        $region18: #{tpu_custom_call.1} parent=11 // pred_check_branch
          %635 = sbr.rel (%p633) target = $region20
        $region19: #{tpu_custom_call.1} parent=11 // pred_region
          _
        $region20: #{tpu_custom_call.1} parent=11 // pred_fallthru
          _
        // Predicated region
        $region21: #{tpu_custom_call.1} parent=11 // pred_check
          %p636 = pneg %p140
        $region22: #{tpu_custom_call.1} parent=11 // pred_check_branch
          %638 = sbr.rel (%p636) target = $region24
        $region23: #{tpu_custom_call.1} parent=11 // pred_region
          _
        $region24: #{tpu_custom_call.1} parent=11 // pred_fallthru
          _
        // Predicated region
        $region25: #{tpu_custom_call.1} parent=11 // pred_check
          %p639 = pneg %p161
        $region26: #{tpu_custom_call.1} parent=11 // pred_check_branch
          %641 = sbr.rel (%p639) target = $region28
        $region27: #{tpu_custom_call.1} parent=11 // pred_region
          _
        $region28: #{tpu_custom_call.1} parent=11 // pred_fallthru
          _
        // Predicated region
        $region29: #{tpu_custom_call.1} parent=11 // pred_check
          %p642 = pneg %p182
        $region30: #{tpu_custom_call.1} parent=11 // pred_check_branch
          %644 = sbr.rel (%p642) target = $region32
        $region31: #{tpu_custom_call.1} parent=11 // pred_region
          _
        $region32: #{tpu_custom_call.1} parent=11 // pred_fallthru
          _
        // Predicated region
        $region33: #{tpu_custom_call.1} parent=11 // pred_check
          %p645 = pneg %p203
        $region34: #{tpu_custom_call.1} parent=11 // pred_check_branch
          %647 = sbr.rel (%p645) target = $region36
        $region35: #{tpu_custom_call.1} parent=11 // pred_region
          _
        $region36: #{tpu_custom_call.1} parent=11 // pred_fallthru
          _
        // Predicated region
        $region37: #{tpu_custom_call.1} parent=11 // pred_check
          %p648 = pneg %p224
        $region38: #{tpu_custom_call.1} parent=11 // pred_check_branch
          %650 = sbr.rel (%p648) target = $region40
        $region39: #{tpu_custom_call.1} parent=11 // pred_region
          _
        $region40: #{tpu_custom_call.1} parent=11 // pred_fallthru
          _
        // Predicated region
        $region41: #{tpu_custom_call.1} parent=11 // pred_check
          %p651 = pneg %p245
        $region42: #{tpu_custom_call.1} parent=11 // pred_check_branch
          %653 = sbr.rel (%p651) target = $region44
        $region43: #{tpu_custom_call.1} parent=11 // pred_region
          _
        $region44: #{tpu_custom_call.1} parent=11 // pred_fallthru
          _
        // Predicated region
        $region45: #{tpu_custom_call.1} parent=11 // pred_check
          %p654 = pneg %p266
        $region46: #{tpu_custom_call.1} parent=11 // pred_check_branch
          %656 = sbr.rel (%p654) target = $region48
        $region47: #{tpu_custom_call.1} parent=11 // pred_region
          %658 = vsyncadd [#allocation4], 0
          %s659 = sshll.u32 %s9, 4
          %s660 = int_to_ptr.hbm [resolvable:$true] %s659
          %s661 = sshll.u32 [#allocation3], 4
          %s662 = int_to_ptr.vmem [resolvable:$true] %s661
          %667 = dma.hbm_to_vmem [thread:$0]  %s660, 8192, %s662, [#allocation4], 256, 256, 16
        $region48: #{tpu_custom_call.1} parent=11 // pred_fallthru
          _
        // Predicated region
        $region49: #{tpu_custom_call.1} parent=11 // pred_check
          %p668 = pneg %p287
        $region50: #{tpu_custom_call.1} parent=11 // pred_check_branch
          %670 = sbr.rel (%p668) target = $region52
        $region51: #{tpu_custom_call.1} parent=11 // pred_region
          _
        $region52: #{tpu_custom_call.1} parent=11 // pred_fallthru
          _
        // Predicated region
        $region53: #{tpu_custom_call.1} parent=11 // pred_check
          %p671 = pneg %p308
        $region54: #{tpu_custom_call.1} parent=11 // pred_check_branch
          %673 = sbr.rel (%p671) target = $region56
        $region55: #{tpu_custom_call.1} parent=11 // pred_region
          _
        $region56: #{tpu_custom_call.1} parent=11 // pred_fallthru
          _
        // Predicated region
        $region57: #{tpu_custom_call.1} parent=11 // pred_check
          %p674 = pneg %p329
        $region58: #{tpu_custom_call.1} parent=11 // pred_check_branch
          %676 = sbr.rel (%p674) target = $region60
        $region59: #{tpu_custom_call.1} parent=11 // pred_region
          _
        $region60: #{tpu_custom_call.1} parent=11 // pred_fallthru
          _
      $region12: #{tpu_custom_call.1} parent=5 // pred_fallthru
        _
      %p677 = scmp.lt.s32.totalorder %s51, 2
      // Predicated region
      $region61: #{tpu_custom_call.1} parent=5 // pred_check
        %p678 = pneg %p677
      $region62: #{tpu_custom_call.1} parent=5 // pred_check_branch
        %680 = sbr.rel (%p678) target = $region64
      $region63: #{tpu_custom_call.1} parent=5 // pred_region
        // Predicated region
        $region65: #{tpu_custom_call.1} parent=63 // pred_check
          %p681 = pneg %p71
        $region66: #{tpu_custom_call.1} parent=63 // pred_check_branch
          %683 = sbr.rel (%p681) target = $region68
        $region67: #{tpu_custom_call.1} parent=63 // pred_region
          %s684 = smul.u32 2, %s51
          %p685 = scmp.lt.s32.totalorder %s684, 3
          %s686 = scalar_select %p685, %s684, 3
          %s687 = smul.addr %s686, 8
          %s688 = scalar_lea.vmem %s0, %s687
          %s689 = smul.u32 2, %s51
        $region68: #{tpu_custom_call.1} parent=63 // pred_fallthru
          _
      $region64: #{tpu_custom_call.1} parent=5 // pred_fallthru
        _
      %p690 = scmp.le.s32.totalorder 1, %s51
      %p691 = scmp.lt.s32.totalorder %s51, 3
      %p692 = pnand %p690, %p691
      %p693 = pneg %p692
      // Predicated region
      $region69: #{tpu_custom_call.1} parent=5 // pred_check
        _
      $region70: #{tpu_custom_call.1} parent=5 // pred_check_branch
        %695 = sbr.rel (%p692) target = $region72
      $region71: #{tpu_custom_call.1} parent=5 // pred_region
        %s696 = ssub.s32 %s51, 1
        // Predicated region
        $region73: #{tpu_custom_call.1} parent=71 // pred_check
          %p697 = pneg %p266
        $region74: #{tpu_custom_call.1} parent=71 // pred_check_branch
          %699 = sbr.rel (%p697) target = $region76
        $region75: #{tpu_custom_call.1} parent=71 // pred_region
          %701 = dma.done [#allocation4], 8192
        $region76: #{tpu_custom_call.1} parent=71 // pred_fallthru
          _
        %s702 = smul.u32 2, %s56
        %p703 = scmp.lt.s32.totalorder %s702, 3
        %s704 = scalar_select %p703, %s702, 3
        %s705 = smul.addr %s704, 8
        %s706 = scalar_lea.vmem %s0, %s705
        %p707 = pneg %p77
        %p708 = pneg %p74
        %p709 = pneg %p98
        %p710 = pneg %p95
        %p711 = pneg %p119
        %p712 = pneg %p116
        %p713 = pneg %p140
        %p714 = pneg %p137
        %p715 = pneg %p161
        %p716 = pneg %p158
        %p717 = pneg %p182
        %p718 = pneg %p179
        %p719 = pneg %p203
        %p720 = pneg %p200
        %p721 = pneg %p224
        %p722 = pneg %p221
        %p723 = pneg %p245
        %p724 = pneg %p242
        %p725 = pneg %p266
        %p726 = pneg %p263
        %p727 = pneg %p287
        %p728 = pneg %p284
        %p729 = pneg %p308
        %p730 = pneg %p305
        %p731 = pneg %p329
        %p732 = pneg %p326
        %p733 = pneg %p355
        %p734 = pneg %p352
        %s735 = sand.u32 %s342, 1
        %s736 = scalar_lea.sflag [#allocation5], %s735
        %s737 = sand.u32 %s342, 1
        %s738 = smul.addr %s737, 128
        %s739 = scalar_lea.vmem [#allocation6], %s738
        %p740 = pneg %p381
        %p741 = pneg %p378
        %s742 = sand.u32 %s56, 1
        %s743 = scalar_lea.sflag [#allocation8], %s742
        %s744 = sand.u32 %s368, 1
        %s745 = smul.addr %s744, 128
        %s746 = scalar_lea.vmem [#allocation7], %s745
        %p747 = pneg %p407
        %p748 = pneg %p404
        %s749 = sand.u32 %s56, 1
        %s750 = scalar_lea.sflag [#allocation8], %s749
        %s751 = sand.u32 %s394, 1
        %s752 = smul.addr %s751, 256
        %s753 = scalar_lea.vmem [#allocation9], %s752
        %p754 = pneg %p433
        %p755 = pneg %p430
        %s756 = sand.u32 %s56, 1
        %s757 = scalar_lea.sflag [#allocation11], %s756
        %s758 = sand.u32 %s420, 1
        %s759 = smul.addr %s758, 256
        %s760 = scalar_lea.vmem [#allocation10], %s759
        %p761 = pneg %p459
        %p762 = pneg %p456
        %s763 = sand.u32 %s56, 1
        %s764 = scalar_lea.sflag [#allocation11], %s763
        %s765 = sand.u32 %s446, 1
        %s766 = smul.addr %s765, 512
        %s767 = scalar_lea.vmem [#allocation12], %s766
        %p768 = pneg %p485
        %p769 = pneg %p482
        %s770 = sand.u32 %s56, 1
        %s771 = scalar_lea.sflag [#allocation14], %s770
        %s772 = sand.u32 %s472, 1
        %s773 = smul.addr %s772, 512
        %s774 = scalar_lea.vmem [#allocation13], %s773
        %p775 = pneg %p511
        %p776 = pneg %p508
        %s777 = sand.u32 %s56, 1
        %s778 = scalar_lea.sflag [#allocation14], %s777
        %s779 = sand.u32 %s498, 1
        %s780 = smul.addr %s779, 512
        %s781 = scalar_lea.vmem [#allocation15], %s780
        %p782 = pneg %p537
        %p783 = pneg %p534
        %s784 = sand.u32 %s56, 1
        %s785 = scalar_lea.sflag [#allocation17], %s784
        %s786 = sand.u32 %s524, 1
        %s787 = smul.addr %s786, 512
        %s788 = scalar_lea.vmem [#allocation16], %s787
        %p789 = pneg %p563
        %p790 = pneg %p560
        %s791 = sand.u32 %s56, 1
        %s792 = scalar_lea.sflag [#allocation17], %s791
        %s793 = sand.u32 %s550, 1
        %s794 = smul.addr %s793, 512
        %s795 = scalar_lea.vmem [#allocation18], %s794
        %p796 = pneg %p589
        %p797 = pneg %p586
        %s798 = sand.u32 %s56, 1
        %s799 = scalar_lea.sflag [#allocation20], %s798
        %s800 = sand.u32 %s576, 1
        %s801 = smul.addr %s800, 512
        %s802 = scalar_lea.vmem [#allocation19], %s801
        %p803 = pneg %p615
        %p804 = pneg %p612
        %s805 = sand.u32 %s56, 1
        %s806 = scalar_lea.sflag [#allocation20], %s805
        %s807 = sand.u32 %s602, 1
        %s808 = smul.addr %s807, 2
        %s809 = scalar_lea.vmem [#allocation21], %s808
        %s810 = smul.u32 2, %s56
        %p811 = scmp.lt.s32.totalorder %s810, 3
        %s812 = scalar_select %p811, %s810, 3
        %s813 = smul.addr %s812, 8
        %s814 = scalar_lea.vmem %s0, %s813
        %s815 = smul.u32 2, %s56
        %s816 = smul.u32 2, %s56
        %s817 = smul.u32 2, %s56
        %s818 = smul.u32 2, %s56
        %s819 = smul.u32 2, %s56
        %s820 = smul.u32 2, %s56
        %s821 = smul.u32 2, %s56
        %s822 = smul.u32 2, %s56
        %s823 = smul.u32 2, %s56
        %s824 = smul.u32 2, %s56
        %s825 = smul.u32 2, %s56
        %s826 = smul.u32 2, %s56
        %v827 = vld [vmem:[%s814] sm:$0x3f]
        %v828 = vld [vmem:[%s814 + $0x8] sm:$0x3f]
        %v829 = vld [vmem:[%s1] sm:$0xff]
        %v830 = vld [vmem:[%s1 + $0x8] sm:$0xff]
        %v831 = vld [vmem:[%s1 + $0x10] sm:$0xff]
        %v832 = vld [vmem:[%s1 + $0x18] sm:$0xff]
        %v833 = vld [vmem:[%s1 + $0x20] sm:$0xff]
        %v834 = vld [vmem:[%s1 + $0x28] sm:$0xff]
        %v835 = vld [vmem:[%s1 + $0x30] sm:$0xff]
        %v836 = vld [vmem:[%s1 + $0x38] sm:$0xff]
        %v837 = vld [vmem:[%s2] sm:$0xff]
        %v838 = vld [vmem:[%s2 + $0x8] sm:$0xff]
        %v839 = vld [vmem:[%s2 + $0x10] sm:$0xff]
        %v840 = vld [vmem:[%s2 + $0x18] sm:$0xff]
        %v841 = vld [vmem:[%s2 + $0x20] sm:$0xff]
        %v842 = vld [vmem:[%s2 + $0x28] sm:$0xff]
        %v843 = vld [vmem:[%s2 + $0x30] sm:$0xff]
        %v844 = vld [vmem:[%s2 + $0x38] sm:$0xff]
        %846 = vset.pattern.permute.xlu0 0
        %847 = vperm.xlu0 %846, %v837
        %v848 = vpop.permute.xlu0 %847
        %851 = vset.pattern.permute.xlu0 0
        %852 = vperm.xlu0 %851, %v838
        %v853 = vpop.permute.xlu0 %852
        %856 = vset.pattern.permute.xlu0 0
        %857 = vperm.xlu0 %856, %v839
        %v858 = vpop.permute.xlu0 %857
        %861 = vset.pattern.permute.xlu0 0
        %862 = vperm.xlu0 %861, %v840
        %v863 = vpop.permute.xlu0 %862
        %866 = vset.pattern.permute.xlu0 0
        %867 = vperm.xlu0 %866, %v841
        %v868 = vpop.permute.xlu0 %867
        %871 = vset.pattern.permute.xlu0 0
        %872 = vperm.xlu0 %871, %v842
        %v873 = vpop.permute.xlu0 %872
        %876 = vset.pattern.permute.xlu0 0
        %877 = vperm.xlu0 %876, %v843
        %v878 = vpop.permute.xlu0 %877
        %881 = vset.pattern.permute.xlu0 0
        %882 = vperm.xlu0 %881, %v844
        %v883 = vpop.permute.xlu0 %882
        %vm885 = vcmask 48128
        %v887 = vsel %vm885, %v829, 0
        %v890 = vsel %vm885, %v830, 0
        %v893 = vsel %vm885, %v831, 0
        %v896 = vsel %vm885, %v832, 0
        %v899 = vsel %vm885, %v833, 0
        %v902 = vsel %vm885, %v834, 0
        %v905 = vsel %vm885, %v835, 0
        %v908 = vsel %vm885, %v836, 0
        %vm910 = vcmask 1045504
        %v912 = vsel %vm910, %v827, 0
        %v915 = vsel %vm910, %v828, 0
        %917 = vmatpush.msra.mxu0 0.0
        %918 = vmatpush.msra.mxu0 0.0
        %919 = vmatpush.msra.mxu0 0.0
        %920 = vmatpush.msra.mxu0 0.0
        %921 = vmatpush.msra.mxu0 0.0
        %922 = vmatpush.msra.mxu0 0.0
        %923 = vmatpush.msra.mxu0 0.0
        %924 = vmatpush.msra.mxu0 0.0
        %925 = vmatpush.msra.mxu0 0.0
        %926 = vmatpush.msra.mxu0 0.0
        %927 = vmatpush.msra.mxu0 0.0
        %928 = vmatpush.msra.mxu0 0.0
        %929 = vmatpush.msra.mxu0 0.0
        %930 = vmatpush.msra.mxu0 0.0
        %931 = vmatpush.msra.mxu0 0.0
        %932 = vmatpush.msra.mxu0 %v912
        %933 = vmatmul.f32.gmra.mxu0 %v887
        %v934 = vpop.f32.mrf.mxu0
        %v935 = vadd.f32 %v848, %v934
        %936 = vmatmul.f32.gmra.mxu0 %v890
        %v937 = vpop.f32.mrf.mxu0
        %v938 = vadd.f32 %v853, %v937
        %939 = vmatmul.f32.gmra.mxu0 %v893
        %v940 = vpop.f32.mrf.mxu0
        %v941 = vadd.f32 %v858, %v940
        %942 = vmatmul.f32.gmra.mxu0 %v896
        %v943 = vpop.f32.mrf.mxu0
        %v944 = vadd.f32 %v863, %v943
        %945 = vmatmul.f32.gmra.mxu0 %v899
        %v946 = vpop.f32.mrf.mxu0
        %v947 = vadd.f32 %v868, %v946
        %948 = vmatmul.f32.gmra.mxu0 %v902
        %v949 = vpop.f32.mrf.mxu0
        %v950 = vadd.f32 %v873, %v949
        %951 = vmatmul.f32.gmra.mxu0 %v905
        %v952 = vpop.f32.mrf.mxu0
        %v953 = vadd.f32 %v878, %v952
        %954 = vmatmul.f32.gmra.mxu0 %v908
        %v955 = vpop.f32.mrf.mxu0
        %v956 = vadd.f32 %v883, %v955
        %957 = vdwg.mxu0
        %958 = vmatpush.msra.mxu0 0.0
        %959 = vmatpush.msra.mxu0 0.0
        %960 = vmatpush.msra.mxu0 0.0
        %961 = vmatpush.msra.mxu0 0.0
        %962 = vmatpush.msra.mxu0 0.0
        %963 = vmatpush.msra.mxu0 0.0
        %964 = vmatpush.msra.mxu0 0.0
        %965 = vmatpush.msra.mxu0 0.0
        %966 = vmatpush.msra.mxu0 0.0
        %967 = vmatpush.msra.mxu0 0.0
        %968 = vmatpush.msra.mxu0 0.0
        %969 = vmatpush.msra.mxu0 0.0
        %970 = vmatpush.msra.mxu0 0.0
        %971 = vmatpush.msra.mxu0 0.0
        %972 = vmatpush.msra.mxu0 0.0
        %973 = vmatpush.msra.mxu0 %v915
        %974 = vmatmul.f32.gmra.mxu0 %v887
        %v975 = vpop.f32.mrf.mxu0
        %v976 = vadd.f32 %v848, %v975
        %977 = vmatmul.f32.gmra.mxu0 %v890
        %v978 = vpop.f32.mrf.mxu0
        %v979 = vadd.f32 %v853, %v978
        %980 = vmatmul.f32.gmra.mxu0 %v893
        %v981 = vpop.f32.mrf.mxu0
        %v982 = vadd.f32 %v858, %v981
        %983 = vmatmul.f32.gmra.mxu0 %v896
        %v984 = vpop.f32.mrf.mxu0
        %v985 = vadd.f32 %v863, %v984
        %986 = vmatmul.f32.gmra.mxu0 %v899
        %v987 = vpop.f32.mrf.mxu0
        %v988 = vadd.f32 %v868, %v987
        %989 = vmatmul.f32.gmra.mxu0 %v902
        %v990 = vpop.f32.mrf.mxu0
        %v991 = vadd.f32 %v873, %v990
        %992 = vmatmul.f32.gmra.mxu0 %v905
        %v993 = vpop.f32.mrf.mxu0
        %v994 = vadd.f32 %v878, %v993
        %995 = vmatmul.f32.gmra.mxu0 %v908
        %v996 = vpop.f32.mrf.mxu0
        %v997 = vadd.f32 %v883, %v996
        %998 = vdwg.mxu0
        %999 = vst [vmem:[%s739] sm:$0xff] %v935
        %1000 = vst [vmem:[%s739 + $0x8] sm:$0xff] %v976
        %1001 = vst [vmem:[%s739 + $0x10] sm:$0xff] %v938
        %1002 = vst [vmem:[%s739 + $0x18] sm:$0xff] %v979
        %1003 = vst [vmem:[%s739 + $0x20] sm:$0xff] %v941
        %1004 = vst [vmem:[%s739 + $0x28] sm:$0xff] %v982
        %1005 = vst [vmem:[%s739 + $0x30] sm:$0xff] %v944
        %1006 = vst [vmem:[%s739 + $0x38] sm:$0xff] %v985
        %1007 = vst [vmem:[%s739 + $0x40] sm:$0xff] %v947
        %1008 = vst [vmem:[%s739 + $0x48] sm:$0xff] %v988
        %1009 = vst [vmem:[%s739 + $0x50] sm:$0xff] %v950
        %1010 = vst [vmem:[%s739 + $0x58] sm:$0xff] %v991
        %1011 = vst [vmem:[%s739 + $0x60] sm:$0xff] %v953
        %1012 = vst [vmem:[%s739 + $0x68] sm:$0xff] %v994
        %1013 = vst [vmem:[%s739 + $0x70] sm:$0xff] %v956
        %1014 = vst [vmem:[%s739 + $0x78] sm:$0xff] %v997
        %v1015 = vmul.f32 %v935, 0.2
        %v1016 = vmul.f32 %v976, 0.2
        %v1017 = vmul.f32 %v938, 0.2
        %v1018 = vmul.f32 %v979, 0.2
        %v1019 = vmul.f32 %v941, 0.2
        %v1020 = vmul.f32 %v982, 0.2
        %v1021 = vmul.f32 %v944, 0.2
        %v1022 = vmul.f32 %v985, 0.2
        %v1023 = vmul.f32 %v947, 0.2
        %v1024 = vmul.f32 %v988, 0.2
        %v1025 = vmul.f32 %v950, 0.2
        %v1026 = vmul.f32 %v991, 0.2
        %v1027 = vmul.f32 %v953, 0.2
        %v1028 = vmul.f32 %v994, 0.2
        %v1029 = vmul.f32 %v956, 0.2
        %v1030 = vmul.f32 %v997, 0.2
        %v1031 = vmax.f32 %v935, %v1015
        %v1032 = vmax.f32 %v976, %v1016
        %v1033 = vmax.f32 %v938, %v1017
        %v1034 = vmax.f32 %v979, %v1018
        %v1035 = vmax.f32 %v941, %v1019
        %v1036 = vmax.f32 %v982, %v1020
        %v1037 = vmax.f32 %v944, %v1021
        %v1038 = vmax.f32 %v985, %v1022
        %v1039 = vmax.f32 %v947, %v1023
        %v1040 = vmax.f32 %v988, %v1024
        %v1041 = vmax.f32 %v950, %v1025
        %v1042 = vmax.f32 %v991, %v1026
        %v1043 = vmax.f32 %v953, %v1027
        %v1044 = vmax.f32 %v994, %v1028
        %v1045 = vmax.f32 %v956, %v1029
        %v1046 = vmax.f32 %v997, %v1030
        %1047 = vst [vmem:[%s746] sm:$0xff] %v1031
        %1048 = vst [vmem:[%s746 + $0x8] sm:$0xff] %v1032
        %1049 = vst [vmem:[%s746 + $0x10] sm:$0xff] %v1033
        %1050 = vst [vmem:[%s746 + $0x18] sm:$0xff] %v1034
        %1051 = vst [vmem:[%s746 + $0x20] sm:$0xff] %v1035
        %1052 = vst [vmem:[%s746 + $0x28] sm:$0xff] %v1036
        %1053 = vst [vmem:[%s746 + $0x30] sm:$0xff] %v1037
        %1054 = vst [vmem:[%s746 + $0x38] sm:$0xff] %v1038
        %1055 = vst [vmem:[%s746 + $0x40] sm:$0xff] %v1039
        %1056 = vst [vmem:[%s746 + $0x48] sm:$0xff] %v1040
        %1057 = vst [vmem:[%s746 + $0x50] sm:$0xff] %v1041
        %1058 = vst [vmem:[%s746 + $0x58] sm:$0xff] %v1042
        %1059 = vst [vmem:[%s746 + $0x60] sm:$0xff] %v1043
        %1060 = vst [vmem:[%s746 + $0x68] sm:$0xff] %v1044
        %1061 = vst [vmem:[%s746 + $0x70] sm:$0xff] %v1045
        %1062 = vst [vmem:[%s746 + $0x78] sm:$0xff] %v1046
        %v1063 = vld [vmem:[%s746] sm:$0xff]
        %v1064 = vld [vmem:[%s746 + $0x8] sm:$0xff]
        %v1065 = vld [vmem:[%s746 + $0x10] sm:$0xff]
        %v1066 = vld [vmem:[%s746 + $0x18] sm:$0xff]
        %v1067 = vld [vmem:[%s746 + $0x20] sm:$0xff]
        %v1068 = vld [vmem:[%s746 + $0x28] sm:$0xff]
        %v1069 = vld [vmem:[%s746 + $0x30] sm:$0xff]
        %v1070 = vld [vmem:[%s746 + $0x38] sm:$0xff]
        %v1071 = vld [vmem:[%s746 + $0x40] sm:$0xff]
        %v1072 = vld [vmem:[%s746 + $0x48] sm:$0xff]
        %v1073 = vld [vmem:[%s746 + $0x50] sm:$0xff]
        %v1074 = vld [vmem:[%s746 + $0x58] sm:$0xff]
        %v1075 = vld [vmem:[%s746 + $0x60] sm:$0xff]
        %v1076 = vld [vmem:[%s746 + $0x68] sm:$0xff]
        %v1077 = vld [vmem:[%s746 + $0x70] sm:$0xff]
        %v1078 = vld [vmem:[%s746 + $0x78] sm:$0xff]
        %v1079 = vld [vmem:[%s3] sm:$0xff]
        %v1080 = vld [vmem:[%s3 + $0x8] sm:$0xff]
        %v1081 = vld [vmem:[%s3 + $0x10] sm:$0xff]
        %v1082 = vld [vmem:[%s3 + $0x18] sm:$0xff]
        %v1083 = vld [vmem:[%s3 + $0x20] sm:$0xff]
        %v1084 = vld [vmem:[%s3 + $0x28] sm:$0xff]
        %v1085 = vld [vmem:[%s3 + $0x30] sm:$0xff]
        %v1086 = vld [vmem:[%s3 + $0x38] sm:$0xff]
        %v1087 = vld [vmem:[%s3 + $0x40] sm:$0xff]
        %v1088 = vld [vmem:[%s3 + $0x48] sm:$0xff]
        %v1089 = vld [vmem:[%s3 + $0x50] sm:$0xff]
        %v1090 = vld [vmem:[%s3 + $0x58] sm:$0xff]
        %v1091 = vld [vmem:[%s3 + $0x60] sm:$0xff]
        %v1092 = vld [vmem:[%s3 + $0x68] sm:$0xff]
        %v1093 = vld [vmem:[%s3 + $0x70] sm:$0xff]
        %v1094 = vld [vmem:[%s3 + $0x78] sm:$0xff]
        %v1095 = vld [vmem:[%s4] sm:$0xff]
        %v1096 = vld [vmem:[%s4 + $0x8] sm:$0xff]
        %v1097 = vld [vmem:[%s4 + $0x10] sm:$0xff]
        %v1098 = vld [vmem:[%s4 + $0x18] sm:$0xff]
        %v1099 = vld [vmem:[%s4 + $0x20] sm:$0xff]
        %v1100 = vld [vmem:[%s4 + $0x28] sm:$0xff]
        %v1101 = vld [vmem:[%s4 + $0x30] sm:$0xff]
        %v1102 = vld [vmem:[%s4 + $0x38] sm:$0xff]
        %v1103 = vld [vmem:[%s4 + $0x40] sm:$0xff]
        %v1104 = vld [vmem:[%s4 + $0x48] sm:$0xff]
        %v1105 = vld [vmem:[%s4 + $0x50] sm:$0xff]
        %v1106 = vld [vmem:[%s4 + $0x58] sm:$0xff]
        %v1107 = vld [vmem:[%s4 + $0x60] sm:$0xff]
        %v1108 = vld [vmem:[%s4 + $0x68] sm:$0xff]
        %v1109 = vld [vmem:[%s4 + $0x70] sm:$0xff]
        %v1110 = vld [vmem:[%s4 + $0x78] sm:$0xff]
        %1112 = vset.pattern.permute.xlu0 0
        %1113 = vperm.xlu0 %1112, %v1095
        %v1114 = vpop.permute.xlu0 %1113
        %1117 = vset.pattern.permute.xlu0 0
        %1118 = vperm.xlu0 %1117, %v1096
        %v1119 = vpop.permute.xlu0 %1118
        %1122 = vset.pattern.permute.xlu0 0
        %1123 = vperm.xlu0 %1122, %v1097
        %v1124 = vpop.permute.xlu0 %1123
        %1127 = vset.pattern.permute.xlu0 0
        %1128 = vperm.xlu0 %1127, %v1098
        %v1129 = vpop.permute.xlu0 %1128
        %1132 = vset.pattern.permute.xlu0 0
        %1133 = vperm.xlu0 %1132, %v1099
        %v1134 = vpop.permute.xlu0 %1133
        %1137 = vset.pattern.permute.xlu0 0
        %1138 = vperm.xlu0 %1137, %v1100
        %v1139 = vpop.permute.xlu0 %1138
        %1142 = vset.pattern.permute.xlu0 0
        %1143 = vperm.xlu0 %1142, %v1101
        %v1144 = vpop.permute.xlu0 %1143
        %1147 = vset.pattern.permute.xlu0 0
        %1148 = vperm.xlu0 %1147, %v1102
        %v1149 = vpop.permute.xlu0 %1148
        %1152 = vset.pattern.permute.xlu0 0
        %1153 = vperm.xlu0 %1152, %v1103
        %v1154 = vpop.permute.xlu0 %1153
        %1157 = vset.pattern.permute.xlu0 0
        %1158 = vperm.xlu0 %1157, %v1104
        %v1159 = vpop.permute.xlu0 %1158
        %1162 = vset.pattern.permute.xlu0 0
        %1163 = vperm.xlu0 %1162, %v1105
        %v1164 = vpop.permute.xlu0 %1163
        %1167 = vset.pattern.permute.xlu0 0
        %1168 = vperm.xlu0 %1167, %v1106
        %v1169 = vpop.permute.xlu0 %1168
        %1172 = vset.pattern.permute.xlu0 0
        %1173 = vperm.xlu0 %1172, %v1107
        %v1174 = vpop.permute.xlu0 %1173
        %1177 = vset.pattern.permute.xlu0 0
        %1178 = vperm.xlu0 %1177, %v1108
        %v1179 = vpop.permute.xlu0 %1178
        %1182 = vset.pattern.permute.xlu0 0
        %1183 = vperm.xlu0 %1182, %v1109
        %v1184 = vpop.permute.xlu0 %1183
        %1187 = vset.pattern.permute.xlu0 0
        %1188 = vperm.xlu0 %1187, %v1110
        %v1189 = vpop.permute.xlu0 %1188
        %vm1191 = vcmask 523264
        %v1193 = vsel %vm1191, %v1079, 0
        %v1196 = vsel %vm1191, %v1080, 0
        %v1199 = vsel %vm1191, %v1081, 0
        %v1202 = vsel %vm1191, %v1082, 0
        %v1205 = vsel %vm1191, %v1083, 0
        %v1208 = vsel %vm1191, %v1084, 0
        %v1211 = vsel %vm1191, %v1085, 0
        %v1214 = vsel %vm1191, %v1086, 0
        %v1217 = vsel %vm1191, %v1087, 0
        %v1220 = vsel %vm1191, %v1088, 0
        %v1223 = vsel %vm1191, %v1089, 0
        %v1226 = vsel %vm1191, %v1090, 0
        %v1229 = vsel %vm1191, %v1091, 0
        %v1232 = vsel %vm1191, %v1092, 0
        %v1235 = vsel %vm1191, %v1093, 0
        %v1238 = vsel %vm1191, %v1094, 0
        %1240 = vmatpush.msra.mxu0 0.0
        %1241 = vmatpush.msra.mxu0 0.0
        %1242 = vmatpush.msra.mxu0 0.0
        %1243 = vmatpush.msra.mxu0 0.0
        %1244 = vmatpush.msra.mxu0 0.0
        %1245 = vmatpush.msra.mxu0 0.0
        %1246 = vmatpush.msra.mxu0 0.0
        %1247 = vmatpush.msra.mxu0 0.0
        %1248 = vmatpush.msra.mxu0 %v1077
        %1249 = vmatpush.msra.mxu0 %v1075
        %1250 = vmatpush.msra.mxu0 %v1073
        %1251 = vmatpush.msra.mxu0 %v1071
        %1252 = vmatpush.msra.mxu0 %v1069
        %1253 = vmatpush.msra.mxu0 %v1067
        %1254 = vmatpush.msra.mxu0 %v1065
        %1255 = vmatpush.msra.mxu0 %v1063
        %1256 = vmatmul.f32.gmra.mxu0 %v1193
        %v1257 = vpop.f32.mrf.mxu0
        %v1258 = vadd.f32 %v1114, %v1257
        %1259 = vmatmul.f32.gmra.mxu0 %v1196
        %v1260 = vpop.f32.mrf.mxu0
        %v1261 = vadd.f32 %v1119, %v1260
        %1262 = vmatmul.f32.gmra.mxu0 %v1199
        %v1263 = vpop.f32.mrf.mxu0
        %v1264 = vadd.f32 %v1124, %v1263
        %1265 = vmatmul.f32.gmra.mxu0 %v1202
        %v1266 = vpop.f32.mrf.mxu0
        %v1267 = vadd.f32 %v1129, %v1266
        %1268 = vmatmul.f32.gmra.mxu0 %v1205
        %v1269 = vpop.f32.mrf.mxu0
        %v1270 = vadd.f32 %v1134, %v1269
        %1271 = vmatmul.f32.gmra.mxu0 %v1208
        %v1272 = vpop.f32.mrf.mxu0
        %v1273 = vadd.f32 %v1139, %v1272
        %1274 = vmatmul.f32.gmra.mxu0 %v1211
        %v1275 = vpop.f32.mrf.mxu0
        %v1276 = vadd.f32 %v1144, %v1275
        %1277 = vmatmul.f32.gmra.mxu0 %v1214
        %v1278 = vpop.f32.mrf.mxu0
        %v1279 = vadd.f32 %v1149, %v1278
        %1280 = vmatmul.f32.gmra.mxu0 %v1217
        %v1281 = vpop.f32.mrf.mxu0
        %v1282 = vadd.f32 %v1154, %v1281
        %1283 = vmatmul.f32.gmra.mxu0 %v1220
        %v1284 = vpop.f32.mrf.mxu0
        %v1285 = vadd.f32 %v1159, %v1284
        %1286 = vmatmul.f32.gmra.mxu0 %v1223
        %v1287 = vpop.f32.mrf.mxu0
        %v1288 = vadd.f32 %v1164, %v1287
        %1289 = vmatmul.f32.gmra.mxu0 %v1226
        %v1290 = vpop.f32.mrf.mxu0
        %v1291 = vadd.f32 %v1169, %v1290
        %1292 = vmatmul.f32.gmra.mxu0 %v1229
        %v1293 = vpop.f32.mrf.mxu0
        %v1294 = vadd.f32 %v1174, %v1293
        %1295 = vmatmul.f32.gmra.mxu0 %v1232
        %v1296 = vpop.f32.mrf.mxu0
        %v1297 = vadd.f32 %v1179, %v1296
        %1298 = vmatmul.f32.gmra.mxu0 %v1235
        %v1299 = vpop.f32.mrf.mxu0
        %v1300 = vadd.f32 %v1184, %v1299
        %1301 = vmatmul.f32.gmra.mxu0 %v1238
        %v1302 = vpop.f32.mrf.mxu0
        %v1303 = vadd.f32 %v1189, %v1302
        %1304 = vdwg.mxu0
        %1305 = vmatpush.msra.mxu0 0.0
        %1306 = vmatpush.msra.mxu0 0.0
        %1307 = vmatpush.msra.mxu0 0.0
        %1308 = vmatpush.msra.mxu0 0.0
        %1309 = vmatpush.msra.mxu0 0.0
        %1310 = vmatpush.msra.mxu0 0.0
        %1311 = vmatpush.msra.mxu0 0.0
        %1312 = vmatpush.msra.mxu0 0.0
        %1313 = vmatpush.msra.mxu0 %v1078
        %1314 = vmatpush.msra.mxu0 %v1076
        %1315 = vmatpush.msra.mxu0 %v1074
        %1316 = vmatpush.msra.mxu0 %v1072
        %1317 = vmatpush.msra.mxu0 %v1070
        %1318 = vmatpush.msra.mxu0 %v1068
        %1319 = vmatpush.msra.mxu0 %v1066
        %1320 = vmatpush.msra.mxu0 %v1064
        %1321 = vmatmul.f32.gmra.mxu0 %v1193
        %v1322 = vpop.f32.mrf.mxu0
        %v1323 = vadd.f32 %v1114, %v1322
        %1324 = vmatmul.f32.gmra.mxu0 %v1196
        %v1325 = vpop.f32.mrf.mxu0
        %v1326 = vadd.f32 %v1119, %v1325
        %1327 = vmatmul.f32.gmra.mxu0 %v1199
        %v1328 = vpop.f32.mrf.mxu0
        %v1329 = vadd.f32 %v1124, %v1328
        %1330 = vmatmul.f32.gmra.mxu0 %v1202
        %v1331 = vpop.f32.mrf.mxu0
        %v1332 = vadd.f32 %v1129, %v1331
        %1333 = vmatmul.f32.gmra.mxu0 %v1205
        %v1334 = vpop.f32.mrf.mxu0
        %v1335 = vadd.f32 %v1134, %v1334
        %1336 = vmatmul.f32.gmra.mxu0 %v1208
        %v1337 = vpop.f32.mrf.mxu0
        %v1338 = vadd.f32 %v1139, %v1337
        %1339 = vmatmul.f32.gmra.mxu0 %v1211
        %v1340 = vpop.f32.mrf.mxu0
        %v1341 = vadd.f32 %v1144, %v1340
        %1342 = vmatmul.f32.gmra.mxu0 %v1214
        %v1343 = vpop.f32.mrf.mxu0
        %v1344 = vadd.f32 %v1149, %v1343
        %1345 = vmatmul.f32.gmra.mxu0 %v1217
        %v1346 = vpop.f32.mrf.mxu0
        %v1347 = vadd.f32 %v1154, %v1346
        %1348 = vmatmul.f32.gmra.mxu0 %v1220
        %v1349 = vpop.f32.mrf.mxu0
        %v1350 = vadd.f32 %v1159, %v1349
        %1351 = vmatmul.f32.gmra.mxu0 %v1223
        %v1352 = vpop.f32.mrf.mxu0
        %v1353 = vadd.f32 %v1164, %v1352
        %1354 = vmatmul.f32.gmra.mxu0 %v1226
        %v1355 = vpop.f32.mrf.mxu0
        %v1356 = vadd.f32 %v1169, %v1355
        %1357 = vmatmul.f32.gmra.mxu0 %v1229
        %v1358 = vpop.f32.mrf.mxu0
        %v1359 = vadd.f32 %v1174, %v1358
        %1360 = vmatmul.f32.gmra.mxu0 %v1232
        %v1361 = vpop.f32.mrf.mxu0
        %v1362 = vadd.f32 %v1179, %v1361
        %1363 = vmatmul.f32.gmra.mxu0 %v1235
        %v1364 = vpop.f32.mrf.mxu0
        %v1365 = vadd.f32 %v1184, %v1364
        %1366 = vmatmul.f32.gmra.mxu0 %v1238
        %v1367 = vpop.f32.mrf.mxu0
        %v1368 = vadd.f32 %v1189, %v1367
        %1369 = vdwg.mxu0
        %1370 = vst [vmem:[%s753] sm:$0xff] %v1258
        %1371 = vst [vmem:[%s753 + $0x8] sm:$0xff] %v1323
        %1372 = vst [vmem:[%s753 + $0x10] sm:$0xff] %v1261
        %1373 = vst [vmem:[%s753 + $0x18] sm:$0xff] %v1326
        %1374 = vst [vmem:[%s753 + $0x20] sm:$0xff] %v1264
        %1375 = vst [vmem:[%s753 + $0x28] sm:$0xff] %v1329
        %1376 = vst [vmem:[%s753 + $0x30] sm:$0xff] %v1267
        %1377 = vst [vmem:[%s753 + $0x38] sm:$0xff] %v1332
        %1378 = vst [vmem:[%s753 + $0x40] sm:$0xff] %v1270
        %1379 = vst [vmem:[%s753 + $0x48] sm:$0xff] %v1335
        %1380 = vst [vmem:[%s753 + $0x50] sm:$0xff] %v1273
        %1381 = vst [vmem:[%s753 + $0x58] sm:$0xff] %v1338
        %1382 = vst [vmem:[%s753 + $0x60] sm:$0xff] %v1276
        %1383 = vst [vmem:[%s753 + $0x68] sm:$0xff] %v1341
        %1384 = vst [vmem:[%s753 + $0x70] sm:$0xff] %v1279
        %1385 = vst [vmem:[%s753 + $0x78] sm:$0xff] %v1344
        %1386 = vst [vmem:[%s753 + $0x80] sm:$0xff] %v1282
        %1387 = vst [vmem:[%s753 + $0x88] sm:$0xff] %v1347
        %1388 = vst [vmem:[%s753 + $0x90] sm:$0xff] %v1285
        %1389 = vst [vmem:[%s753 + $0x98] sm:$0xff] %v1350
        %1390 = vst [vmem:[%s753 + $0xa0] sm:$0xff] %v1288
        %1391 = vst [vmem:[%s753 + $0xa8] sm:$0xff] %v1353
        %1392 = vst [vmem:[%s753 + $0xb0] sm:$0xff] %v1291
        %1393 = vst [vmem:[%s753 + $0xb8] sm:$0xff] %v1356
        %1394 = vst [vmem:[%s753 + $0xc0] sm:$0xff] %v1294
        %1395 = vst [vmem:[%s753 + $0xc8] sm:$0xff] %v1359
        %1396 = vst [vmem:[%s753 + $0xd0] sm:$0xff] %v1297
        %1397 = vst [vmem:[%s753 + $0xd8] sm:$0xff] %v1362
        %1398 = vst [vmem:[%s753 + $0xe0] sm:$0xff] %v1300
        %1399 = vst [vmem:[%s753 + $0xe8] sm:$0xff] %v1365
        %1400 = vst [vmem:[%s753 + $0xf0] sm:$0xff] %v1303
        %1401 = vst [vmem:[%s753 + $0xf8] sm:$0xff] %v1368
        %v1402 = vmul.f32 %v1258, 0.2
        %v1403 = vmul.f32 %v1323, 0.2
        %v1404 = vmul.f32 %v1261, 0.2
        %v1405 = vmul.f32 %v1326, 0.2
        %v1406 = vmul.f32 %v1264, 0.2
        %v1407 = vmul.f32 %v1329, 0.2
        %v1408 = vmul.f32 %v1267, 0.2
        %v1409 = vmul.f32 %v1332, 0.2
        %v1410 = vmul.f32 %v1270, 0.2
        %v1411 = vmul.f32 %v1335, 0.2
        %v1412 = vmul.f32 %v1273, 0.2
        %v1413 = vmul.f32 %v1338, 0.2
        %v1414 = vmul.f32 %v1276, 0.2
        %v1415 = vmul.f32 %v1341, 0.2
        %v1416 = vmul.f32 %v1279, 0.2
        %v1417 = vmul.f32 %v1344, 0.2
        %v1418 = vmul.f32 %v1282, 0.2
        %v1419 = vmul.f32 %v1347, 0.2
        %v1420 = vmul.f32 %v1285, 0.2
        %v1421 = vmul.f32 %v1350, 0.2
        %v1422 = vmul.f32 %v1288, 0.2
        %v1423 = vmul.f32 %v1353, 0.2
        %v1424 = vmul.f32 %v1291, 0.2
        %v1425 = vmul.f32 %v1356, 0.2
        %v1426 = vmul.f32 %v1294, 0.2
        %v1427 = vmul.f32 %v1359, 0.2
        %v1428 = vmul.f32 %v1297, 0.2
        %v1429 = vmul.f32 %v1362, 0.2
        %v1430 = vmul.f32 %v1300, 0.2
        %v1431 = vmul.f32 %v1365, 0.2
        %v1432 = vmul.f32 %v1303, 0.2
        %v1433 = vmul.f32 %v1368, 0.2
        %v1434 = vmax.f32 %v1258, %v1402
        %v1435 = vmax.f32 %v1323, %v1403
        %v1436 = vmax.f32 %v1261, %v1404
        %v1437 = vmax.f32 %v1326, %v1405
        %v1438 = vmax.f32 %v1264, %v1406
        %v1439 = vmax.f32 %v1329, %v1407
        %v1440 = vmax.f32 %v1267, %v1408
        %v1441 = vmax.f32 %v1332, %v1409
        %v1442 = vmax.f32 %v1270, %v1410
        %v1443 = vmax.f32 %v1335, %v1411
        %v1444 = vmax.f32 %v1273, %v1412
        %v1445 = vmax.f32 %v1338, %v1413
        %v1446 = vmax.f32 %v1276, %v1414
        %v1447 = vmax.f32 %v1341, %v1415
        %v1448 = vmax.f32 %v1279, %v1416
        %v1449 = vmax.f32 %v1344, %v1417
        %v1450 = vmax.f32 %v1282, %v1418
        %v1451 = vmax.f32 %v1347, %v1419
        %v1452 = vmax.f32 %v1285, %v1420
        %v1453 = vmax.f32 %v1350, %v1421
        %v1454 = vmax.f32 %v1288, %v1422
        %v1455 = vmax.f32 %v1353, %v1423
        %v1456 = vmax.f32 %v1291, %v1424
        %v1457 = vmax.f32 %v1356, %v1425
        %v1458 = vmax.f32 %v1294, %v1426
        %v1459 = vmax.f32 %v1359, %v1427
        %v1460 = vmax.f32 %v1297, %v1428
        %v1461 = vmax.f32 %v1362, %v1429
        %v1462 = vmax.f32 %v1300, %v1430
        %v1463 = vmax.f32 %v1365, %v1431
        %v1464 = vmax.f32 %v1303, %v1432
        %v1465 = vmax.f32 %v1368, %v1433
        %1466 = vst [vmem:[%s760] sm:$0xff] %v1434
        %1467 = vst [vmem:[%s760 + $0x8] sm:$0xff] %v1435
        %1468 = vst [vmem:[%s760 + $0x10] sm:$0xff] %v1436
        %1469 = vst [vmem:[%s760 + $0x18] sm:$0xff] %v1437
        %1470 = vst [vmem:[%s760 + $0x20] sm:$0xff] %v1438
        %1471 = vst [vmem:[%s760 + $0x28] sm:$0xff] %v1439
        %1472 = vst [vmem:[%s760 + $0x30] sm:$0xff] %v1440
        %1473 = vst [vmem:[%s760 + $0x38] sm:$0xff] %v1441
        %1474 = vst [vmem:[%s760 + $0x40] sm:$0xff] %v1442
        %1475 = vst [vmem:[%s760 + $0x48] sm:$0xff] %v1443
        %1476 = vst [vmem:[%s760 + $0x50] sm:$0xff] %v1444
        %1477 = vst [vmem:[%s760 + $0x58] sm:$0xff] %v1445
        %1478 = vst [vmem:[%s760 + $0x60] sm:$0xff] %v1446
        %1479 = vst [vmem:[%s760 + $0x68] sm:$0xff] %v1447
        %1480 = vst [vmem:[%s760 + $0x70] sm:$0xff] %v1448
        %1481 = vst [vmem:[%s760 + $0x78] sm:$0xff] %v1449
        %1482 = vst [vmem:[%s760 + $0x80] sm:$0xff] %v1450
        %1483 = vst [vmem:[%s760 + $0x88] sm:$0xff] %v1451
        %1484 = vst [vmem:[%s760 + $0x90] sm:$0xff] %v1452
        %1485 = vst [vmem:[%s760 + $0x98] sm:$0xff] %v1453
        %1486 = vst [vmem:[%s760 + $0xa0] sm:$0xff] %v1454
        %1487 = vst [vmem:[%s760 + $0xa8] sm:$0xff] %v1455
        %1488 = vst [vmem:[%s760 + $0xb0] sm:$0xff] %v1456
        %1489 = vst [vmem:[%s760 + $0xb8] sm:$0xff] %v1457
        %1490 = vst [vmem:[%s760 + $0xc0] sm:$0xff] %v1458
        %1491 = vst [vmem:[%s760 + $0xc8] sm:$0xff] %v1459
        %1492 = vst [vmem:[%s760 + $0xd0] sm:$0xff] %v1460
        %1493 = vst [vmem:[%s760 + $0xd8] sm:$0xff] %v1461
        %1494 = vst [vmem:[%s760 + $0xe0] sm:$0xff] %v1462
        %1495 = vst [vmem:[%s760 + $0xe8] sm:$0xff] %v1463
        %1496 = vst [vmem:[%s760 + $0xf0] sm:$0xff] %v1464
        %1497 = vst [vmem:[%s760 + $0xf8] sm:$0xff] %v1465
        %v1498 = vld [vmem:[%s760] sm:$0xff]
        %v1499 = vld [vmem:[%s760 + $0x8] sm:$0xff]
        %v1500 = vld [vmem:[%s760 + $0x10] sm:$0xff]
        %v1501 = vld [vmem:[%s760 + $0x18] sm:$0xff]
        %v1502 = vld [vmem:[%s760 + $0x20] sm:$0xff]
        %v1503 = vld [vmem:[%s760 + $0x28] sm:$0xff]
        %v1504 = vld [vmem:[%s760 + $0x30] sm:$0xff]
        %v1505 = vld [vmem:[%s760 + $0x38] sm:$0xff]
        %v1506 = vld [vmem:[%s760 + $0x40] sm:$0xff]
        %v1507 = vld [vmem:[%s760 + $0x48] sm:$0xff]
        %v1508 = vld [vmem:[%s760 + $0x50] sm:$0xff]
        %v1509 = vld [vmem:[%s760 + $0x58] sm:$0xff]
        %v1510 = vld [vmem:[%s760 + $0x60] sm:$0xff]
        %v1511 = vld [vmem:[%s760 + $0x68] sm:$0xff]
        %v1512 = vld [vmem:[%s760 + $0x70] sm:$0xff]
        %v1513 = vld [vmem:[%s760 + $0x78] sm:$0xff]
        %v1514 = vld [vmem:[%s760 + $0x80] sm:$0xff]
        %v1515 = vld [vmem:[%s760 + $0x88] sm:$0xff]
        %v1516 = vld [vmem:[%s760 + $0x90] sm:$0xff]
        %v1517 = vld [vmem:[%s760 + $0x98] sm:$0xff]
        %v1518 = vld [vmem:[%s760 + $0xa0] sm:$0xff]
        %v1519 = vld [vmem:[%s760 + $0xa8] sm:$0xff]
        %v1520 = vld [vmem:[%s760 + $0xb0] sm:$0xff]
        %v1521 = vld [vmem:[%s760 + $0xb8] sm:$0xff]
        %v1522 = vld [vmem:[%s760 + $0xc0] sm:$0xff]
        %v1523 = vld [vmem:[%s760 + $0xc8] sm:$0xff]
        %v1524 = vld [vmem:[%s760 + $0xd0] sm:$0xff]
        %v1525 = vld [vmem:[%s760 + $0xd8] sm:$0xff]
        %v1526 = vld [vmem:[%s760 + $0xe0] sm:$0xff]
        %v1527 = vld [vmem:[%s760 + $0xe8] sm:$0xff]
        %v1528 = vld [vmem:[%s760 + $0xf0] sm:$0xff]
        %v1529 = vld [vmem:[%s760 + $0xf8] sm:$0xff]
        %v1530 = vld [vmem:[%s5] sm:$0xff]
        %v1531 = vld [vmem:[%s5 + $0x8] sm:$0xff]
        %v1532 = vld [vmem:[%s5 + $0x10] sm:$0xff]
        %v1533 = vld [vmem:[%s5 + $0x18] sm:$0xff]
        %v1534 = vld [vmem:[%s5 + $0x20] sm:$0xff]
        %v1535 = vld [vmem:[%s5 + $0x28] sm:$0xff]
        %v1536 = vld [vmem:[%s5 + $0x30] sm:$0xff]
        %v1537 = vld [vmem:[%s5 + $0x38] sm:$0xff]
        %v1538 = vld [vmem:[%s5 + $0x40] sm:$0xff]
        %v1539 = vld [vmem:[%s5 + $0x48] sm:$0xff]
        %v1540 = vld [vmem:[%s5 + $0x50] sm:$0xff]
        %v1541 = vld [vmem:[%s5 + $0x58] sm:$0xff]
        %v1542 = vld [vmem:[%s5 + $0x60] sm:$0xff]
        %v1543 = vld [vmem:[%s5 + $0x68] sm:$0xff]
        %v1544 = vld [vmem:[%s5 + $0x70] sm:$0xff]
        %v1545 = vld [vmem:[%s5 + $0x78] sm:$0xff]
        %v1546 = vld [vmem:[%s5 + $0x80] sm:$0xff]
        %v1547 = vld [vmem:[%s5 + $0x88] sm:$0xff]
        %v1548 = vld [vmem:[%s5 + $0x90] sm:$0xff]
        %v1549 = vld [vmem:[%s5 + $0x98] sm:$0xff]
        %v1550 = vld [vmem:[%s5 + $0xa0] sm:$0xff]
        %v1551 = vld [vmem:[%s5 + $0xa8] sm:$0xff]
        %v1552 = vld [vmem:[%s5 + $0xb0] sm:$0xff]
        %v1553 = vld [vmem:[%s5 + $0xb8] sm:$0xff]
        %v1554 = vld [vmem:[%s5 + $0xc0] sm:$0xff]
        %v1555 = vld [vmem:[%s5 + $0xc8] sm:$0xff]
        %v1556 = vld [vmem:[%s5 + $0xd0] sm:$0xff]
        %v1557 = vld [vmem:[%s5 + $0xd8] sm:$0xff]
        %v1558 = vld [vmem:[%s5 + $0xe0] sm:$0xff]
        %v1559 = vld [vmem:[%s5 + $0xe8] sm:$0xff]
        %v1560 = vld [vmem:[%s5 + $0xf0] sm:$0xff]
        %v1561 = vld [vmem:[%s5 + $0xf8] sm:$0xff]
        %v1562 = vld [vmem:[%s6] sm:$0xff]
        %v1563 = vld [vmem:[%s6 + $0x8] sm:$0xff]
        %v1564 = vld [vmem:[%s6 + $0x10] sm:$0xff]
        %v1565 = vld [vmem:[%s6 + $0x18] sm:$0xff]
        %v1566 = vld [vmem:[%s6 + $0x20] sm:$0xff]
        %v1567 = vld [vmem:[%s6 + $0x28] sm:$0xff]
        %v1568 = vld [vmem:[%s6 + $0x30] sm:$0xff]
        %v1569 = vld [vmem:[%s6 + $0x38] sm:$0xff]
        %v1570 = vld [vmem:[%s6 + $0x40] sm:$0xff]
        %v1571 = vld [vmem:[%s6 + $0x48] sm:$0xff]
        %v1572 = vld [vmem:[%s6 + $0x50] sm:$0xff]
        %v1573 = vld [vmem:[%s6 + $0x58] sm:$0xff]
        %v1574 = vld [vmem:[%s6 + $0x60] sm:$0xff]
        %v1575 = vld [vmem:[%s6 + $0x68] sm:$0xff]
        %v1576 = vld [vmem:[%s6 + $0x70] sm:$0xff]
        %v1577 = vld [vmem:[%s6 + $0x78] sm:$0xff]
        %v1578 = vld [vmem:[%s6 + $0x80] sm:$0xff]
        %v1579 = vld [vmem:[%s6 + $0x88] sm:$0xff]
        %v1580 = vld [vmem:[%s6 + $0x90] sm:$0xff]
        %v1581 = vld [vmem:[%s6 + $0x98] sm:$0xff]
        %v1582 = vld [vmem:[%s6 + $0xa0] sm:$0xff]
        %v1583 = vld [vmem:[%s6 + $0xa8] sm:$0xff]
        %v1584 = vld [vmem:[%s6 + $0xb0] sm:$0xff]
        %v1585 = vld [vmem:[%s6 + $0xb8] sm:$0xff]
        %v1586 = vld [vmem:[%s6 + $0xc0] sm:$0xff]
        %v1587 = vld [vmem:[%s6 + $0xc8] sm:$0xff]
        %v1588 = vld [vmem:[%s6 + $0xd0] sm:$0xff]
        %v1589 = vld [vmem:[%s6 + $0xd8] sm:$0xff]
        %v1590 = vld [vmem:[%s6 + $0xe0] sm:$0xff]
        %v1591 = vld [vmem:[%s6 + $0xe8] sm:$0xff]
        %v1592 = vld [vmem:[%s6 + $0xf0] sm:$0xff]
        %v1593 = vld [vmem:[%s6 + $0xf8] sm:$0xff]
        %1595 = vset.pattern.permute.xlu0 0
        %1596 = vperm.xlu0 %1595, %v1562
        %v1597 = vpop.permute.xlu0 %1596
        %1600 = vset.pattern.permute.xlu0 0
        %1601 = vperm.xlu0 %1600, %v1563
        %v1602 = vpop.permute.xlu0 %1601
        %1605 = vset.pattern.permute.xlu0 0
        %1606 = vperm.xlu0 %1605, %v1564
        %v1607 = vpop.permute.xlu0 %1606
        %1610 = vset.pattern.permute.xlu0 0
        %1611 = vperm.xlu0 %1610, %v1565
        %v1612 = vpop.permute.xlu0 %1611
        %1615 = vset.pattern.permute.xlu0 0
        %1616 = vperm.xlu0 %1615, %v1566
        %v1617 = vpop.permute.xlu0 %1616
        %1620 = vset.pattern.permute.xlu0 0
        %1621 = vperm.xlu0 %1620, %v1567
        %v1622 = vpop.permute.xlu0 %1621
        %1625 = vset.pattern.permute.xlu0 0
        %1626 = vperm.xlu0 %1625, %v1568
        %v1627 = vpop.permute.xlu0 %1626
        %1630 = vset.pattern.permute.xlu0 0
        %1631 = vperm.xlu0 %1630, %v1569
        %v1632 = vpop.permute.xlu0 %1631
        %1635 = vset.pattern.permute.xlu0 0
        %1636 = vperm.xlu0 %1635, %v1570
        %v1637 = vpop.permute.xlu0 %1636
        %1640 = vset.pattern.permute.xlu0 0
        %1641 = vperm.xlu0 %1640, %v1571
        %v1642 = vpop.permute.xlu0 %1641
        %1645 = vset.pattern.permute.xlu0 0
        %1646 = vperm.xlu0 %1645, %v1572
        %v1647 = vpop.permute.xlu0 %1646
        %1650 = vset.pattern.permute.xlu0 0
        %1651 = vperm.xlu0 %1650, %v1573
        %v1652 = vpop.permute.xlu0 %1651
        %1655 = vset.pattern.permute.xlu0 0
        %1656 = vperm.xlu0 %1655, %v1574
        %v1657 = vpop.permute.xlu0 %1656
        %1660 = vset.pattern.permute.xlu0 0
        %1661 = vperm.xlu0 %1660, %v1575
        %v1662 = vpop.permute.xlu0 %1661
        %1665 = vset.pattern.permute.xlu0 0
        %1666 = vperm.xlu0 %1665, %v1576
        %v1667 = vpop.permute.xlu0 %1666
        %1670 = vset.pattern.permute.xlu0 0
        %1671 = vperm.xlu0 %1670, %v1577
        %v1672 = vpop.permute.xlu0 %1671
        %1675 = vset.pattern.permute.xlu0 0
        %1676 = vperm.xlu0 %1675, %v1578
        %v1677 = vpop.permute.xlu0 %1676
        %1680 = vset.pattern.permute.xlu0 0
        %1681 = vperm.xlu0 %1680, %v1579
        %v1682 = vpop.permute.xlu0 %1681
        %1685 = vset.pattern.permute.xlu0 0
        %1686 = vperm.xlu0 %1685, %v1580
        %v1687 = vpop.permute.xlu0 %1686
        %1690 = vset.pattern.permute.xlu0 0
        %1691 = vperm.xlu0 %1690, %v1581
        %v1692 = vpop.permute.xlu0 %1691
        %1695 = vset.pattern.permute.xlu0 0
        %1696 = vperm.xlu0 %1695, %v1582
        %v1697 = vpop.permute.xlu0 %1696
        %1700 = vset.pattern.permute.xlu0 0
        %1701 = vperm.xlu0 %1700, %v1583
        %v1702 = vpop.permute.xlu0 %1701
        %1705 = vset.pattern.permute.xlu0 0
        %1706 = vperm.xlu0 %1705, %v1584
        %v1707 = vpop.permute.xlu0 %1706
        %1710 = vset.pattern.permute.xlu0 0
        %1711 = vperm.xlu0 %1710, %v1585
        %v1712 = vpop.permute.xlu0 %1711
        %1715 = vset.pattern.permute.xlu0 0
        %1716 = vperm.xlu0 %1715, %v1586
        %v1717 = vpop.permute.xlu0 %1716
        %1720 = vset.pattern.permute.xlu0 0
        %1721 = vperm.xlu0 %1720, %v1587
        %v1722 = vpop.permute.xlu0 %1721
        %1725 = vset.pattern.permute.xlu0 0
        %1726 = vperm.xlu0 %1725, %v1588
        %v1727 = vpop.permute.xlu0 %1726
        %1730 = vset.pattern.permute.xlu0 0
        %1731 = vperm.xlu0 %1730, %v1589
        %v1732 = vpop.permute.xlu0 %1731
        %1735 = vset.pattern.permute.xlu0 0
        %1736 = vperm.xlu0 %1735, %v1590
        %v1737 = vpop.permute.xlu0 %1736
        %1740 = vset.pattern.permute.xlu0 0
        %1741 = vperm.xlu0 %1740, %v1591
        %v1742 = vpop.permute.xlu0 %1741
        %1745 = vset.pattern.permute.xlu0 0
        %1746 = vperm.xlu0 %1745, %v1592
        %v1747 = vpop.permute.xlu0 %1746
        %1750 = vset.pattern.permute.xlu0 0
        %1751 = vperm.xlu0 %1750, %v1593
        %v1752 = vpop.permute.xlu0 %1751
        %1754 = vmatpush.msra.mxu0 %v1528
        %1755 = vmatpush.msra.mxu0 %v1526
        %1756 = vmatpush.msra.mxu0 %v1524
        %1757 = vmatpush.msra.mxu0 %v1522
        %1758 = vmatpush.msra.mxu0 %v1520
        %1759 = vmatpush.msra.mxu0 %v1518
        %1760 = vmatpush.msra.mxu0 %v1516
        %1761 = vmatpush.msra.mxu0 %v1514
        %1762 = vmatpush.msra.mxu0 %v1512
        %1763 = vmatpush.msra.mxu0 %v1510
        %1764 = vmatpush.msra.mxu0 %v1508
        %1765 = vmatpush.msra.mxu0 %v1506
        %1766 = vmatpush.msra.mxu0 %v1504
        %1767 = vmatpush.msra.mxu0 %v1502
        %1768 = vmatpush.msra.mxu0 %v1500
        %1769 = vmatpush.msra.mxu0 %v1498
        %1770 = vmatmul.f32.gmra.mxu0 %v1530
        %v1771 = vpop.f32.mrf.mxu0
        %v1772 = vadd.f32 %v1597, %v1771
        %1773 = vmatmul.f32.gmra.mxu0 %v1531
        %v1774 = vpop.f32.mrf.mxu0
        %v1775 = vadd.f32 %v1602, %v1774
        %1776 = vmatmul.f32.gmra.mxu0 %v1532
        %v1777 = vpop.f32.mrf.mxu0
        %v1778 = vadd.f32 %v1607, %v1777
        %1779 = vmatmul.f32.gmra.mxu0 %v1533
        %v1780 = vpop.f32.mrf.mxu0
        %v1781 = vadd.f32 %v1612, %v1780
        %1782 = vmatmul.f32.gmra.mxu0 %v1534
        %v1783 = vpop.f32.mrf.mxu0
        %v1784 = vadd.f32 %v1617, %v1783
        %1785 = vmatmul.f32.gmra.mxu0 %v1535
        %v1786 = vpop.f32.mrf.mxu0
        %v1787 = vadd.f32 %v1622, %v1786
        %1788 = vmatmul.f32.gmra.mxu0 %v1536
        %v1789 = vpop.f32.mrf.mxu0
        %v1790 = vadd.f32 %v1627, %v1789
        %1791 = vmatmul.f32.gmra.mxu0 %v1537
        %v1792 = vpop.f32.mrf.mxu0
        %v1793 = vadd.f32 %v1632, %v1792
        %1794 = vmatmul.f32.gmra.mxu0 %v1538
        %v1795 = vpop.f32.mrf.mxu0
        %v1796 = vadd.f32 %v1637, %v1795
        %1797 = vmatmul.f32.gmra.mxu0 %v1539
        %v1798 = vpop.f32.mrf.mxu0
        %v1799 = vadd.f32 %v1642, %v1798
        %1800 = vmatmul.f32.gmra.mxu0 %v1540
        %v1801 = vpop.f32.mrf.mxu0
        %v1802 = vadd.f32 %v1647, %v1801
        %1803 = vmatmul.f32.gmra.mxu0 %v1541
        %v1804 = vpop.f32.mrf.mxu0
        %v1805 = vadd.f32 %v1652, %v1804
        %1806 = vmatmul.f32.gmra.mxu0 %v1542
        %v1807 = vpop.f32.mrf.mxu0
        %v1808 = vadd.f32 %v1657, %v1807
        %1809 = vmatmul.f32.gmra.mxu0 %v1543
        %v1810 = vpop.f32.mrf.mxu0
        %v1811 = vadd.f32 %v1662, %v1810
        %1812 = vmatmul.f32.gmra.mxu0 %v1544
        %v1813 = vpop.f32.mrf.mxu0
        %v1814 = vadd.f32 %v1667, %v1813
        %1815 = vmatmul.f32.gmra.mxu0 %v1545
        %v1816 = vpop.f32.mrf.mxu0
        %v1817 = vadd.f32 %v1672, %v1816
        %1818 = vmatmul.f32.gmra.mxu0 %v1546
        %v1819 = vpop.f32.mrf.mxu0
        %v1820 = vadd.f32 %v1677, %v1819
        %1821 = vmatmul.f32.gmra.mxu0 %v1547
        %v1822 = vpop.f32.mrf.mxu0
        %v1823 = vadd.f32 %v1682, %v1822
        %1824 = vmatmul.f32.gmra.mxu0 %v1548
        %v1825 = vpop.f32.mrf.mxu0
        %v1826 = vadd.f32 %v1687, %v1825
        %1827 = vmatmul.f32.gmra.mxu0 %v1549
        %v1828 = vpop.f32.mrf.mxu0
        %v1829 = vadd.f32 %v1692, %v1828
        %1830 = vmatmul.f32.gmra.mxu0 %v1550
        %v1831 = vpop.f32.mrf.mxu0
        %v1832 = vadd.f32 %v1697, %v1831
        %1833 = vmatmul.f32.gmra.mxu0 %v1551
        %v1834 = vpop.f32.mrf.mxu0
        %v1835 = vadd.f32 %v1702, %v1834
        %1836 = vmatmul.f32.gmra.mxu0 %v1552
        %v1837 = vpop.f32.mrf.mxu0
        %v1838 = vadd.f32 %v1707, %v1837
        %1839 = vmatmul.f32.gmra.mxu0 %v1553
        %v1840 = vpop.f32.mrf.mxu0
        %v1841 = vadd.f32 %v1712, %v1840
        %1842 = vmatmul.f32.gmra.mxu0 %v1554
        %v1843 = vpop.f32.mrf.mxu0
        %v1844 = vadd.f32 %v1717, %v1843
        %1845 = vmatmul.f32.gmra.mxu0 %v1555
        %v1846 = vpop.f32.mrf.mxu0
        %v1847 = vadd.f32 %v1722, %v1846
        %1848 = vmatmul.f32.gmra.mxu0 %v1556
        %v1849 = vpop.f32.mrf.mxu0
        %v1850 = vadd.f32 %v1727, %v1849
        %1851 = vmatmul.f32.gmra.mxu0 %v1557
        %v1852 = vpop.f32.mrf.mxu0
        %v1853 = vadd.f32 %v1732, %v1852
        %1854 = vmatmul.f32.gmra.mxu0 %v1558
        %v1855 = vpop.f32.mrf.mxu0
        %v1856 = vadd.f32 %v1737, %v1855
        %1857 = vmatmul.f32.gmra.mxu0 %v1559
        %v1858 = vpop.f32.mrf.mxu0
        %v1859 = vadd.f32 %v1742, %v1858
        %1860 = vmatmul.f32.gmra.mxu0 %v1560
        %v1861 = vpop.f32.mrf.mxu0
        %v1862 = vadd.f32 %v1747, %v1861
        %1863 = vmatmul.f32.gmra.mxu0 %v1561
        %v1864 = vpop.f32.mrf.mxu0
        %v1865 = vadd.f32 %v1752, %v1864
        %1866 = vdwg.mxu0
        %1867 = vmatpush.msra.mxu0 %v1529
        %1868 = vmatpush.msra.mxu0 %v1527
        %1869 = vmatpush.msra.mxu0 %v1525
        %1870 = vmatpush.msra.mxu0 %v1523
        %1871 = vmatpush.msra.mxu0 %v1521
        %1872 = vmatpush.msra.mxu0 %v1519
        %1873 = vmatpush.msra.mxu0 %v1517
        %1874 = vmatpush.msra.mxu0 %v1515
        %1875 = vmatpush.msra.mxu0 %v1513
        %1876 = vmatpush.msra.mxu0 %v1511
        %1877 = vmatpush.msra.mxu0 %v1509
        %1878 = vmatpush.msra.mxu0 %v1507
        %1879 = vmatpush.msra.mxu0 %v1505
        %1880 = vmatpush.msra.mxu0 %v1503
        %1881 = vmatpush.msra.mxu0 %v1501
        %1882 = vmatpush.msra.mxu0 %v1499
        %1883 = vmatmul.f32.gmra.mxu0 %v1530
        %v1884 = vpop.f32.mrf.mxu0
        %v1885 = vadd.f32 %v1597, %v1884
        %1886 = vmatmul.f32.gmra.mxu0 %v1531
        %v1887 = vpop.f32.mrf.mxu0
        %v1888 = vadd.f32 %v1602, %v1887
        %1889 = vmatmul.f32.gmra.mxu0 %v1532
        %v1890 = vpop.f32.mrf.mxu0
        %v1891 = vadd.f32 %v1607, %v1890
        %1892 = vmatmul.f32.gmra.mxu0 %v1533
        %v1893 = vpop.f32.mrf.mxu0
        %v1894 = vadd.f32 %v1612, %v1893
        %1895 = vmatmul.f32.gmra.mxu0 %v1534
        %v1896 = vpop.f32.mrf.mxu0
        %v1897 = vadd.f32 %v1617, %v1896
        %1898 = vmatmul.f32.gmra.mxu0 %v1535
        %v1899 = vpop.f32.mrf.mxu0
        %v1900 = vadd.f32 %v1622, %v1899
        %1901 = vmatmul.f32.gmra.mxu0 %v1536
        %v1902 = vpop.f32.mrf.mxu0
        %v1903 = vadd.f32 %v1627, %v1902
        %1904 = vmatmul.f32.gmra.mxu0 %v1537
        %v1905 = vpop.f32.mrf.mxu0
        %v1906 = vadd.f32 %v1632, %v1905
        %1907 = vmatmul.f32.gmra.mxu0 %v1538
        %v1908 = vpop.f32.mrf.mxu0
        %v1909 = vadd.f32 %v1637, %v1908
        %1910 = vmatmul.f32.gmra.mxu0 %v1539
        %v1911 = vpop.f32.mrf.mxu0
        %v1912 = vadd.f32 %v1642, %v1911
        %1913 = vmatmul.f32.gmra.mxu0 %v1540
        %v1914 = vpop.f32.mrf.mxu0
        %v1915 = vadd.f32 %v1647, %v1914
        %1916 = vmatmul.f32.gmra.mxu0 %v1541
        %v1917 = vpop.f32.mrf.mxu0
        %v1918 = vadd.f32 %v1652, %v1917
        %1919 = vmatmul.f32.gmra.mxu0 %v1542
        %v1920 = vpop.f32.mrf.mxu0
        %v1921 = vadd.f32 %v1657, %v1920
        %1922 = vmatmul.f32.gmra.mxu0 %v1543
        %v1923 = vpop.f32.mrf.mxu0
        %v1924 = vadd.f32 %v1662, %v1923
        %1925 = vmatmul.f32.gmra.mxu0 %v1544
        %v1926 = vpop.f32.mrf.mxu0
        %v1927 = vadd.f32 %v1667, %v1926
        %1928 = vmatmul.f32.gmra.mxu0 %v1545
        %v1929 = vpop.f32.mrf.mxu0
        %v1930 = vadd.f32 %v1672, %v1929
        %1931 = vmatmul.f32.gmra.mxu0 %v1546
        %v1932 = vpop.f32.mrf.mxu0
        %v1933 = vadd.f32 %v1677, %v1932
        %1934 = vmatmul.f32.gmra.mxu0 %v1547
        %v1935 = vpop.f32.mrf.mxu0
        %v1936 = vadd.f32 %v1682, %v1935
        %1937 = vmatmul.f32.gmra.mxu0 %v1548
        %v1938 = vpop.f32.mrf.mxu0
        %v1939 = vadd.f32 %v1687, %v1938
        %1940 = vmatmul.f32.gmra.mxu0 %v1549
        %v1941 = vpop.f32.mrf.mxu0
        %v1942 = vadd.f32 %v1692, %v1941
        %1943 = vmatmul.f32.gmra.mxu0 %v1550
        %v1944 = vpop.f32.mrf.mxu0
        %v1945 = vadd.f32 %v1697, %v1944
        %1946 = vmatmul.f32.gmra.mxu0 %v1551
        %v1947 = vpop.f32.mrf.mxu0
        %v1948 = vadd.f32 %v1702, %v1947
        %1949 = vmatmul.f32.gmra.mxu0 %v1552
        %v1950 = vpop.f32.mrf.mxu0
        %v1951 = vadd.f32 %v1707, %v1950
        %1952 = vmatmul.f32.gmra.mxu0 %v1553
        %v1953 = vpop.f32.mrf.mxu0
        %v1954 = vadd.f32 %v1712, %v1953
        %1955 = vmatmul.f32.gmra.mxu0 %v1554
        %v1956 = vpop.f32.mrf.mxu0
        %v1957 = vadd.f32 %v1717, %v1956
        %1958 = vmatmul.f32.gmra.mxu0 %v1555
        %v1959 = vpop.f32.mrf.mxu0
        %v1960 = vadd.f32 %v1722, %v1959
        %1961 = vmatmul.f32.gmra.mxu0 %v1556
        %v1962 = vpop.f32.mrf.mxu0
        %v1963 = vadd.f32 %v1727, %v1962
        %1964 = vmatmul.f32.gmra.mxu0 %v1557
        %v1965 = vpop.f32.mrf.mxu0
        %v1966 = vadd.f32 %v1732, %v1965
        %1967 = vmatmul.f32.gmra.mxu0 %v1558
        %v1968 = vpop.f32.mrf.mxu0
        %v1969 = vadd.f32 %v1737, %v1968
        %1970 = vmatmul.f32.gmra.mxu0 %v1559
        %v1971 = vpop.f32.mrf.mxu0
        %v1972 = vadd.f32 %v1742, %v1971
        %1973 = vmatmul.f32.gmra.mxu0 %v1560
        %v1974 = vpop.f32.mrf.mxu0
        %v1975 = vadd.f32 %v1747, %v1974
        %1976 = vmatmul.f32.gmra.mxu0 %v1561
        %v1977 = vpop.f32.mrf.mxu0
        %v1978 = vadd.f32 %v1752, %v1977
        %1979 = vdwg.mxu0
        %1980 = vst [vmem:[%s767] sm:$0xff] %v1772
        %1981 = vst [vmem:[%s767 + $0x8] sm:$0xff] %v1885
        %1982 = vst [vmem:[%s767 + $0x10] sm:$0xff] %v1775
        %1983 = vst [vmem:[%s767 + $0x18] sm:$0xff] %v1888
        %1984 = vst [vmem:[%s767 + $0x20] sm:$0xff] %v1778
        %1985 = vst [vmem:[%s767 + $0x28] sm:$0xff] %v1891
        %1986 = vst [vmem:[%s767 + $0x30] sm:$0xff] %v1781
        %1987 = vst [vmem:[%s767 + $0x38] sm:$0xff] %v1894
        %1988 = vst [vmem:[%s767 + $0x40] sm:$0xff] %v1784
        %1989 = vst [vmem:[%s767 + $0x48] sm:$0xff] %v1897
        %1990 = vst [vmem:[%s767 + $0x50] sm:$0xff] %v1787
        %1991 = vst [vmem:[%s767 + $0x58] sm:$0xff] %v1900
        %1992 = vst [vmem:[%s767 + $0x60] sm:$0xff] %v1790
        %1993 = vst [vmem:[%s767 + $0x68] sm:$0xff] %v1903
        %1994 = vst [vmem:[%s767 + $0x70] sm:$0xff] %v1793
        %1995 = vst [vmem:[%s767 + $0x78] sm:$0xff] %v1906
        %1996 = vst [vmem:[%s767 + $0x80] sm:$0xff] %v1796
        %1997 = vst [vmem:[%s767 + $0x88] sm:$0xff] %v1909
        %1998 = vst [vmem:[%s767 + $0x90] sm:$0xff] %v1799
        %1999 = vst [vmem:[%s767 + $0x98] sm:$0xff] %v1912
        %2000 = vst [vmem:[%s767 + $0xa0] sm:$0xff] %v1802
        %2001 = vst [vmem:[%s767 + $0xa8] sm:$0xff] %v1915
        %2002 = vst [vmem:[%s767 + $0xb0] sm:$0xff] %v1805
        %2003 = vst [vmem:[%s767 + $0xb8] sm:$0xff] %v1918
        %2004 = vst [vmem:[%s767 + $0xc0] sm:$0xff] %v1808
        %2005 = vst [vmem:[%s767 + $0xc8] sm:$0xff] %v1921
        %2006 = vst [vmem:[%s767 + $0xd0] sm:$0xff] %v1811
        %2007 = vst [vmem:[%s767 + $0xd8] sm:$0xff] %v1924
        %2008 = vst [vmem:[%s767 + $0xe0] sm:$0xff] %v1814
        %2009 = vst [vmem:[%s767 + $0xe8] sm:$0xff] %v1927
        %2010 = vst [vmem:[%s767 + $0xf0] sm:$0xff] %v1817
        %2011 = vst [vmem:[%s767 + $0xf8] sm:$0xff] %v1930
        %2012 = vst [vmem:[%s767 + $0x100] sm:$0xff] %v1820
        %2013 = vst [vmem:[%s767 + $0x108] sm:$0xff] %v1933
        %2014 = vst [vmem:[%s767 + $0x110] sm:$0xff] %v1823
        %2015 = vst [vmem:[%s767 + $0x118] sm:$0xff] %v1936
        %2016 = vst [vmem:[%s767 + $0x120] sm:$0xff] %v1826
        %2017 = vst [vmem:[%s767 + $0x128] sm:$0xff] %v1939
        %2018 = vst [vmem:[%s767 + $0x130] sm:$0xff] %v1829
        %2019 = vst [vmem:[%s767 + $0x138] sm:$0xff] %v1942
        %2020 = vst [vmem:[%s767 + $0x140] sm:$0xff] %v1832
        %2021 = vst [vmem:[%s767 + $0x148] sm:$0xff] %v1945
        %2022 = vst [vmem:[%s767 + $0x150] sm:$0xff] %v1835
        %2023 = vst [vmem:[%s767 + $0x158] sm:$0xff] %v1948
        %2024 = vst [vmem:[%s767 + $0x160] sm:$0xff] %v1838
        %2025 = vst [vmem:[%s767 + $0x168] sm:$0xff] %v1951
        %2026 = vst [vmem:[%s767 + $0x170] sm:$0xff] %v1841
        %2027 = vst [vmem:[%s767 + $0x178] sm:$0xff] %v1954
        %2028 = vst [vmem:[%s767 + $0x180] sm:$0xff] %v1844
        %2029 = vst [vmem:[%s767 + $0x188] sm:$0xff] %v1957
        %2030 = vst [vmem:[%s767 + $0x190] sm:$0xff] %v1847
        %2031 = vst [vmem:[%s767 + $0x198] sm:$0xff] %v1960
        %2032 = vst [vmem:[%s767 + $0x1a0] sm:$0xff] %v1850
        %2033 = vst [vmem:[%s767 + $0x1a8] sm:$0xff] %v1963
        %2034 = vst [vmem:[%s767 + $0x1b0] sm:$0xff] %v1853
        %2035 = vst [vmem:[%s767 + $0x1b8] sm:$0xff] %v1966
        %2036 = vst [vmem:[%s767 + $0x1c0] sm:$0xff] %v1856
        %2037 = vst [vmem:[%s767 + $0x1c8] sm:$0xff] %v1969
        %2038 = vst [vmem:[%s767 + $0x1d0] sm:$0xff] %v1859
        %2039 = vst [vmem:[%s767 + $0x1d8] sm:$0xff] %v1972
        %2040 = vst [vmem:[%s767 + $0x1e0] sm:$0xff] %v1862
        %2041 = vst [vmem:[%s767 + $0x1e8] sm:$0xff] %v1975
        %2042 = vst [vmem:[%s767 + $0x1f0] sm:$0xff] %v1865
        %2043 = vst [vmem:[%s767 + $0x1f8] sm:$0xff] %v1978
        %v2044 = vmul.f32 %v1772, 0.2
        %v2045 = vmul.f32 %v1885, 0.2
        %v2046 = vmul.f32 %v1775, 0.2
        %v2047 = vmul.f32 %v1888, 0.2
        %v2048 = vmul.f32 %v1778, 0.2
        %v2049 = vmul.f32 %v1891, 0.2
        %v2050 = vmul.f32 %v1781, 0.2
        %v2051 = vmul.f32 %v1894, 0.2
        %v2052 = vmul.f32 %v1784, 0.2
        %v2053 = vmul.f32 %v1897, 0.2
        %v2054 = vmul.f32 %v1787, 0.2
        %v2055 = vmul.f32 %v1900, 0.2
        %v2056 = vmul.f32 %v1790, 0.2
        %v2057 = vmul.f32 %v1903, 0.2
        %v2058 = vmul.f32 %v1793, 0.2
        %v2059 = vmul.f32 %v1906, 0.2
        %v2060 = vmul.f32 %v1796, 0.2
        %v2061 = vmul.f32 %v1909, 0.2
        %v2062 = vmul.f32 %v1799, 0.2
        %v2063 = vmul.f32 %v1912, 0.2
        %v2064 = vmul.f32 %v1802, 0.2
        %v2065 = vmul.f32 %v1915, 0.2
        %v2066 = vmul.f32 %v1805, 0.2
        %v2067 = vmul.f32 %v1918, 0.2
        %v2068 = vmul.f32 %v1808, 0.2
        %v2069 = vmul.f32 %v1921, 0.2
        %v2070 = vmul.f32 %v1811, 0.2
        %v2071 = vmul.f32 %v1924, 0.2
        %v2072 = vmul.f32 %v1814, 0.2
        %v2073 = vmul.f32 %v1927, 0.2
        %v2074 = vmul.f32 %v1817, 0.2
        %v2075 = vmul.f32 %v1930, 0.2
        %v2076 = vmul.f32 %v1820, 0.2
        %v2077 = vmul.f32 %v1933, 0.2
        %v2078 = vmul.f32 %v1823, 0.2
        %v2079 = vmul.f32 %v1936, 0.2
        %v2080 = vmul.f32 %v1826, 0.2
        %v2081 = vmul.f32 %v1939, 0.2
        %v2082 = vmul.f32 %v1829, 0.2
        %v2083 = vmul.f32 %v1942, 0.2
        %v2084 = vmul.f32 %v1832, 0.2
        %v2085 = vmul.f32 %v1945, 0.2
        %v2086 = vmul.f32 %v1835, 0.2
        %v2087 = vmul.f32 %v1948, 0.2
        %v2088 = vmul.f32 %v1838, 0.2
        %v2089 = vmul.f32 %v1951, 0.2
        %v2090 = vmul.f32 %v1841, 0.2
        %v2091 = vmul.f32 %v1954, 0.2
        %v2092 = vmul.f32 %v1844, 0.2
        %v2093 = vmul.f32 %v1957, 0.2
        %v2094 = vmul.f32 %v1847, 0.2
        %v2095 = vmul.f32 %v1960, 0.2
        %v2096 = vmul.f32 %v1850, 0.2
        %v2097 = vmul.f32 %v1963, 0.2
        %v2098 = vmul.f32 %v1853, 0.2
        %v2099 = vmul.f32 %v1966, 0.2
        %v2100 = vmul.f32 %v1856, 0.2
        %v2101 = vmul.f32 %v1969, 0.2
        %v2102 = vmul.f32 %v1859, 0.2
        %v2103 = vmul.f32 %v1972, 0.2
        %v2104 = vmul.f32 %v1862, 0.2
        %v2105 = vmul.f32 %v1975, 0.2
        %v2106 = vmul.f32 %v1865, 0.2
        %v2107 = vmul.f32 %v1978, 0.2
        %v2108 = vmax.f32 %v1772, %v2044
        %v2109 = vmax.f32 %v1885, %v2045
        %v2110 = vmax.f32 %v1775, %v2046
        %v2111 = vmax.f32 %v1888, %v2047
        %v2112 = vmax.f32 %v1778, %v2048
        %v2113 = vmax.f32 %v1891, %v2049
        %v2114 = vmax.f32 %v1781, %v2050
        %v2115 = vmax.f32 %v1894, %v2051
        %v2116 = vmax.f32 %v1784, %v2052
        %v2117 = vmax.f32 %v1897, %v2053
        %v2118 = vmax.f32 %v1787, %v2054
        %v2119 = vmax.f32 %v1900, %v2055
        %v2120 = vmax.f32 %v1790, %v2056
        %v2121 = vmax.f32 %v1903, %v2057
        %v2122 = vmax.f32 %v1793, %v2058
        %v2123 = vmax.f32 %v1906, %v2059
        %v2124 = vmax.f32 %v1796, %v2060
        %v2125 = vmax.f32 %v1909, %v2061
        %v2126 = vmax.f32 %v1799, %v2062
        %v2127 = vmax.f32 %v1912, %v2063
        %v2128 = vmax.f32 %v1802, %v2064
        %v2129 = vmax.f32 %v1915, %v2065
        %v2130 = vmax.f32 %v1805, %v2066
        %v2131 = vmax.f32 %v1918, %v2067
        %v2132 = vmax.f32 %v1808, %v2068
        %v2133 = vmax.f32 %v1921, %v2069
        %v2134 = vmax.f32 %v1811, %v2070
        %v2135 = vmax.f32 %v1924, %v2071
        %v2136 = vmax.f32 %v1814, %v2072
        %v2137 = vmax.f32 %v1927, %v2073
        %v2138 = vmax.f32 %v1817, %v2074
        %v2139 = vmax.f32 %v1930, %v2075
        %v2140 = vmax.f32 %v1820, %v2076
        %v2141 = vmax.f32 %v1933, %v2077
        %v2142 = vmax.f32 %v1823, %v2078
        %v2143 = vmax.f32 %v1936, %v2079
        %v2144 = vmax.f32 %v1826, %v2080
        %v2145 = vmax.f32 %v1939, %v2081
        %v2146 = vmax.f32 %v1829, %v2082
        %v2147 = vmax.f32 %v1942, %v2083
        %v2148 = vmax.f32 %v1832, %v2084
        %v2149 = vmax.f32 %v1945, %v2085
        %v2150 = vmax.f32 %v1835, %v2086
        %v2151 = vmax.f32 %v1948, %v2087
        %v2152 = vmax.f32 %v1838, %v2088
        %v2153 = vmax.f32 %v1951, %v2089
        %v2154 = vmax.f32 %v1841, %v2090
        %v2155 = vmax.f32 %v1954, %v2091
        %v2156 = vmax.f32 %v1844, %v2092
        %v2157 = vmax.f32 %v1957, %v2093
        %v2158 = vmax.f32 %v1847, %v2094
        %v2159 = vmax.f32 %v1960, %v2095
        %v2160 = vmax.f32 %v1850, %v2096
        %v2161 = vmax.f32 %v1963, %v2097
        %v2162 = vmax.f32 %v1853, %v2098
        %v2163 = vmax.f32 %v1966, %v2099
        %v2164 = vmax.f32 %v1856, %v2100
        %v2165 = vmax.f32 %v1969, %v2101
        %v2166 = vmax.f32 %v1859, %v2102
        %v2167 = vmax.f32 %v1972, %v2103
        %v2168 = vmax.f32 %v1862, %v2104
        %v2169 = vmax.f32 %v1975, %v2105
        %v2170 = vmax.f32 %v1865, %v2106
        %v2171 = vmax.f32 %v1978, %v2107
        %2172 = vst [vmem:[%s774] sm:$0xff] %v2108
        %2173 = vst [vmem:[%s774 + $0x8] sm:$0xff] %v2109
        %2174 = vst [vmem:[%s774 + $0x10] sm:$0xff] %v2110
        %2175 = vst [vmem:[%s774 + $0x18] sm:$0xff] %v2111
        %2176 = vst [vmem:[%s774 + $0x20] sm:$0xff] %v2112
        %2177 = vst [vmem:[%s774 + $0x28] sm:$0xff] %v2113
        %2178 = vst [vmem:[%s774 + $0x30] sm:$0xff] %v2114
        %2179 = vst [vmem:[%s774 + $0x38] sm:$0xff] %v2115
        %2180 = vst [vmem:[%s774 + $0x40] sm:$0xff] %v2116
        %2181 = vst [vmem:[%s774 + $0x48] sm:$0xff] %v2117
        %2182 = vst [vmem:[%s774 + $0x50] sm:$0xff] %v2118
        %2183 = vst [vmem:[%s774 + $0x58] sm:$0xff] %v2119
        %2184 = vst [vmem:[%s774 + $0x60] sm:$0xff] %v2120
        %2185 = vst [vmem:[%s774 + $0x68] sm:$0xff] %v2121
        %2186 = vst [vmem:[%s774 + $0x70] sm:$0xff] %v2122
        %2187 = vst [vmem:[%s774 + $0x78] sm:$0xff] %v2123
        %2188 = vst [vmem:[%s774 + $0x80] sm:$0xff] %v2124
        %2189 = vst [vmem:[%s774 + $0x88] sm:$0xff] %v2125
        %2190 = vst [vmem:[%s774 + $0x90] sm:$0xff] %v2126
        %2191 = vst [vmem:[%s774 + $0x98] sm:$0xff] %v2127
        %2192 = vst [vmem:[%s774 + $0xa0] sm:$0xff] %v2128
        %2193 = vst [vmem:[%s774 + $0xa8] sm:$0xff] %v2129
        %2194 = vst [vmem:[%s774 + $0xb0] sm:$0xff] %v2130
        %2195 = vst [vmem:[%s774 + $0xb8] sm:$0xff] %v2131
        %2196 = vst [vmem:[%s774 + $0xc0] sm:$0xff] %v2132
        %2197 = vst [vmem:[%s774 + $0xc8] sm:$0xff] %v2133
        %2198 = vst [vmem:[%s774 + $0xd0] sm:$0xff] %v2134
        %2199 = vst [vmem:[%s774 + $0xd8] sm:$0xff] %v2135
        %2200 = vst [vmem:[%s774 + $0xe0] sm:$0xff] %v2136
        %2201 = vst [vmem:[%s774 + $0xe8] sm:$0xff] %v2137
        %2202 = vst [vmem:[%s774 + $0xf0] sm:$0xff] %v2138
        %2203 = vst [vmem:[%s774 + $0xf8] sm:$0xff] %v2139
        %2204 = vst [vmem:[%s774 + $0x100] sm:$0xff] %v2140
        %2205 = vst [vmem:[%s774 + $0x108] sm:$0xff] %v2141
        %2206 = vst [vmem:[%s774 + $0x110] sm:$0xff] %v2142
        %2207 = vst [vmem:[%s774 + $0x118] sm:$0xff] %v2143
        %2208 = vst [vmem:[%s774 + $0x120] sm:$0xff] %v2144
        %2209 = vst [vmem:[%s774 + $0x128] sm:$0xff] %v2145
        %2210 = vst [vmem:[%s774 + $0x130] sm:$0xff] %v2146
        %2211 = vst [vmem:[%s774 + $0x138] sm:$0xff] %v2147
        %2212 = vst [vmem:[%s774 + $0x140] sm:$0xff] %v2148
        %2213 = vst [vmem:[%s774 + $0x148] sm:$0xff] %v2149
        %2214 = vst [vmem:[%s774 + $0x150] sm:$0xff] %v2150
        %2215 = vst [vmem:[%s774 + $0x158] sm:$0xff] %v2151
        %2216 = vst [vmem:[%s774 + $0x160] sm:$0xff] %v2152
        %2217 = vst [vmem:[%s774 + $0x168] sm:$0xff] %v2153
        %2218 = vst [vmem:[%s774 + $0x170] sm:$0xff] %v2154
        %2219 = vst [vmem:[%s774 + $0x178] sm:$0xff] %v2155
        %2220 = vst [vmem:[%s774 + $0x180] sm:$0xff] %v2156
        %2221 = vst [vmem:[%s774 + $0x188] sm:$0xff] %v2157
        %2222 = vst [vmem:[%s774 + $0x190] sm:$0xff] %v2158
        %2223 = vst [vmem:[%s774 + $0x198] sm:$0xff] %v2159
        %2224 = vst [vmem:[%s774 + $0x1a0] sm:$0xff] %v2160
        %2225 = vst [vmem:[%s774 + $0x1a8] sm:$0xff] %v2161
        %2226 = vst [vmem:[%s774 + $0x1b0] sm:$0xff] %v2162
        %2227 = vst [vmem:[%s774 + $0x1b8] sm:$0xff] %v2163
        %2228 = vst [vmem:[%s774 + $0x1c0] sm:$0xff] %v2164
        %2229 = vst [vmem:[%s774 + $0x1c8] sm:$0xff] %v2165
        %2230 = vst [vmem:[%s774 + $0x1d0] sm:$0xff] %v2166
        %2231 = vst [vmem:[%s774 + $0x1d8] sm:$0xff] %v2167
        %2232 = vst [vmem:[%s774 + $0x1e0] sm:$0xff] %v2168
        %2233 = vst [vmem:[%s774 + $0x1e8] sm:$0xff] %v2169
        %2234 = vst [vmem:[%s774 + $0x1f0] sm:$0xff] %v2170
        %2235 = vst [vmem:[%s774 + $0x1f8] sm:$0xff] %v2171
        %v2236 = vld [vmem:[%s774] sm:$0xff]
        %v2237 = vld [vmem:[%s774 + $0x8] sm:$0xff]
        %v2238 = vld [vmem:[%s774 + $0x10] sm:$0xff]
        %v2239 = vld [vmem:[%s774 + $0x18] sm:$0xff]
        %v2240 = vld [vmem:[%s774 + $0x20] sm:$0xff]
        %v2241 = vld [vmem:[%s774 + $0x28] sm:$0xff]
        %v2242 = vld [vmem:[%s774 + $0x30] sm:$0xff]
        %v2243 = vld [vmem:[%s774 + $0x38] sm:$0xff]
        %v2244 = vld [vmem:[%s774 + $0x40] sm:$0xff]
        %v2245 = vld [vmem:[%s774 + $0x48] sm:$0xff]
        %v2246 = vld [vmem:[%s774 + $0x50] sm:$0xff]
        %v2247 = vld [vmem:[%s774 + $0x58] sm:$0xff]
        %v2248 = vld [vmem:[%s774 + $0x60] sm:$0xff]
        %v2249 = vld [vmem:[%s774 + $0x68] sm:$0xff]
        %v2250 = vld [vmem:[%s774 + $0x70] sm:$0xff]
        %v2251 = vld [vmem:[%s774 + $0x78] sm:$0xff]
        %v2252 = vld [vmem:[%s774 + $0x80] sm:$0xff]
        %v2253 = vld [vmem:[%s774 + $0x88] sm:$0xff]
        %v2254 = vld [vmem:[%s774 + $0x90] sm:$0xff]
        %v2255 = vld [vmem:[%s774 + $0x98] sm:$0xff]
        %v2256 = vld [vmem:[%s774 + $0xa0] sm:$0xff]
        %v2257 = vld [vmem:[%s774 + $0xa8] sm:$0xff]
        %v2258 = vld [vmem:[%s774 + $0xb0] sm:$0xff]
        %v2259 = vld [vmem:[%s774 + $0xb8] sm:$0xff]
        %v2260 = vld [vmem:[%s774 + $0xc0] sm:$0xff]
        %v2261 = vld [vmem:[%s774 + $0xc8] sm:$0xff]
        %v2262 = vld [vmem:[%s774 + $0xd0] sm:$0xff]
        %v2263 = vld [vmem:[%s774 + $0xd8] sm:$0xff]
        %v2264 = vld [vmem:[%s774 + $0xe0] sm:$0xff]
        %v2265 = vld [vmem:[%s774 + $0xe8] sm:$0xff]
        %v2266 = vld [vmem:[%s774 + $0xf0] sm:$0xff]
        %v2267 = vld [vmem:[%s774 + $0xf8] sm:$0xff]
        %v2268 = vld [vmem:[%s774 + $0x100] sm:$0xff]
        %v2269 = vld [vmem:[%s774 + $0x108] sm:$0xff]
        %v2270 = vld [vmem:[%s774 + $0x110] sm:$0xff]
        %v2271 = vld [vmem:[%s774 + $0x118] sm:$0xff]
        %v2272 = vld [vmem:[%s774 + $0x120] sm:$0xff]
        %v2273 = vld [vmem:[%s774 + $0x128] sm:$0xff]
        %v2274 = vld [vmem:[%s774 + $0x130] sm:$0xff]
        %v2275 = vld [vmem:[%s774 + $0x138] sm:$0xff]
        %v2276 = vld [vmem:[%s774 + $0x140] sm:$0xff]
        %v2277 = vld [vmem:[%s774 + $0x148] sm:$0xff]
        %v2278 = vld [vmem:[%s774 + $0x150] sm:$0xff]
        %v2279 = vld [vmem:[%s774 + $0x158] sm:$0xff]
        %v2280 = vld [vmem:[%s774 + $0x160] sm:$0xff]
        %v2281 = vld [vmem:[%s774 + $0x168] sm:$0xff]
        %v2282 = vld [vmem:[%s774 + $0x170] sm:$0xff]
        %v2283 = vld [vmem:[%s774 + $0x178] sm:$0xff]
        %v2284 = vld [vmem:[%s774 + $0x180] sm:$0xff]
        %v2285 = vld [vmem:[%s774 + $0x188] sm:$0xff]
        %v2286 = vld [vmem:[%s774 + $0x190] sm:$0xff]
        %v2287 = vld [vmem:[%s774 + $0x198] sm:$0xff]
        %v2288 = vld [vmem:[%s774 + $0x1a0] sm:$0xff]
        %v2289 = vld [vmem:[%s774 + $0x1a8] sm:$0xff]
        %v2290 = vld [vmem:[%s774 + $0x1b0] sm:$0xff]
        %v2291 = vld [vmem:[%s774 + $0x1b8] sm:$0xff]
        %v2292 = vld [vmem:[%s774 + $0x1c0] sm:$0xff]
        %v2293 = vld [vmem:[%s774 + $0x1c8] sm:$0xff]
        %v2294 = vld [vmem:[%s774 + $0x1d0] sm:$0xff]
        %v2295 = vld [vmem:[%s774 + $0x1d8] sm:$0xff]
        %v2296 = vld [vmem:[%s774 + $0x1e0] sm:$0xff]
        %v2297 = vld [vmem:[%s774 + $0x1e8] sm:$0xff]
        %v2298 = vld [vmem:[%s774 + $0x1f0] sm:$0xff]
        %v2299 = vld [vmem:[%s774 + $0x1f8] sm:$0xff]
        %v2300 = vld [vmem:[%s7] sm:$0xff]
        %v2301 = vld [vmem:[%s7 + $0x8] sm:$0xff]
        %v2302 = vld [vmem:[%s7 + $0x10] sm:$0xff]
        %v2303 = vld [vmem:[%s7 + $0x18] sm:$0xff]
        %v2304 = vld [vmem:[%s7 + $0x20] sm:$0xff]
        %v2305 = vld [vmem:[%s7 + $0x28] sm:$0xff]
        %v2306 = vld [vmem:[%s7 + $0x30] sm:$0xff]
        %v2307 = vld [vmem:[%s7 + $0x38] sm:$0xff]
        %v2308 = vld [vmem:[%s7 + $0x40] sm:$0xff]
        %v2309 = vld [vmem:[%s7 + $0x48] sm:$0xff]
        %v2310 = vld [vmem:[%s7 + $0x50] sm:$0xff]
        %v2311 = vld [vmem:[%s7 + $0x58] sm:$0xff]
        %v2312 = vld [vmem:[%s7 + $0x60] sm:$0xff]
        %v2313 = vld [vmem:[%s7 + $0x68] sm:$0xff]
        %v2314 = vld [vmem:[%s7 + $0x70] sm:$0xff]
        %v2315 = vld [vmem:[%s7 + $0x78] sm:$0xff]
        %v2316 = vld [vmem:[%s7 + $0x80] sm:$0xff]
        %v2317 = vld [vmem:[%s7 + $0x88] sm:$0xff]
        %v2318 = vld [vmem:[%s7 + $0x90] sm:$0xff]
        %v2319 = vld [vmem:[%s7 + $0x98] sm:$0xff]
        %v2320 = vld [vmem:[%s7 + $0xa0] sm:$0xff]
        %v2321 = vld [vmem:[%s7 + $0xa8] sm:$0xff]
        %v2322 = vld [vmem:[%s7 + $0xb0] sm:$0xff]
        %v2323 = vld [vmem:[%s7 + $0xb8] sm:$0xff]
        %v2324 = vld [vmem:[%s7 + $0xc0] sm:$0xff]
        %v2325 = vld [vmem:[%s7 + $0xc8] sm:$0xff]
        %v2326 = vld [vmem:[%s7 + $0xd0] sm:$0xff]
        %v2327 = vld [vmem:[%s7 + $0xd8] sm:$0xff]
        %v2328 = vld [vmem:[%s7 + $0xe0] sm:$0xff]
        %v2329 = vld [vmem:[%s7 + $0xe8] sm:$0xff]
        %v2330 = vld [vmem:[%s7 + $0xf0] sm:$0xff]
        %v2331 = vld [vmem:[%s7 + $0xf8] sm:$0xff]
        %v2332 = vld [vmem:[%s7 + $0x100] sm:$0xff]
        %v2333 = vld [vmem:[%s7 + $0x108] sm:$0xff]
        %v2334 = vld [vmem:[%s7 + $0x110] sm:$0xff]
        %v2335 = vld [vmem:[%s7 + $0x118] sm:$0xff]
        %v2336 = vld [vmem:[%s7 + $0x120] sm:$0xff]
        %v2337 = vld [vmem:[%s7 + $0x128] sm:$0xff]
        %v2338 = vld [vmem:[%s7 + $0x130] sm:$0xff]
        %v2339 = vld [vmem:[%s7 + $0x138] sm:$0xff]
        %v2340 = vld [vmem:[%s7 + $0x140] sm:$0xff]
        %v2341 = vld [vmem:[%s7 + $0x148] sm:$0xff]
        %v2342 = vld [vmem:[%s7 + $0x150] sm:$0xff]
        %v2343 = vld [vmem:[%s7 + $0x158] sm:$0xff]
        %v2344 = vld [vmem:[%s7 + $0x160] sm:$0xff]
        %v2345 = vld [vmem:[%s7 + $0x168] sm:$0xff]
        %v2346 = vld [vmem:[%s7 + $0x170] sm:$0xff]
        %v2347 = vld [vmem:[%s7 + $0x178] sm:$0xff]
        %v2348 = vld [vmem:[%s7 + $0x180] sm:$0xff]
        %v2349 = vld [vmem:[%s7 + $0x188] sm:$0xff]
        %v2350 = vld [vmem:[%s7 + $0x190] sm:$0xff]
        %v2351 = vld [vmem:[%s7 + $0x198] sm:$0xff]
        %v2352 = vld [vmem:[%s7 + $0x1a0] sm:$0xff]
        %v2353 = vld [vmem:[%s7 + $0x1a8] sm:$0xff]
        %v2354 = vld [vmem:[%s7 + $0x1b0] sm:$0xff]
        %v2355 = vld [vmem:[%s7 + $0x1b8] sm:$0xff]
        %v2356 = vld [vmem:[%s7 + $0x1c0] sm:$0xff]
        %v2357 = vld [vmem:[%s7 + $0x1c8] sm:$0xff]
        %v2358 = vld [vmem:[%s7 + $0x1d0] sm:$0xff]
        %v2359 = vld [vmem:[%s7 + $0x1d8] sm:$0xff]
        %v2360 = vld [vmem:[%s7 + $0x1e0] sm:$0xff]
        %v2361 = vld [vmem:[%s7 + $0x1e8] sm:$0xff]
        %v2362 = vld [vmem:[%s7 + $0x1f0] sm:$0xff]
        %v2363 = vld [vmem:[%s7 + $0x1f8] sm:$0xff]
        %v2364 = vld [vmem:[%s8] sm:$0xff]
        %v2365 = vld [vmem:[%s8 + $0x8] sm:$0xff]
        %v2366 = vld [vmem:[%s8 + $0x10] sm:$0xff]
        %v2367 = vld [vmem:[%s8 + $0x18] sm:$0xff]
        %v2368 = vld [vmem:[%s8 + $0x20] sm:$0xff]
        %v2369 = vld [vmem:[%s8 + $0x28] sm:$0xff]
        %v2370 = vld [vmem:[%s8 + $0x30] sm:$0xff]
        %v2371 = vld [vmem:[%s8 + $0x38] sm:$0xff]
        %v2372 = vld [vmem:[%s8 + $0x40] sm:$0xff]
        %v2373 = vld [vmem:[%s8 + $0x48] sm:$0xff]
        %v2374 = vld [vmem:[%s8 + $0x50] sm:$0xff]
        %v2375 = vld [vmem:[%s8 + $0x58] sm:$0xff]
        %v2376 = vld [vmem:[%s8 + $0x60] sm:$0xff]
        %v2377 = vld [vmem:[%s8 + $0x68] sm:$0xff]
        %v2378 = vld [vmem:[%s8 + $0x70] sm:$0xff]
        %v2379 = vld [vmem:[%s8 + $0x78] sm:$0xff]
        %v2380 = vld [vmem:[%s8 + $0x80] sm:$0xff]
        %v2381 = vld [vmem:[%s8 + $0x88] sm:$0xff]
        %v2382 = vld [vmem:[%s8 + $0x90] sm:$0xff]
        %v2383 = vld [vmem:[%s8 + $0x98] sm:$0xff]
        %v2384 = vld [vmem:[%s8 + $0xa0] sm:$0xff]
        %v2385 = vld [vmem:[%s8 + $0xa8] sm:$0xff]
        %v2386 = vld [vmem:[%s8 + $0xb0] sm:$0xff]
        %v2387 = vld [vmem:[%s8 + $0xb8] sm:$0xff]
        %v2388 = vld [vmem:[%s8 + $0xc0] sm:$0xff]
        %v2389 = vld [vmem:[%s8 + $0xc8] sm:$0xff]
        %v2390 = vld [vmem:[%s8 + $0xd0] sm:$0xff]
        %v2391 = vld [vmem:[%s8 + $0xd8] sm:$0xff]
        %v2392 = vld [vmem:[%s8 + $0xe0] sm:$0xff]
        %v2393 = vld [vmem:[%s8 + $0xe8] sm:$0xff]
        %v2394 = vld [vmem:[%s8 + $0xf0] sm:$0xff]
        %v2395 = vld [vmem:[%s8 + $0xf8] sm:$0xff]
        %2397 = vset.pattern.permute.xlu0 0
        %2398 = vperm.xlu0 %2397, %v2364
        %v2399 = vpop.permute.xlu0 %2398
        %2402 = vset.pattern.permute.xlu0 0
        %2403 = vperm.xlu0 %2402, %v2365
        %v2404 = vpop.permute.xlu0 %2403
        %2407 = vset.pattern.permute.xlu0 0
        %2408 = vperm.xlu0 %2407, %v2366
        %v2409 = vpop.permute.xlu0 %2408
        %2412 = vset.pattern.permute.xlu0 0
        %2413 = vperm.xlu0 %2412, %v2367
        %v2414 = vpop.permute.xlu0 %2413
        %2417 = vset.pattern.permute.xlu0 0
        %2418 = vperm.xlu0 %2417, %v2368
        %v2419 = vpop.permute.xlu0 %2418
        %2422 = vset.pattern.permute.xlu0 0
        %2423 = vperm.xlu0 %2422, %v2369
        %v2424 = vpop.permute.xlu0 %2423
        %2427 = vset.pattern.permute.xlu0 0
        %2428 = vperm.xlu0 %2427, %v2370
        %v2429 = vpop.permute.xlu0 %2428
        %2432 = vset.pattern.permute.xlu0 0
        %2433 = vperm.xlu0 %2432, %v2371
        %v2434 = vpop.permute.xlu0 %2433
        %2437 = vset.pattern.permute.xlu0 0
        %2438 = vperm.xlu0 %2437, %v2372
        %v2439 = vpop.permute.xlu0 %2438
        %2442 = vset.pattern.permute.xlu0 0
        %2443 = vperm.xlu0 %2442, %v2373
        %v2444 = vpop.permute.xlu0 %2443
        %2447 = vset.pattern.permute.xlu0 0
        %2448 = vperm.xlu0 %2447, %v2374
        %v2449 = vpop.permute.xlu0 %2448
        %2452 = vset.pattern.permute.xlu0 0
        %2453 = vperm.xlu0 %2452, %v2375
        %v2454 = vpop.permute.xlu0 %2453
        %2457 = vset.pattern.permute.xlu0 0
        %2458 = vperm.xlu0 %2457, %v2376
        %v2459 = vpop.permute.xlu0 %2458
        %2462 = vset.pattern.permute.xlu0 0
        %2463 = vperm.xlu0 %2462, %v2377
        %v2464 = vpop.permute.xlu0 %2463
        %2467 = vset.pattern.permute.xlu0 0
        %2468 = vperm.xlu0 %2467, %v2378
        %v2469 = vpop.permute.xlu0 %2468
        %2472 = vset.pattern.permute.xlu0 0
        %2473 = vperm.xlu0 %2472, %v2379
        %v2474 = vpop.permute.xlu0 %2473
        %2477 = vset.pattern.permute.xlu0 0
        %2478 = vperm.xlu0 %2477, %v2380
        %v2479 = vpop.permute.xlu0 %2478
        %2482 = vset.pattern.permute.xlu0 0
        %2483 = vperm.xlu0 %2482, %v2381
        %v2484 = vpop.permute.xlu0 %2483
        %2487 = vset.pattern.permute.xlu0 0
        %2488 = vperm.xlu0 %2487, %v2382
        %v2489 = vpop.permute.xlu0 %2488
        %2492 = vset.pattern.permute.xlu0 0
        %2493 = vperm.xlu0 %2492, %v2383
        %v2494 = vpop.permute.xlu0 %2493
        %2497 = vset.pattern.permute.xlu0 0
        %2498 = vperm.xlu0 %2497, %v2384
        %v2499 = vpop.permute.xlu0 %2498
        %2502 = vset.pattern.permute.xlu0 0
        %2503 = vperm.xlu0 %2502, %v2385
        %v2504 = vpop.permute.xlu0 %2503
        %2507 = vset.pattern.permute.xlu0 0
        %2508 = vperm.xlu0 %2507, %v2386
        %v2509 = vpop.permute.xlu0 %2508
        %2512 = vset.pattern.permute.xlu0 0
        %2513 = vperm.xlu0 %2512, %v2387
        %v2514 = vpop.permute.xlu0 %2513
        %2517 = vset.pattern.permute.xlu0 0
        %2518 = vperm.xlu0 %2517, %v2388
        %v2519 = vpop.permute.xlu0 %2518
        %2522 = vset.pattern.permute.xlu0 0
        %2523 = vperm.xlu0 %2522, %v2389
        %v2524 = vpop.permute.xlu0 %2523
        %2527 = vset.pattern.permute.xlu0 0
        %2528 = vperm.xlu0 %2527, %v2390
        %v2529 = vpop.permute.xlu0 %2528
        %2532 = vset.pattern.permute.xlu0 0
        %2533 = vperm.xlu0 %2532, %v2391
        %v2534 = vpop.permute.xlu0 %2533
        %2537 = vset.pattern.permute.xlu0 0
        %2538 = vperm.xlu0 %2537, %v2392
        %v2539 = vpop.permute.xlu0 %2538
        %2542 = vset.pattern.permute.xlu0 0
        %2543 = vperm.xlu0 %2542, %v2393
        %v2544 = vpop.permute.xlu0 %2543
        %2547 = vset.pattern.permute.xlu0 0
        %2548 = vperm.xlu0 %2547, %v2394
        %v2549 = vpop.permute.xlu0 %2548
        %2552 = vset.pattern.permute.xlu0 0
        %2553 = vperm.xlu0 %2552, %v2395
        %v2554 = vpop.permute.xlu0 %2553
        %2556 = vmatpush.msra.mxu0 %v2266
        %2557 = vmatpush.msra.mxu0 %v2264
        %2558 = vmatpush.msra.mxu0 %v2262
        %2559 = vmatpush.msra.mxu0 %v2260
        %2560 = vmatpush.msra.mxu0 %v2258
        %2561 = vmatpush.msra.mxu0 %v2256
        %2562 = vmatpush.msra.mxu0 %v2254
        %2563 = vmatpush.msra.mxu0 %v2252
        %2564 = vmatpush.msra.mxu0 %v2250
        %2565 = vmatpush.msra.mxu0 %v2248
        %2566 = vmatpush.msra.mxu0 %v2246
        %2567 = vmatpush.msra.mxu0 %v2244
        %2568 = vmatpush.msra.mxu0 %v2242
        %2569 = vmatpush.msra.mxu0 %v2240
        %2570 = vmatpush.msra.mxu0 %v2238
        %2571 = vmatpush.msra.mxu0 %v2236
        %2572 = vmatmul.f32.gmra.mxu0 %v2300
        %v2573 = vpop.f32.mrf.mxu0
        %v2574 = vadd.f32 %v2399, %v2573
        %2575 = vmatmul.f32.gmra.mxu0 %v2302
        %v2576 = vpop.f32.mrf.mxu0
        %v2577 = vadd.f32 %v2404, %v2576
        %2578 = vmatmul.f32.gmra.mxu0 %v2304
        %v2579 = vpop.f32.mrf.mxu0
        %v2580 = vadd.f32 %v2409, %v2579
        %2581 = vmatmul.f32.gmra.mxu0 %v2306
        %v2582 = vpop.f32.mrf.mxu0
        %v2583 = vadd.f32 %v2414, %v2582
        %2584 = vmatmul.f32.gmra.mxu0 %v2308
        %v2585 = vpop.f32.mrf.mxu0
        %v2586 = vadd.f32 %v2419, %v2585
        %2587 = vmatmul.f32.gmra.mxu0 %v2310
        %v2588 = vpop.f32.mrf.mxu0
        %v2589 = vadd.f32 %v2424, %v2588
        %2590 = vmatmul.f32.gmra.mxu0 %v2312
        %v2591 = vpop.f32.mrf.mxu0
        %v2592 = vadd.f32 %v2429, %v2591
        %2593 = vmatmul.f32.gmra.mxu0 %v2314
        %v2594 = vpop.f32.mrf.mxu0
        %v2595 = vadd.f32 %v2434, %v2594
        %2596 = vmatmul.f32.gmra.mxu0 %v2316
        %v2597 = vpop.f32.mrf.mxu0
        %v2598 = vadd.f32 %v2439, %v2597
        %2599 = vmatmul.f32.gmra.mxu0 %v2318
        %v2600 = vpop.f32.mrf.mxu0
        %v2601 = vadd.f32 %v2444, %v2600
        %2602 = vmatmul.f32.gmra.mxu0 %v2320
        %v2603 = vpop.f32.mrf.mxu0
        %v2604 = vadd.f32 %v2449, %v2603
        %2605 = vmatmul.f32.gmra.mxu0 %v2322
        %v2606 = vpop.f32.mrf.mxu0
        %v2607 = vadd.f32 %v2454, %v2606
        %2608 = vmatmul.f32.gmra.mxu0 %v2324
        %v2609 = vpop.f32.mrf.mxu0
        %v2610 = vadd.f32 %v2459, %v2609
        %2611 = vmatmul.f32.gmra.mxu0 %v2326
        %v2612 = vpop.f32.mrf.mxu0
        %v2613 = vadd.f32 %v2464, %v2612
        %2614 = vmatmul.f32.gmra.mxu0 %v2328
        %v2615 = vpop.f32.mrf.mxu0
        %v2616 = vadd.f32 %v2469, %v2615
        %2617 = vmatmul.f32.gmra.mxu0 %v2330
        %v2618 = vpop.f32.mrf.mxu0
        %v2619 = vadd.f32 %v2474, %v2618
        %2620 = vmatmul.f32.gmra.mxu0 %v2332
        %v2621 = vpop.f32.mrf.mxu0
        %v2622 = vadd.f32 %v2479, %v2621
        %2623 = vmatmul.f32.gmra.mxu0 %v2334
        %v2624 = vpop.f32.mrf.mxu0
        %v2625 = vadd.f32 %v2484, %v2624
        %2626 = vmatmul.f32.gmra.mxu0 %v2336
        %v2627 = vpop.f32.mrf.mxu0
        %v2628 = vadd.f32 %v2489, %v2627
        %2629 = vmatmul.f32.gmra.mxu0 %v2338
        %v2630 = vpop.f32.mrf.mxu0
        %v2631 = vadd.f32 %v2494, %v2630
        %2632 = vmatmul.f32.gmra.mxu0 %v2340
        %v2633 = vpop.f32.mrf.mxu0
        %v2634 = vadd.f32 %v2499, %v2633
        %2635 = vmatmul.f32.gmra.mxu0 %v2342
        %v2636 = vpop.f32.mrf.mxu0
        %v2637 = vadd.f32 %v2504, %v2636
        %2638 = vmatmul.f32.gmra.mxu0 %v2344
        %v2639 = vpop.f32.mrf.mxu0
        %v2640 = vadd.f32 %v2509, %v2639
        %2641 = vmatmul.f32.gmra.mxu0 %v2346
        %v2642 = vpop.f32.mrf.mxu0
        %v2643 = vadd.f32 %v2514, %v2642
        %2644 = vmatmul.f32.gmra.mxu0 %v2348
        %v2645 = vpop.f32.mrf.mxu0
        %v2646 = vadd.f32 %v2519, %v2645
        %2647 = vmatmul.f32.gmra.mxu0 %v2350
        %v2648 = vpop.f32.mrf.mxu0
        %v2649 = vadd.f32 %v2524, %v2648
        %2650 = vmatmul.f32.gmra.mxu0 %v2352
        %v2651 = vpop.f32.mrf.mxu0
        %v2652 = vadd.f32 %v2529, %v2651
        %2653 = vmatmul.f32.gmra.mxu0 %v2354
        %v2654 = vpop.f32.mrf.mxu0
        %v2655 = vadd.f32 %v2534, %v2654
        %2656 = vmatmul.f32.gmra.mxu0 %v2356
        %v2657 = vpop.f32.mrf.mxu0
        %v2658 = vadd.f32 %v2539, %v2657
        %2659 = vmatmul.f32.gmra.mxu0 %v2358
        %v2660 = vpop.f32.mrf.mxu0
        %v2661 = vadd.f32 %v2544, %v2660
        %2662 = vmatmul.f32.gmra.mxu0 %v2360
        %v2663 = vpop.f32.mrf.mxu0
        %v2664 = vadd.f32 %v2549, %v2663
        %2665 = vmatmul.f32.gmra.mxu0 %v2362
        %v2666 = vpop.f32.mrf.mxu0
        %v2667 = vadd.f32 %v2554, %v2666
        %2668 = vdwg.mxu0
        %2669 = vmatpush.msra.mxu0 %v2298
        %2670 = vmatpush.msra.mxu0 %v2296
        %2671 = vmatpush.msra.mxu0 %v2294
        %2672 = vmatpush.msra.mxu0 %v2292
        %2673 = vmatpush.msra.mxu0 %v2290
        %2674 = vmatpush.msra.mxu0 %v2288
        %2675 = vmatpush.msra.mxu0 %v2286
        %2676 = vmatpush.msra.mxu0 %v2284
        %2677 = vmatpush.msra.mxu0 %v2282
        %2678 = vmatpush.msra.mxu0 %v2280
        %2679 = vmatpush.msra.mxu0 %v2278
        %2680 = vmatpush.msra.mxu0 %v2276
        %2681 = vmatpush.msra.mxu0 %v2274
        %2682 = vmatpush.msra.mxu0 %v2272
        %2683 = vmatpush.msra.mxu0 %v2270
        %2684 = vmatpush.msra.mxu0 %v2268
        %2685 = vmatmul.f32.gmra.mxu0 %v2301
        %v2686 = vpop.f32.mrf.mxu0
        %v2687 = vadd.f32 %v2574, %v2686
        %2688 = vmatmul.f32.gmra.mxu0 %v2303
        %v2689 = vpop.f32.mrf.mxu0
        %v2690 = vadd.f32 %v2577, %v2689
        %2691 = vmatmul.f32.gmra.mxu0 %v2305
        %v2692 = vpop.f32.mrf.mxu0
        %v2693 = vadd.f32 %v2580, %v2692
        %2694 = vmatmul.f32.gmra.mxu0 %v2307
        %v2695 = vpop.f32.mrf.mxu0
        %v2696 = vadd.f32 %v2583, %v2695
        %2697 = vmatmul.f32.gmra.mxu0 %v2309
        %v2698 = vpop.f32.mrf.mxu0
        %v2699 = vadd.f32 %v2586, %v2698
        %2700 = vmatmul.f32.gmra.mxu0 %v2311
        %v2701 = vpop.f32.mrf.mxu0
        %v2702 = vadd.f32 %v2589, %v2701
        %2703 = vmatmul.f32.gmra.mxu0 %v2313
        %v2704 = vpop.f32.mrf.mxu0
        %v2705 = vadd.f32 %v2592, %v2704
        %2706 = vmatmul.f32.gmra.mxu0 %v2315
        %v2707 = vpop.f32.mrf.mxu0
        %v2708 = vadd.f32 %v2595, %v2707
        %2709 = vmatmul.f32.gmra.mxu0 %v2317
        %v2710 = vpop.f32.mrf.mxu0
        %v2711 = vadd.f32 %v2598, %v2710
        %2712 = vmatmul.f32.gmra.mxu0 %v2319
        %v2713 = vpop.f32.mrf.mxu0
        %v2714 = vadd.f32 %v2601, %v2713
        %2715 = vmatmul.f32.gmra.mxu0 %v2321
        %v2716 = vpop.f32.mrf.mxu0
        %v2717 = vadd.f32 %v2604, %v2716
        %2718 = vmatmul.f32.gmra.mxu0 %v2323
        %v2719 = vpop.f32.mrf.mxu0
        %v2720 = vadd.f32 %v2607, %v2719
        %2721 = vmatmul.f32.gmra.mxu0 %v2325
        %v2722 = vpop.f32.mrf.mxu0
        %v2723 = vadd.f32 %v2610, %v2722
        %2724 = vmatmul.f32.gmra.mxu0 %v2327
        %v2725 = vpop.f32.mrf.mxu0
        %v2726 = vadd.f32 %v2613, %v2725
        %2727 = vmatmul.f32.gmra.mxu0 %v2329
        %v2728 = vpop.f32.mrf.mxu0
        %v2729 = vadd.f32 %v2616, %v2728
        %2730 = vmatmul.f32.gmra.mxu0 %v2331
        %v2731 = vpop.f32.mrf.mxu0
        %v2732 = vadd.f32 %v2619, %v2731
        %2733 = vmatmul.f32.gmra.mxu0 %v2333
        %v2734 = vpop.f32.mrf.mxu0
        %v2735 = vadd.f32 %v2622, %v2734
        %2736 = vmatmul.f32.gmra.mxu0 %v2335
        %v2737 = vpop.f32.mrf.mxu0
        %v2738 = vadd.f32 %v2625, %v2737
        %2739 = vmatmul.f32.gmra.mxu0 %v2337
        %v2740 = vpop.f32.mrf.mxu0
        %v2741 = vadd.f32 %v2628, %v2740
        %2742 = vmatmul.f32.gmra.mxu0 %v2339
        %v2743 = vpop.f32.mrf.mxu0
        %v2744 = vadd.f32 %v2631, %v2743
        %2745 = vmatmul.f32.gmra.mxu0 %v2341
        %v2746 = vpop.f32.mrf.mxu0
        %v2747 = vadd.f32 %v2634, %v2746
        %2748 = vmatmul.f32.gmra.mxu0 %v2343
        %v2749 = vpop.f32.mrf.mxu0
        %v2750 = vadd.f32 %v2637, %v2749
        %2751 = vmatmul.f32.gmra.mxu0 %v2345
        %v2752 = vpop.f32.mrf.mxu0
        %v2753 = vadd.f32 %v2640, %v2752
        %2754 = vmatmul.f32.gmra.mxu0 %v2347
        %v2755 = vpop.f32.mrf.mxu0
        %v2756 = vadd.f32 %v2643, %v2755
        %2757 = vmatmul.f32.gmra.mxu0 %v2349
        %v2758 = vpop.f32.mrf.mxu0
        %v2759 = vadd.f32 %v2646, %v2758
        %2760 = vmatmul.f32.gmra.mxu0 %v2351
        %v2761 = vpop.f32.mrf.mxu0
        %v2762 = vadd.f32 %v2649, %v2761
        %2763 = vmatmul.f32.gmra.mxu0 %v2353
        %v2764 = vpop.f32.mrf.mxu0
        %v2765 = vadd.f32 %v2652, %v2764
        %2766 = vmatmul.f32.gmra.mxu0 %v2355
        %v2767 = vpop.f32.mrf.mxu0
        %v2768 = vadd.f32 %v2655, %v2767
        %2769 = vmatmul.f32.gmra.mxu0 %v2357
        %v2770 = vpop.f32.mrf.mxu0
        %v2771 = vadd.f32 %v2658, %v2770
        %2772 = vmatmul.f32.gmra.mxu0 %v2359
        %v2773 = vpop.f32.mrf.mxu0
        %v2774 = vadd.f32 %v2661, %v2773
        %2775 = vmatmul.f32.gmra.mxu0 %v2361
        %v2776 = vpop.f32.mrf.mxu0
        %v2777 = vadd.f32 %v2664, %v2776
        %2778 = vmatmul.f32.gmra.mxu0 %v2363
        %v2779 = vpop.f32.mrf.mxu0
        %v2780 = vadd.f32 %v2667, %v2779
        %2781 = vdwg.mxu0
        %2782 = vmatpush.msra.mxu0 %v2267
        %2783 = vmatpush.msra.mxu0 %v2265
        %2784 = vmatpush.msra.mxu0 %v2263
        %2785 = vmatpush.msra.mxu0 %v2261
        %2786 = vmatpush.msra.mxu0 %v2259
        %2787 = vmatpush.msra.mxu0 %v2257
        %2788 = vmatpush.msra.mxu0 %v2255
        %2789 = vmatpush.msra.mxu0 %v2253
        %2790 = vmatpush.msra.mxu0 %v2251
        %2791 = vmatpush.msra.mxu0 %v2249
        %2792 = vmatpush.msra.mxu0 %v2247
        %2793 = vmatpush.msra.mxu0 %v2245
        %2794 = vmatpush.msra.mxu0 %v2243
        %2795 = vmatpush.msra.mxu0 %v2241
        %2796 = vmatpush.msra.mxu0 %v2239
        %2797 = vmatpush.msra.mxu0 %v2237
        %2798 = vmatmul.f32.gmra.mxu0 %v2300
        %v2799 = vpop.f32.mrf.mxu0
        %v2800 = vadd.f32 %v2399, %v2799
        %2801 = vmatmul.f32.gmra.mxu0 %v2302
        %v2802 = vpop.f32.mrf.mxu0
        %v2803 = vadd.f32 %v2404, %v2802
        %2804 = vmatmul.f32.gmra.mxu0 %v2304
        %v2805 = vpop.f32.mrf.mxu0
        %v2806 = vadd.f32 %v2409, %v2805
        %2807 = vmatmul.f32.gmra.mxu0 %v2306
        %v2808 = vpop.f32.mrf.mxu0
        %v2809 = vadd.f32 %v2414, %v2808
        %2810 = vmatmul.f32.gmra.mxu0 %v2308
        %v2811 = vpop.f32.mrf.mxu0
        %v2812 = vadd.f32 %v2419, %v2811
        %2813 = vmatmul.f32.gmra.mxu0 %v2310
        %v2814 = vpop.f32.mrf.mxu0
        %v2815 = vadd.f32 %v2424, %v2814
        %2816 = vmatmul.f32.gmra.mxu0 %v2312
        %v2817 = vpop.f32.mrf.mxu0
        %v2818 = vadd.f32 %v2429, %v2817
        %2819 = vmatmul.f32.gmra.mxu0 %v2314
        %v2820 = vpop.f32.mrf.mxu0
        %v2821 = vadd.f32 %v2434, %v2820
        %2822 = vmatmul.f32.gmra.mxu0 %v2316
        %v2823 = vpop.f32.mrf.mxu0
        %v2824 = vadd.f32 %v2439, %v2823
        %2825 = vmatmul.f32.gmra.mxu0 %v2318
        %v2826 = vpop.f32.mrf.mxu0
        %v2827 = vadd.f32 %v2444, %v2826
        %2828 = vmatmul.f32.gmra.mxu0 %v2320
        %v2829 = vpop.f32.mrf.mxu0
        %v2830 = vadd.f32 %v2449, %v2829
        %2831 = vmatmul.f32.gmra.mxu0 %v2322
        %v2832 = vpop.f32.mrf.mxu0
        %v2833 = vadd.f32 %v2454, %v2832
        %2834 = vmatmul.f32.gmra.mxu0 %v2324
        %v2835 = vpop.f32.mrf.mxu0
        %v2836 = vadd.f32 %v2459, %v2835
        %2837 = vmatmul.f32.gmra.mxu0 %v2326
        %v2838 = vpop.f32.mrf.mxu0
        %v2839 = vadd.f32 %v2464, %v2838
        %2840 = vmatmul.f32.gmra.mxu0 %v2328
        %v2841 = vpop.f32.mrf.mxu0
        %v2842 = vadd.f32 %v2469, %v2841
        %2843 = vmatmul.f32.gmra.mxu0 %v2330
        %v2844 = vpop.f32.mrf.mxu0
        %v2845 = vadd.f32 %v2474, %v2844
        %2846 = vmatmul.f32.gmra.mxu0 %v2332
        %v2847 = vpop.f32.mrf.mxu0
        %v2848 = vadd.f32 %v2479, %v2847
        %2849 = vmatmul.f32.gmra.mxu0 %v2334
        %v2850 = vpop.f32.mrf.mxu0
        %v2851 = vadd.f32 %v2484, %v2850
        %2852 = vmatmul.f32.gmra.mxu0 %v2336
        %v2853 = vpop.f32.mrf.mxu0
        %v2854 = vadd.f32 %v2489, %v2853
        %2855 = vmatmul.f32.gmra.mxu0 %v2338
        %v2856 = vpop.f32.mrf.mxu0
        %v2857 = vadd.f32 %v2494, %v2856
        %2858 = vmatmul.f32.gmra.mxu0 %v2340
        %v2859 = vpop.f32.mrf.mxu0
        %v2860 = vadd.f32 %v2499, %v2859
        %2861 = vmatmul.f32.gmra.mxu0 %v2342
        %v2862 = vpop.f32.mrf.mxu0
        %v2863 = vadd.f32 %v2504, %v2862
        %2864 = vmatmul.f32.gmra.mxu0 %v2344
        %v2865 = vpop.f32.mrf.mxu0
        %v2866 = vadd.f32 %v2509, %v2865
        %2867 = vmatmul.f32.gmra.mxu0 %v2346
        %v2868 = vpop.f32.mrf.mxu0
        %v2869 = vadd.f32 %v2514, %v2868
        %2870 = vmatmul.f32.gmra.mxu0 %v2348
        %v2871 = vpop.f32.mrf.mxu0
        %v2872 = vadd.f32 %v2519, %v2871
        %2873 = vmatmul.f32.gmra.mxu0 %v2350
        %v2874 = vpop.f32.mrf.mxu0
        %v2875 = vadd.f32 %v2524, %v2874
        %2876 = vmatmul.f32.gmra.mxu0 %v2352
        %v2877 = vpop.f32.mrf.mxu0
        %v2878 = vadd.f32 %v2529, %v2877
        %2879 = vmatmul.f32.gmra.mxu0 %v2354
        %v2880 = vpop.f32.mrf.mxu0
        %v2881 = vadd.f32 %v2534, %v2880
        %2882 = vmatmul.f32.gmra.mxu0 %v2356
        %v2883 = vpop.f32.mrf.mxu0
        %v2884 = vadd.f32 %v2539, %v2883
        %2885 = vmatmul.f32.gmra.mxu0 %v2358
        %v2886 = vpop.f32.mrf.mxu0
        %v2887 = vadd.f32 %v2544, %v2886
        %2888 = vmatmul.f32.gmra.mxu0 %v2360
        %v2889 = vpop.f32.mrf.mxu0
        %v2890 = vadd.f32 %v2549, %v2889
        %2891 = vmatmul.f32.gmra.mxu0 %v2362
        %v2892 = vpop.f32.mrf.mxu0
        %v2893 = vadd.f32 %v2554, %v2892
        %2894 = vdwg.mxu0
        %2895 = vmatpush.msra.mxu0 %v2299
        %2896 = vmatpush.msra.mxu0 %v2297
        %2897 = vmatpush.msra.mxu0 %v2295
        %2898 = vmatpush.msra.mxu0 %v2293
        %2899 = vmatpush.msra.mxu0 %v2291
        %2900 = vmatpush.msra.mxu0 %v2289
        %2901 = vmatpush.msra.mxu0 %v2287
        %2902 = vmatpush.msra.mxu0 %v2285
        %2903 = vmatpush.msra.mxu0 %v2283
        %2904 = vmatpush.msra.mxu0 %v2281
        %2905 = vmatpush.msra.mxu0 %v2279
        %2906 = vmatpush.msra.mxu0 %v2277
        %2907 = vmatpush.msra.mxu0 %v2275
        %2908 = vmatpush.msra.mxu0 %v2273
        %2909 = vmatpush.msra.mxu0 %v2271
        %2910 = vmatpush.msra.mxu0 %v2269
        %2911 = vmatmul.f32.gmra.mxu0 %v2301
        %v2912 = vpop.f32.mrf.mxu0
        %v2913 = vadd.f32 %v2800, %v2912
        %2914 = vmatmul.f32.gmra.mxu0 %v2303
        %v2915 = vpop.f32.mrf.mxu0
        %v2916 = vadd.f32 %v2803, %v2915
        %2917 = vmatmul.f32.gmra.mxu0 %v2305
        %v2918 = vpop.f32.mrf.mxu0
        %v2919 = vadd.f32 %v2806, %v2918
        %2920 = vmatmul.f32.gmra.mxu0 %v2307
        %v2921 = vpop.f32.mrf.mxu0
        %v2922 = vadd.f32 %v2809, %v2921
        %2923 = vmatmul.f32.gmra.mxu0 %v2309
        %v2924 = vpop.f32.mrf.mxu0
        %v2925 = vadd.f32 %v2812, %v2924
        %2926 = vmatmul.f32.gmra.mxu0 %v2311
        %v2927 = vpop.f32.mrf.mxu0
        %v2928 = vadd.f32 %v2815, %v2927
        %2929 = vmatmul.f32.gmra.mxu0 %v2313
        %v2930 = vpop.f32.mrf.mxu0
        %v2931 = vadd.f32 %v2818, %v2930
        %2932 = vmatmul.f32.gmra.mxu0 %v2315
        %v2933 = vpop.f32.mrf.mxu0
        %v2934 = vadd.f32 %v2821, %v2933
        %2935 = vmatmul.f32.gmra.mxu0 %v2317
        %v2936 = vpop.f32.mrf.mxu0
        %v2937 = vadd.f32 %v2824, %v2936
        %2938 = vmatmul.f32.gmra.mxu0 %v2319
        %v2939 = vpop.f32.mrf.mxu0
        %v2940 = vadd.f32 %v2827, %v2939
        %2941 = vmatmul.f32.gmra.mxu0 %v2321
        %v2942 = vpop.f32.mrf.mxu0
        %v2943 = vadd.f32 %v2830, %v2942
        %2944 = vmatmul.f32.gmra.mxu0 %v2323
        %v2945 = vpop.f32.mrf.mxu0
        %v2946 = vadd.f32 %v2833, %v2945
        %2947 = vmatmul.f32.gmra.mxu0 %v2325
        %v2948 = vpop.f32.mrf.mxu0
        %v2949 = vadd.f32 %v2836, %v2948
        %2950 = vmatmul.f32.gmra.mxu0 %v2327
        %v2951 = vpop.f32.mrf.mxu0
        %v2952 = vadd.f32 %v2839, %v2951
        %2953 = vmatmul.f32.gmra.mxu0 %v2329
        %v2954 = vpop.f32.mrf.mxu0
        %v2955 = vadd.f32 %v2842, %v2954
        %2956 = vmatmul.f32.gmra.mxu0 %v2331
        %v2957 = vpop.f32.mrf.mxu0
        %v2958 = vadd.f32 %v2845, %v2957
        %2959 = vmatmul.f32.gmra.mxu0 %v2333
        %v2960 = vpop.f32.mrf.mxu0
        %v2961 = vadd.f32 %v2848, %v2960
        %2962 = vmatmul.f32.gmra.mxu0 %v2335
        %v2963 = vpop.f32.mrf.mxu0
        %v2964 = vadd.f32 %v2851, %v2963
        %2965 = vmatmul.f32.gmra.mxu0 %v2337
        %v2966 = vpop.f32.mrf.mxu0
        %v2967 = vadd.f32 %v2854, %v2966
        %2968 = vmatmul.f32.gmra.mxu0 %v2339
        %v2969 = vpop.f32.mrf.mxu0
        %v2970 = vadd.f32 %v2857, %v2969
        %2971 = vmatmul.f32.gmra.mxu0 %v2341
        %v2972 = vpop.f32.mrf.mxu0
        %v2973 = vadd.f32 %v2860, %v2972
        %2974 = vmatmul.f32.gmra.mxu0 %v2343
        %v2975 = vpop.f32.mrf.mxu0
        %v2976 = vadd.f32 %v2863, %v2975
        %2977 = vmatmul.f32.gmra.mxu0 %v2345
        %v2978 = vpop.f32.mrf.mxu0
        %v2979 = vadd.f32 %v2866, %v2978
        %2980 = vmatmul.f32.gmra.mxu0 %v2347
        %v2981 = vpop.f32.mrf.mxu0
        %v2982 = vadd.f32 %v2869, %v2981
        %2983 = vmatmul.f32.gmra.mxu0 %v2349
        %v2984 = vpop.f32.mrf.mxu0
        %v2985 = vadd.f32 %v2872, %v2984
        %2986 = vmatmul.f32.gmra.mxu0 %v2351
        %v2987 = vpop.f32.mrf.mxu0
        %v2988 = vadd.f32 %v2875, %v2987
        %2989 = vmatmul.f32.gmra.mxu0 %v2353
        %v2990 = vpop.f32.mrf.mxu0
        %v2991 = vadd.f32 %v2878, %v2990
        %2992 = vmatmul.f32.gmra.mxu0 %v2355
        %v2993 = vpop.f32.mrf.mxu0
        %v2994 = vadd.f32 %v2881, %v2993
        %2995 = vmatmul.f32.gmra.mxu0 %v2357
        %v2996 = vpop.f32.mrf.mxu0
        %v2997 = vadd.f32 %v2884, %v2996
        %2998 = vmatmul.f32.gmra.mxu0 %v2359
        %v2999 = vpop.f32.mrf.mxu0
        %v3000 = vadd.f32 %v2887, %v2999
        %3001 = vmatmul.f32.gmra.mxu0 %v2361
        %v3002 = vpop.f32.mrf.mxu0
        %v3003 = vadd.f32 %v2890, %v3002
        %3004 = vmatmul.f32.gmra.mxu0 %v2363
        %v3005 = vpop.f32.mrf.mxu0
        %v3006 = vadd.f32 %v2893, %v3005
        %3007 = vdwg.mxu0
        %3008 = vst [vmem:[%s781] sm:$0xff] %v2687
        %3009 = vst [vmem:[%s781 + $0x8] sm:$0xff] %v2913
        %3010 = vst [vmem:[%s781 + $0x10] sm:$0xff] %v2690
        %3011 = vst [vmem:[%s781 + $0x18] sm:$0xff] %v2916
        %3012 = vst [vmem:[%s781 + $0x20] sm:$0xff] %v2693
        %3013 = vst [vmem:[%s781 + $0x28] sm:$0xff] %v2919
        %3014 = vst [vmem:[%s781 + $0x30] sm:$0xff] %v2696
        %3015 = vst [vmem:[%s781 + $0x38] sm:$0xff] %v2922
        %3016 = vst [vmem:[%s781 + $0x40] sm:$0xff] %v2699
        %3017 = vst [vmem:[%s781 + $0x48] sm:$0xff] %v2925
        %3018 = vst [vmem:[%s781 + $0x50] sm:$0xff] %v2702
        %3019 = vst [vmem:[%s781 + $0x58] sm:$0xff] %v2928
        %3020 = vst [vmem:[%s781 + $0x60] sm:$0xff] %v2705
        %3021 = vst [vmem:[%s781 + $0x68] sm:$0xff] %v2931
        %3022 = vst [vmem:[%s781 + $0x70] sm:$0xff] %v2708
        %3023 = vst [vmem:[%s781 + $0x78] sm:$0xff] %v2934
        %3024 = vst [vmem:[%s781 + $0x80] sm:$0xff] %v2711
        %3025 = vst [vmem:[%s781 + $0x88] sm:$0xff] %v2937
        %3026 = vst [vmem:[%s781 + $0x90] sm:$0xff] %v2714
        %3027 = vst [vmem:[%s781 + $0x98] sm:$0xff] %v2940
        %3028 = vst [vmem:[%s781 + $0xa0] sm:$0xff] %v2717
        %3029 = vst [vmem:[%s781 + $0xa8] sm:$0xff] %v2943
        %3030 = vst [vmem:[%s781 + $0xb0] sm:$0xff] %v2720
        %3031 = vst [vmem:[%s781 + $0xb8] sm:$0xff] %v2946
        %3032 = vst [vmem:[%s781 + $0xc0] sm:$0xff] %v2723
        %3033 = vst [vmem:[%s781 + $0xc8] sm:$0xff] %v2949
        %3034 = vst [vmem:[%s781 + $0xd0] sm:$0xff] %v2726
        %3035 = vst [vmem:[%s781 + $0xd8] sm:$0xff] %v2952
        %3036 = vst [vmem:[%s781 + $0xe0] sm:$0xff] %v2729
        %3037 = vst [vmem:[%s781 + $0xe8] sm:$0xff] %v2955
        %3038 = vst [vmem:[%s781 + $0xf0] sm:$0xff] %v2732
        %3039 = vst [vmem:[%s781 + $0xf8] sm:$0xff] %v2958
        %3040 = vst [vmem:[%s781 + $0x100] sm:$0xff] %v2735
        %3041 = vst [vmem:[%s781 + $0x108] sm:$0xff] %v2961
        %3042 = vst [vmem:[%s781 + $0x110] sm:$0xff] %v2738
        %3043 = vst [vmem:[%s781 + $0x118] sm:$0xff] %v2964
        %3044 = vst [vmem:[%s781 + $0x120] sm:$0xff] %v2741
        %3045 = vst [vmem:[%s781 + $0x128] sm:$0xff] %v2967
        %3046 = vst [vmem:[%s781 + $0x130] sm:$0xff] %v2744
        %3047 = vst [vmem:[%s781 + $0x138] sm:$0xff] %v2970
        %3048 = vst [vmem:[%s781 + $0x140] sm:$0xff] %v2747
        %3049 = vst [vmem:[%s781 + $0x148] sm:$0xff] %v2973
        %3050 = vst [vmem:[%s781 + $0x150] sm:$0xff] %v2750
        %3051 = vst [vmem:[%s781 + $0x158] sm:$0xff] %v2976
        %3052 = vst [vmem:[%s781 + $0x160] sm:$0xff] %v2753
        %3053 = vst [vmem:[%s781 + $0x168] sm:$0xff] %v2979
        %3054 = vst [vmem:[%s781 + $0x170] sm:$0xff] %v2756
        %3055 = vst [vmem:[%s781 + $0x178] sm:$0xff] %v2982
        %3056 = vst [vmem:[%s781 + $0x180] sm:$0xff] %v2759
        %3057 = vst [vmem:[%s781 + $0x188] sm:$0xff] %v2985
        %3058 = vst [vmem:[%s781 + $0x190] sm:$0xff] %v2762
        %3059 = vst [vmem:[%s781 + $0x198] sm:$0xff] %v2988
        %3060 = vst [vmem:[%s781 + $0x1a0] sm:$0xff] %v2765
        %3061 = vst [vmem:[%s781 + $0x1a8] sm:$0xff] %v2991
        %3062 = vst [vmem:[%s781 + $0x1b0] sm:$0xff] %v2768
        %3063 = vst [vmem:[%s781 + $0x1b8] sm:$0xff] %v2994
        %3064 = vst [vmem:[%s781 + $0x1c0] sm:$0xff] %v2771
        %3065 = vst [vmem:[%s781 + $0x1c8] sm:$0xff] %v2997
        %3066 = vst [vmem:[%s781 + $0x1d0] sm:$0xff] %v2774
        %3067 = vst [vmem:[%s781 + $0x1d8] sm:$0xff] %v3000
        %3068 = vst [vmem:[%s781 + $0x1e0] sm:$0xff] %v2777
        %3069 = vst [vmem:[%s781 + $0x1e8] sm:$0xff] %v3003
        %3070 = vst [vmem:[%s781 + $0x1f0] sm:$0xff] %v2780
        %3071 = vst [vmem:[%s781 + $0x1f8] sm:$0xff] %v3006
        %v3072 = vmul.f32 %v2687, 0.2
        %v3073 = vmul.f32 %v2913, 0.2
        %v3074 = vmul.f32 %v2690, 0.2
        %v3075 = vmul.f32 %v2916, 0.2
        %v3076 = vmul.f32 %v2693, 0.2
        %v3077 = vmul.f32 %v2919, 0.2
        %v3078 = vmul.f32 %v2696, 0.2
        %v3079 = vmul.f32 %v2922, 0.2
        %v3080 = vmul.f32 %v2699, 0.2
        %v3081 = vmul.f32 %v2925, 0.2
        %v3082 = vmul.f32 %v2702, 0.2
        %v3083 = vmul.f32 %v2928, 0.2
        %v3084 = vmul.f32 %v2705, 0.2
        %v3085 = vmul.f32 %v2931, 0.2
        %v3086 = vmul.f32 %v2708, 0.2
        %v3087 = vmul.f32 %v2934, 0.2
        %v3088 = vmul.f32 %v2711, 0.2
        %v3089 = vmul.f32 %v2937, 0.2
        %v3090 = vmul.f32 %v2714, 0.2
        %v3091 = vmul.f32 %v2940, 0.2
        %v3092 = vmul.f32 %v2717, 0.2
        %v3093 = vmul.f32 %v2943, 0.2
        %v3094 = vmul.f32 %v2720, 0.2
        %v3095 = vmul.f32 %v2946, 0.2
        %v3096 = vmul.f32 %v2723, 0.2
        %v3097 = vmul.f32 %v2949, 0.2
        %v3098 = vmul.f32 %v2726, 0.2
        %v3099 = vmul.f32 %v2952, 0.2
        %v3100 = vmul.f32 %v2729, 0.2
        %v3101 = vmul.f32 %v2955, 0.2
        %v3102 = vmul.f32 %v2732, 0.2
        %v3103 = vmul.f32 %v2958, 0.2
        %v3104 = vmul.f32 %v2735, 0.2
        %v3105 = vmul.f32 %v2961, 0.2
        %v3106 = vmul.f32 %v2738, 0.2
        %v3107 = vmul.f32 %v2964, 0.2
        %v3108 = vmul.f32 %v2741, 0.2
        %v3109 = vmul.f32 %v2967, 0.2
        %v3110 = vmul.f32 %v2744, 0.2
        %v3111 = vmul.f32 %v2970, 0.2
        %v3112 = vmul.f32 %v2747, 0.2
        %v3113 = vmul.f32 %v2973, 0.2
        %v3114 = vmul.f32 %v2750, 0.2
        %v3115 = vmul.f32 %v2976, 0.2
        %v3116 = vmul.f32 %v2753, 0.2
        %v3117 = vmul.f32 %v2979, 0.2
        %v3118 = vmul.f32 %v2756, 0.2
        %v3119 = vmul.f32 %v2982, 0.2
        %v3120 = vmul.f32 %v2759, 0.2
        %v3121 = vmul.f32 %v2985, 0.2
        %v3122 = vmul.f32 %v2762, 0.2
        %v3123 = vmul.f32 %v2988, 0.2
        %v3124 = vmul.f32 %v2765, 0.2
        %v3125 = vmul.f32 %v2991, 0.2
        %v3126 = vmul.f32 %v2768, 0.2
        %v3127 = vmul.f32 %v2994, 0.2
        %v3128 = vmul.f32 %v2771, 0.2
        %v3129 = vmul.f32 %v2997, 0.2
        %v3130 = vmul.f32 %v2774, 0.2
        %v3131 = vmul.f32 %v3000, 0.2
        %v3132 = vmul.f32 %v2777, 0.2
        %v3133 = vmul.f32 %v3003, 0.2
        %v3134 = vmul.f32 %v2780, 0.2
        %v3135 = vmul.f32 %v3006, 0.2
        %v3136 = vmax.f32 %v2687, %v3072
        %v3137 = vmax.f32 %v2913, %v3073
        %v3138 = vmax.f32 %v2690, %v3074
        %v3139 = vmax.f32 %v2916, %v3075
        %v3140 = vmax.f32 %v2693, %v3076
        %v3141 = vmax.f32 %v2919, %v3077
        %v3142 = vmax.f32 %v2696, %v3078
        %v3143 = vmax.f32 %v2922, %v3079
        %v3144 = vmax.f32 %v2699, %v3080
        %v3145 = vmax.f32 %v2925, %v3081
        %v3146 = vmax.f32 %v2702, %v3082
        %v3147 = vmax.f32 %v2928, %v3083
        %v3148 = vmax.f32 %v2705, %v3084
        %v3149 = vmax.f32 %v2931, %v3085
        %v3150 = vmax.f32 %v2708, %v3086
        %v3151 = vmax.f32 %v2934, %v3087
        %v3152 = vmax.f32 %v2711, %v3088
        %v3153 = vmax.f32 %v2937, %v3089
        %v3154 = vmax.f32 %v2714, %v3090
        %v3155 = vmax.f32 %v2940, %v3091
        %v3156 = vmax.f32 %v2717, %v3092
        %v3157 = vmax.f32 %v2943, %v3093
        %v3158 = vmax.f32 %v2720, %v3094
        %v3159 = vmax.f32 %v2946, %v3095
        %v3160 = vmax.f32 %v2723, %v3096
        %v3161 = vmax.f32 %v2949, %v3097
        %v3162 = vmax.f32 %v2726, %v3098
        %v3163 = vmax.f32 %v2952, %v3099
        %v3164 = vmax.f32 %v2729, %v3100
        %v3165 = vmax.f32 %v2955, %v3101
        %v3166 = vmax.f32 %v2732, %v3102
        %v3167 = vmax.f32 %v2958, %v3103
        %v3168 = vmax.f32 %v2735, %v3104
        %v3169 = vmax.f32 %v2961, %v3105
        %v3170 = vmax.f32 %v2738, %v3106
        %v3171 = vmax.f32 %v2964, %v3107
        %v3172 = vmax.f32 %v2741, %v3108
        %v3173 = vmax.f32 %v2967, %v3109
        %v3174 = vmax.f32 %v2744, %v3110
        %v3175 = vmax.f32 %v2970, %v3111
        %v3176 = vmax.f32 %v2747, %v3112
        %v3177 = vmax.f32 %v2973, %v3113
        %v3178 = vmax.f32 %v2750, %v3114
        %v3179 = vmax.f32 %v2976, %v3115
        %v3180 = vmax.f32 %v2753, %v3116
        %v3181 = vmax.f32 %v2979, %v3117
        %v3182 = vmax.f32 %v2756, %v3118
        %v3183 = vmax.f32 %v2982, %v3119
        %v3184 = vmax.f32 %v2759, %v3120
        %v3185 = vmax.f32 %v2985, %v3121
        %v3186 = vmax.f32 %v2762, %v3122
        %v3187 = vmax.f32 %v2988, %v3123
        %v3188 = vmax.f32 %v2765, %v3124
        %v3189 = vmax.f32 %v2991, %v3125
        %v3190 = vmax.f32 %v2768, %v3126
        %v3191 = vmax.f32 %v2994, %v3127
        %v3192 = vmax.f32 %v2771, %v3128
        %v3193 = vmax.f32 %v2997, %v3129
        %v3194 = vmax.f32 %v2774, %v3130
        %v3195 = vmax.f32 %v3000, %v3131
        %v3196 = vmax.f32 %v2777, %v3132
        %v3197 = vmax.f32 %v3003, %v3133
        %v3198 = vmax.f32 %v2780, %v3134
        %v3199 = vmax.f32 %v3006, %v3135
        %3200 = vst [vmem:[%s788] sm:$0xff] %v3136
        %3201 = vst [vmem:[%s788 + $0x8] sm:$0xff] %v3137
        %3202 = vst [vmem:[%s788 + $0x10] sm:$0xff] %v3138
        %3203 = vst [vmem:[%s788 + $0x18] sm:$0xff] %v3139
        %3204 = vst [vmem:[%s788 + $0x20] sm:$0xff] %v3140
        %3205 = vst [vmem:[%s788 + $0x28] sm:$0xff] %v3141
        %3206 = vst [vmem:[%s788 + $0x30] sm:$0xff] %v3142
        %3207 = vst [vmem:[%s788 + $0x38] sm:$0xff] %v3143
        %3208 = vst [vmem:[%s788 + $0x40] sm:$0xff] %v3144
        %3209 = vst [vmem:[%s788 + $0x48] sm:$0xff] %v3145
        %3210 = vst [vmem:[%s788 + $0x50] sm:$0xff] %v3146
        %3211 = vst [vmem:[%s788 + $0x58] sm:$0xff] %v3147
        %3212 = vst [vmem:[%s788 + $0x60] sm:$0xff] %v3148
        %3213 = vst [vmem:[%s788 + $0x68] sm:$0xff] %v3149
        %3214 = vst [vmem:[%s788 + $0x70] sm:$0xff] %v3150
        %3215 = vst [vmem:[%s788 + $0x78] sm:$0xff] %v3151
        %3216 = vst [vmem:[%s788 + $0x80] sm:$0xff] %v3152
        %3217 = vst [vmem:[%s788 + $0x88] sm:$0xff] %v3153
        %3218 = vst [vmem:[%s788 + $0x90] sm:$0xff] %v3154
        %3219 = vst [vmem:[%s788 + $0x98] sm:$0xff] %v3155
        %3220 = vst [vmem:[%s788 + $0xa0] sm:$0xff] %v3156
        %3221 = vst [vmem:[%s788 + $0xa8] sm:$0xff] %v3157
        %3222 = vst [vmem:[%s788 + $0xb0] sm:$0xff] %v3158
        %3223 = vst [vmem:[%s788 + $0xb8] sm:$0xff] %v3159
        %3224 = vst [vmem:[%s788 + $0xc0] sm:$0xff] %v3160
        %3225 = vst [vmem:[%s788 + $0xc8] sm:$0xff] %v3161
        %3226 = vst [vmem:[%s788 + $0xd0] sm:$0xff] %v3162
        %3227 = vst [vmem:[%s788 + $0xd8] sm:$0xff] %v3163
        %3228 = vst [vmem:[%s788 + $0xe0] sm:$0xff] %v3164
        %3229 = vst [vmem:[%s788 + $0xe8] sm:$0xff] %v3165
        %3230 = vst [vmem:[%s788 + $0xf0] sm:$0xff] %v3166
        %3231 = vst [vmem:[%s788 + $0xf8] sm:$0xff] %v3167
        %3232 = vst [vmem:[%s788 + $0x100] sm:$0xff] %v3168
        %3233 = vst [vmem:[%s788 + $0x108] sm:$0xff] %v3169
        %3234 = vst [vmem:[%s788 + $0x110] sm:$0xff] %v3170
        %3235 = vst [vmem:[%s788 + $0x118] sm:$0xff] %v3171
        %3236 = vst [vmem:[%s788 + $0x120] sm:$0xff] %v3172
        %3237 = vst [vmem:[%s788 + $0x128] sm:$0xff] %v3173
        %3238 = vst [vmem:[%s788 + $0x130] sm:$0xff] %v3174
        %3239 = vst [vmem:[%s788 + $0x138] sm:$0xff] %v3175
        %3240 = vst [vmem:[%s788 + $0x140] sm:$0xff] %v3176
        %3241 = vst [vmem:[%s788 + $0x148] sm:$0xff] %v3177
        %3242 = vst [vmem:[%s788 + $0x150] sm:$0xff] %v3178
        %3243 = vst [vmem:[%s788 + $0x158] sm:$0xff] %v3179
        %3244 = vst [vmem:[%s788 + $0x160] sm:$0xff] %v3180
        %3245 = vst [vmem:[%s788 + $0x168] sm:$0xff] %v3181
        %3246 = vst [vmem:[%s788 + $0x170] sm:$0xff] %v3182
        %3247 = vst [vmem:[%s788 + $0x178] sm:$0xff] %v3183
        %3248 = vst [vmem:[%s788 + $0x180] sm:$0xff] %v3184
        %3249 = vst [vmem:[%s788 + $0x188] sm:$0xff] %v3185
        %3250 = vst [vmem:[%s788 + $0x190] sm:$0xff] %v3186
        %3251 = vst [vmem:[%s788 + $0x198] sm:$0xff] %v3187
        %3252 = vst [vmem:[%s788 + $0x1a0] sm:$0xff] %v3188
        %3253 = vst [vmem:[%s788 + $0x1a8] sm:$0xff] %v3189
        %3254 = vst [vmem:[%s788 + $0x1b0] sm:$0xff] %v3190
        %3255 = vst [vmem:[%s788 + $0x1b8] sm:$0xff] %v3191
        %3256 = vst [vmem:[%s788 + $0x1c0] sm:$0xff] %v3192
        %3257 = vst [vmem:[%s788 + $0x1c8] sm:$0xff] %v3193
        %3258 = vst [vmem:[%s788 + $0x1d0] sm:$0xff] %v3194
        %3259 = vst [vmem:[%s788 + $0x1d8] sm:$0xff] %v3195
        %3260 = vst [vmem:[%s788 + $0x1e0] sm:$0xff] %v3196
        %3261 = vst [vmem:[%s788 + $0x1e8] sm:$0xff] %v3197
        %3262 = vst [vmem:[%s788 + $0x1f0] sm:$0xff] %v3198
        %3263 = vst [vmem:[%s788 + $0x1f8] sm:$0xff] %v3199
        %v3264 = vld [vmem:[%s788] sm:$0xff]
        %v3265 = vld [vmem:[%s788 + $0x8] sm:$0xff]
        %v3266 = vld [vmem:[%s788 + $0x10] sm:$0xff]
        %v3267 = vld [vmem:[%s788 + $0x18] sm:$0xff]
        %v3268 = vld [vmem:[%s788 + $0x20] sm:$0xff]
        %v3269 = vld [vmem:[%s788 + $0x28] sm:$0xff]
        %v3270 = vld [vmem:[%s788 + $0x30] sm:$0xff]
        %v3271 = vld [vmem:[%s788 + $0x38] sm:$0xff]
        %v3272 = vld [vmem:[%s788 + $0x40] sm:$0xff]
        %v3273 = vld [vmem:[%s788 + $0x48] sm:$0xff]
        %v3274 = vld [vmem:[%s788 + $0x50] sm:$0xff]
        %v3275 = vld [vmem:[%s788 + $0x58] sm:$0xff]
        %v3276 = vld [vmem:[%s788 + $0x60] sm:$0xff]
        %v3277 = vld [vmem:[%s788 + $0x68] sm:$0xff]
        %v3278 = vld [vmem:[%s788 + $0x70] sm:$0xff]
        %v3279 = vld [vmem:[%s788 + $0x78] sm:$0xff]
        %v3280 = vld [vmem:[%s788 + $0x80] sm:$0xff]
        %v3281 = vld [vmem:[%s788 + $0x88] sm:$0xff]
        %v3282 = vld [vmem:[%s788 + $0x90] sm:$0xff]
        %v3283 = vld [vmem:[%s788 + $0x98] sm:$0xff]
        %v3284 = vld [vmem:[%s788 + $0xa0] sm:$0xff]
        %v3285 = vld [vmem:[%s788 + $0xa8] sm:$0xff]
        %v3286 = vld [vmem:[%s788 + $0xb0] sm:$0xff]
        %v3287 = vld [vmem:[%s788 + $0xb8] sm:$0xff]
        %v3288 = vld [vmem:[%s788 + $0xc0] sm:$0xff]
        %v3289 = vld [vmem:[%s788 + $0xc8] sm:$0xff]
        %v3290 = vld [vmem:[%s788 + $0xd0] sm:$0xff]
        %v3291 = vld [vmem:[%s788 + $0xd8] sm:$0xff]
        %v3292 = vld [vmem:[%s788 + $0xe0] sm:$0xff]
        %v3293 = vld [vmem:[%s788 + $0xe8] sm:$0xff]
        %v3294 = vld [vmem:[%s788 + $0xf0] sm:$0xff]
        %v3295 = vld [vmem:[%s788 + $0xf8] sm:$0xff]
        %v3296 = vld [vmem:[%s788 + $0x100] sm:$0xff]
        %v3297 = vld [vmem:[%s788 + $0x108] sm:$0xff]
        %v3298 = vld [vmem:[%s788 + $0x110] sm:$0xff]
        %v3299 = vld [vmem:[%s788 + $0x118] sm:$0xff]
        %v3300 = vld [vmem:[%s788 + $0x120] sm:$0xff]
        %v3301 = vld [vmem:[%s788 + $0x128] sm:$0xff]
        %v3302 = vld [vmem:[%s788 + $0x130] sm:$0xff]
        %v3303 = vld [vmem:[%s788 + $0x138] sm:$0xff]
        %v3304 = vld [vmem:[%s788 + $0x140] sm:$0xff]
        %v3305 = vld [vmem:[%s788 + $0x148] sm:$0xff]
        %v3306 = vld [vmem:[%s788 + $0x150] sm:$0xff]
        %v3307 = vld [vmem:[%s788 + $0x158] sm:$0xff]
        %v3308 = vld [vmem:[%s788 + $0x160] sm:$0xff]
        %v3309 = vld [vmem:[%s788 + $0x168] sm:$0xff]
        %v3310 = vld [vmem:[%s788 + $0x170] sm:$0xff]
        %v3311 = vld [vmem:[%s788 + $0x178] sm:$0xff]
        %v3312 = vld [vmem:[%s788 + $0x180] sm:$0xff]
        %v3313 = vld [vmem:[%s788 + $0x188] sm:$0xff]
        %v3314 = vld [vmem:[%s788 + $0x190] sm:$0xff]
        %v3315 = vld [vmem:[%s788 + $0x198] sm:$0xff]
        %v3316 = vld [vmem:[%s788 + $0x1a0] sm:$0xff]
        %v3317 = vld [vmem:[%s788 + $0x1a8] sm:$0xff]
        %v3318 = vld [vmem:[%s788 + $0x1b0] sm:$0xff]
        %v3319 = vld [vmem:[%s788 + $0x1b8] sm:$0xff]
        %v3320 = vld [vmem:[%s788 + $0x1c0] sm:$0xff]
        %v3321 = vld [vmem:[%s788 + $0x1c8] sm:$0xff]
        %v3322 = vld [vmem:[%s788 + $0x1d0] sm:$0xff]
        %v3323 = vld [vmem:[%s788 + $0x1d8] sm:$0xff]
        %v3324 = vld [vmem:[%s788 + $0x1e0] sm:$0xff]
        %v3325 = vld [vmem:[%s788 + $0x1e8] sm:$0xff]
        %v3326 = vld [vmem:[%s788 + $0x1f0] sm:$0xff]
        %v3327 = vld [vmem:[%s788 + $0x1f8] sm:$0xff]
        %v3328 = vld [vmem:[#allocation3] sm:$0xff]
        %v3329 = vld [vmem:[#allocation3 + $0x8] sm:$0xff]
        %v3330 = vld [vmem:[#allocation3 + $0x10] sm:$0xff]
        %v3331 = vld [vmem:[#allocation3 + $0x18] sm:$0xff]
        %v3332 = vld [vmem:[#allocation3 + $0x20] sm:$0xff]
        %v3333 = vld [vmem:[#allocation3 + $0x28] sm:$0xff]
        %v3334 = vld [vmem:[#allocation3 + $0x30] sm:$0xff]
        %v3335 = vld [vmem:[#allocation3 + $0x38] sm:$0xff]
        %v3336 = vld [vmem:[#allocation3 + $0x40] sm:$0xff]
        %v3337 = vld [vmem:[#allocation3 + $0x48] sm:$0xff]
        %v3338 = vld [vmem:[#allocation3 + $0x50] sm:$0xff]
        %v3339 = vld [vmem:[#allocation3 + $0x58] sm:$0xff]
        %v3340 = vld [vmem:[#allocation3 + $0x60] sm:$0xff]
        %v3341 = vld [vmem:[#allocation3 + $0x68] sm:$0xff]
        %v3342 = vld [vmem:[#allocation3 + $0x70] sm:$0xff]
        %v3343 = vld [vmem:[#allocation3 + $0x78] sm:$0xff]
        %v3344 = vld [vmem:[#allocation3 + $0x80] sm:$0xff]
        %v3345 = vld [vmem:[#allocation3 + $0x88] sm:$0xff]
        %v3346 = vld [vmem:[#allocation3 + $0x90] sm:$0xff]
        %v3347 = vld [vmem:[#allocation3 + $0x98] sm:$0xff]
        %v3348 = vld [vmem:[#allocation3 + $0xa0] sm:$0xff]
        %v3349 = vld [vmem:[#allocation3 + $0xa8] sm:$0xff]
        %v3350 = vld [vmem:[#allocation3 + $0xb0] sm:$0xff]
        %v3351 = vld [vmem:[#allocation3 + $0xb8] sm:$0xff]
        %v3352 = vld [vmem:[#allocation3 + $0xc0] sm:$0xff]
        %v3353 = vld [vmem:[#allocation3 + $0xc8] sm:$0xff]
        %v3354 = vld [vmem:[#allocation3 + $0xd0] sm:$0xff]
        %v3355 = vld [vmem:[#allocation3 + $0xd8] sm:$0xff]
        %v3356 = vld [vmem:[#allocation3 + $0xe0] sm:$0xff]
        %v3357 = vld [vmem:[#allocation3 + $0xe8] sm:$0xff]
        %v3358 = vld [vmem:[#allocation3 + $0xf0] sm:$0xff]
        %v3359 = vld [vmem:[#allocation3 + $0xf8] sm:$0xff]
        %v3360 = vld [vmem:[#allocation3 + $0x100] sm:$0xff]
        %v3361 = vld [vmem:[#allocation3 + $0x108] sm:$0xff]
        %v3362 = vld [vmem:[#allocation3 + $0x110] sm:$0xff]
        %v3363 = vld [vmem:[#allocation3 + $0x118] sm:$0xff]
        %v3364 = vld [vmem:[#allocation3 + $0x120] sm:$0xff]
        %v3365 = vld [vmem:[#allocation3 + $0x128] sm:$0xff]
        %v3366 = vld [vmem:[#allocation3 + $0x130] sm:$0xff]
        %v3367 = vld [vmem:[#allocation3 + $0x138] sm:$0xff]
        %v3368 = vld [vmem:[#allocation3 + $0x140] sm:$0xff]
        %v3369 = vld [vmem:[#allocation3 + $0x148] sm:$0xff]
        %v3370 = vld [vmem:[#allocation3 + $0x150] sm:$0xff]
        %v3371 = vld [vmem:[#allocation3 + $0x158] sm:$0xff]
        %v3372 = vld [vmem:[#allocation3 + $0x160] sm:$0xff]
        %v3373 = vld [vmem:[#allocation3 + $0x168] sm:$0xff]
        %v3374 = vld [vmem:[#allocation3 + $0x170] sm:$0xff]
        %v3375 = vld [vmem:[#allocation3 + $0x178] sm:$0xff]
        %v3376 = vld [vmem:[#allocation3 + $0x180] sm:$0xff]
        %v3377 = vld [vmem:[#allocation3 + $0x188] sm:$0xff]
        %v3378 = vld [vmem:[#allocation3 + $0x190] sm:$0xff]
        %v3379 = vld [vmem:[#allocation3 + $0x198] sm:$0xff]
        %v3380 = vld [vmem:[#allocation3 + $0x1a0] sm:$0xff]
        %v3381 = vld [vmem:[#allocation3 + $0x1a8] sm:$0xff]
        %v3382 = vld [vmem:[#allocation3 + $0x1b0] sm:$0xff]
        %v3383 = vld [vmem:[#allocation3 + $0x1b8] sm:$0xff]
        %v3384 = vld [vmem:[#allocation3 + $0x1c0] sm:$0xff]
        %v3385 = vld [vmem:[#allocation3 + $0x1c8] sm:$0xff]
        %v3386 = vld [vmem:[#allocation3 + $0x1d0] sm:$0xff]
        %v3387 = vld [vmem:[#allocation3 + $0x1d8] sm:$0xff]
        %v3388 = vld [vmem:[#allocation3 + $0x1e0] sm:$0xff]
        %v3389 = vld [vmem:[#allocation3 + $0x1e8] sm:$0xff]
        %v3390 = vld [vmem:[#allocation3 + $0x1f0] sm:$0xff]
        %v3391 = vld [vmem:[#allocation3 + $0x1f8] sm:$0xff]
        %v3392 = vld [vmem:[%s10] sm:$0xff]
        %v3393 = vld [vmem:[%s10 + $0x8] sm:$0xff]
        %v3394 = vld [vmem:[%s10 + $0x10] sm:$0xff]
        %v3395 = vld [vmem:[%s10 + $0x18] sm:$0xff]
        %v3396 = vld [vmem:[%s10 + $0x20] sm:$0xff]
        %v3397 = vld [vmem:[%s10 + $0x28] sm:$0xff]
        %v3398 = vld [vmem:[%s10 + $0x30] sm:$0xff]
        %v3399 = vld [vmem:[%s10 + $0x38] sm:$0xff]
        %v3400 = vld [vmem:[%s10 + $0x40] sm:$0xff]
        %v3401 = vld [vmem:[%s10 + $0x48] sm:$0xff]
        %v3402 = vld [vmem:[%s10 + $0x50] sm:$0xff]
        %v3403 = vld [vmem:[%s10 + $0x58] sm:$0xff]
        %v3404 = vld [vmem:[%s10 + $0x60] sm:$0xff]
        %v3405 = vld [vmem:[%s10 + $0x68] sm:$0xff]
        %v3406 = vld [vmem:[%s10 + $0x70] sm:$0xff]
        %v3407 = vld [vmem:[%s10 + $0x78] sm:$0xff]
        %v3408 = vld [vmem:[%s10 + $0x80] sm:$0xff]
        %v3409 = vld [vmem:[%s10 + $0x88] sm:$0xff]
        %v3410 = vld [vmem:[%s10 + $0x90] sm:$0xff]
        %v3411 = vld [vmem:[%s10 + $0x98] sm:$0xff]
        %v3412 = vld [vmem:[%s10 + $0xa0] sm:$0xff]
        %v3413 = vld [vmem:[%s10 + $0xa8] sm:$0xff]
        %v3414 = vld [vmem:[%s10 + $0xb0] sm:$0xff]
        %v3415 = vld [vmem:[%s10 + $0xb8] sm:$0xff]
        %v3416 = vld [vmem:[%s10 + $0xc0] sm:$0xff]
        %v3417 = vld [vmem:[%s10 + $0xc8] sm:$0xff]
        %v3418 = vld [vmem:[%s10 + $0xd0] sm:$0xff]
        %v3419 = vld [vmem:[%s10 + $0xd8] sm:$0xff]
        %v3420 = vld [vmem:[%s10 + $0xe0] sm:$0xff]
        %v3421 = vld [vmem:[%s10 + $0xe8] sm:$0xff]
        %v3422 = vld [vmem:[%s10 + $0xf0] sm:$0xff]
        %v3423 = vld [vmem:[%s10 + $0xf8] sm:$0xff]
        %3425 = vset.pattern.permute.xlu0 0
        %3426 = vperm.xlu0 %3425, %v3392
        %v3427 = vpop.permute.xlu0 %3426
        %3430 = vset.pattern.permute.xlu0 0
        %3431 = vperm.xlu0 %3430, %v3393
        %v3432 = vpop.permute.xlu0 %3431
        %3435 = vset.pattern.permute.xlu0 0
        %3436 = vperm.xlu0 %3435, %v3394
        %v3437 = vpop.permute.xlu0 %3436
        %3440 = vset.pattern.permute.xlu0 0
        %3441 = vperm.xlu0 %3440, %v3395
        %v3442 = vpop.permute.xlu0 %3441
        %3445 = vset.pattern.permute.xlu0 0
        %3446 = vperm.xlu0 %3445, %v3396
        %v3447 = vpop.permute.xlu0 %3446
        %3450 = vset.pattern.permute.xlu0 0
        %3451 = vperm.xlu0 %3450, %v3397
        %v3452 = vpop.permute.xlu0 %3451
        %3455 = vset.pattern.permute.xlu0 0
        %3456 = vperm.xlu0 %3455, %v3398
        %v3457 = vpop.permute.xlu0 %3456
        %3460 = vset.pattern.permute.xlu0 0
        %3461 = vperm.xlu0 %3460, %v3399
        %v3462 = vpop.permute.xlu0 %3461
        %3465 = vset.pattern.permute.xlu0 0
        %3466 = vperm.xlu0 %3465, %v3400
        %v3467 = vpop.permute.xlu0 %3466
        %3470 = vset.pattern.permute.xlu0 0
        %3471 = vperm.xlu0 %3470, %v3401
        %v3472 = vpop.permute.xlu0 %3471
        %3475 = vset.pattern.permute.xlu0 0
        %3476 = vperm.xlu0 %3475, %v3402
        %v3477 = vpop.permute.xlu0 %3476
        %3480 = vset.pattern.permute.xlu0 0
        %3481 = vperm.xlu0 %3480, %v3403
        %v3482 = vpop.permute.xlu0 %3481
        %3485 = vset.pattern.permute.xlu0 0
        %3486 = vperm.xlu0 %3485, %v3404
        %v3487 = vpop.permute.xlu0 %3486
        %3490 = vset.pattern.permute.xlu0 0
        %3491 = vperm.xlu0 %3490, %v3405
        %v3492 = vpop.permute.xlu0 %3491
        %3495 = vset.pattern.permute.xlu0 0
        %3496 = vperm.xlu0 %3495, %v3406
        %v3497 = vpop.permute.xlu0 %3496
        %3500 = vset.pattern.permute.xlu0 0
        %3501 = vperm.xlu0 %3500, %v3407
        %v3502 = vpop.permute.xlu0 %3501
        %3505 = vset.pattern.permute.xlu0 0
        %3506 = vperm.xlu0 %3505, %v3408
        %v3507 = vpop.permute.xlu0 %3506
        %3510 = vset.pattern.permute.xlu0 0
        %3511 = vperm.xlu0 %3510, %v3409
        %v3512 = vpop.permute.xlu0 %3511
        %3515 = vset.pattern.permute.xlu0 0
        %3516 = vperm.xlu0 %3515, %v3410
        %v3517 = vpop.permute.xlu0 %3516
        %3520 = vset.pattern.permute.xlu0 0
        %3521 = vperm.xlu0 %3520, %v3411
        %v3522 = vpop.permute.xlu0 %3521
        %3525 = vset.pattern.permute.xlu0 0
        %3526 = vperm.xlu0 %3525, %v3412
        %v3527 = vpop.permute.xlu0 %3526
        %3530 = vset.pattern.permute.xlu0 0
        %3531 = vperm.xlu0 %3530, %v3413
        %v3532 = vpop.permute.xlu0 %3531
        %3535 = vset.pattern.permute.xlu0 0
        %3536 = vperm.xlu0 %3535, %v3414
        %v3537 = vpop.permute.xlu0 %3536
        %3540 = vset.pattern.permute.xlu0 0
        %3541 = vperm.xlu0 %3540, %v3415
        %v3542 = vpop.permute.xlu0 %3541
        %3545 = vset.pattern.permute.xlu0 0
        %3546 = vperm.xlu0 %3545, %v3416
        %v3547 = vpop.permute.xlu0 %3546
        %3550 = vset.pattern.permute.xlu0 0
        %3551 = vperm.xlu0 %3550, %v3417
        %v3552 = vpop.permute.xlu0 %3551
        %3555 = vset.pattern.permute.xlu0 0
        %3556 = vperm.xlu0 %3555, %v3418
        %v3557 = vpop.permute.xlu0 %3556
        %3560 = vset.pattern.permute.xlu0 0
        %3561 = vperm.xlu0 %3560, %v3419
        %v3562 = vpop.permute.xlu0 %3561
        %3565 = vset.pattern.permute.xlu0 0
        %3566 = vperm.xlu0 %3565, %v3420
        %v3567 = vpop.permute.xlu0 %3566
        %3570 = vset.pattern.permute.xlu0 0
        %3571 = vperm.xlu0 %3570, %v3421
        %v3572 = vpop.permute.xlu0 %3571
        %3575 = vset.pattern.permute.xlu0 0
        %3576 = vperm.xlu0 %3575, %v3422
        %v3577 = vpop.permute.xlu0 %3576
        %3580 = vset.pattern.permute.xlu0 0
        %3581 = vperm.xlu0 %3580, %v3423
        %v3582 = vpop.permute.xlu0 %3581
        %3584 = vmatpush.msra.mxu0 %v3294
        %3585 = vmatpush.msra.mxu0 %v3292
        %3586 = vmatpush.msra.mxu0 %v3290
        %3587 = vmatpush.msra.mxu0 %v3288
        %3588 = vmatpush.msra.mxu0 %v3286
        %3589 = vmatpush.msra.mxu0 %v3284
        %3590 = vmatpush.msra.mxu0 %v3282
        %3591 = vmatpush.msra.mxu0 %v3280
        %3592 = vmatpush.msra.mxu0 %v3278
        %3593 = vmatpush.msra.mxu0 %v3276
        %3594 = vmatpush.msra.mxu0 %v3274
        %3595 = vmatpush.msra.mxu0 %v3272
        %3596 = vmatpush.msra.mxu0 %v3270
        %3597 = vmatpush.msra.mxu0 %v3268
        %3598 = vmatpush.msra.mxu0 %v3266
        %3599 = vmatpush.msra.mxu0 %v3264
        %3600 = vmatmul.f32.gmra.mxu0 %v3328
        %v3601 = vpop.f32.mrf.mxu0
        %v3602 = vadd.f32 %v3427, %v3601
        %3603 = vmatmul.f32.gmra.mxu0 %v3330
        %v3604 = vpop.f32.mrf.mxu0
        %v3605 = vadd.f32 %v3432, %v3604
        %3606 = vmatmul.f32.gmra.mxu0 %v3332
        %v3607 = vpop.f32.mrf.mxu0
        %v3608 = vadd.f32 %v3437, %v3607
        %3609 = vmatmul.f32.gmra.mxu0 %v3334
        %v3610 = vpop.f32.mrf.mxu0
        %v3611 = vadd.f32 %v3442, %v3610
        %3612 = vmatmul.f32.gmra.mxu0 %v3336
        %v3613 = vpop.f32.mrf.mxu0
        %v3614 = vadd.f32 %v3447, %v3613
        %3615 = vmatmul.f32.gmra.mxu0 %v3338
        %v3616 = vpop.f32.mrf.mxu0
        %v3617 = vadd.f32 %v3452, %v3616
        %3618 = vmatmul.f32.gmra.mxu0 %v3340
        %v3619 = vpop.f32.mrf.mxu0
        %v3620 = vadd.f32 %v3457, %v3619
        %3621 = vmatmul.f32.gmra.mxu0 %v3342
        %v3622 = vpop.f32.mrf.mxu0
        %v3623 = vadd.f32 %v3462, %v3622
        %3624 = vmatmul.f32.gmra.mxu0 %v3344
        %v3625 = vpop.f32.mrf.mxu0
        %v3626 = vadd.f32 %v3467, %v3625
        %3627 = vmatmul.f32.gmra.mxu0 %v3346
        %v3628 = vpop.f32.mrf.mxu0
        %v3629 = vadd.f32 %v3472, %v3628
        %3630 = vmatmul.f32.gmra.mxu0 %v3348
        %v3631 = vpop.f32.mrf.mxu0
        %v3632 = vadd.f32 %v3477, %v3631
        %3633 = vmatmul.f32.gmra.mxu0 %v3350
        %v3634 = vpop.f32.mrf.mxu0
        %v3635 = vadd.f32 %v3482, %v3634
        %3636 = vmatmul.f32.gmra.mxu0 %v3352
        %v3637 = vpop.f32.mrf.mxu0
        %v3638 = vadd.f32 %v3487, %v3637
        %3639 = vmatmul.f32.gmra.mxu0 %v3354
        %v3640 = vpop.f32.mrf.mxu0
        %v3641 = vadd.f32 %v3492, %v3640
        %3642 = vmatmul.f32.gmra.mxu0 %v3356
        %v3643 = vpop.f32.mrf.mxu0
        %v3644 = vadd.f32 %v3497, %v3643
        %3645 = vmatmul.f32.gmra.mxu0 %v3358
        %v3646 = vpop.f32.mrf.mxu0
        %v3647 = vadd.f32 %v3502, %v3646
        %3648 = vmatmul.f32.gmra.mxu0 %v3360
        %v3649 = vpop.f32.mrf.mxu0
        %v3650 = vadd.f32 %v3507, %v3649
        %3651 = vmatmul.f32.gmra.mxu0 %v3362
        %v3652 = vpop.f32.mrf.mxu0
        %v3653 = vadd.f32 %v3512, %v3652
        %3654 = vmatmul.f32.gmra.mxu0 %v3364
        %v3655 = vpop.f32.mrf.mxu0
        %v3656 = vadd.f32 %v3517, %v3655
        %3657 = vmatmul.f32.gmra.mxu0 %v3366
        %v3658 = vpop.f32.mrf.mxu0
        %v3659 = vadd.f32 %v3522, %v3658
        %3660 = vmatmul.f32.gmra.mxu0 %v3368
        %v3661 = vpop.f32.mrf.mxu0
        %v3662 = vadd.f32 %v3527, %v3661
        %3663 = vmatmul.f32.gmra.mxu0 %v3370
        %v3664 = vpop.f32.mrf.mxu0
        %v3665 = vadd.f32 %v3532, %v3664
        %3666 = vmatmul.f32.gmra.mxu0 %v3372
        %v3667 = vpop.f32.mrf.mxu0
        %v3668 = vadd.f32 %v3537, %v3667
        %3669 = vmatmul.f32.gmra.mxu0 %v3374
        %v3670 = vpop.f32.mrf.mxu0
        %v3671 = vadd.f32 %v3542, %v3670
        %3672 = vmatmul.f32.gmra.mxu0 %v3376
        %v3673 = vpop.f32.mrf.mxu0
        %v3674 = vadd.f32 %v3547, %v3673
        %3675 = vmatmul.f32.gmra.mxu0 %v3378
        %v3676 = vpop.f32.mrf.mxu0
        %v3677 = vadd.f32 %v3552, %v3676
        %3678 = vmatmul.f32.gmra.mxu0 %v3380
        %v3679 = vpop.f32.mrf.mxu0
        %v3680 = vadd.f32 %v3557, %v3679
        %3681 = vmatmul.f32.gmra.mxu0 %v3382
        %v3682 = vpop.f32.mrf.mxu0
        %v3683 = vadd.f32 %v3562, %v3682
        %3684 = vmatmul.f32.gmra.mxu0 %v3384
        %v3685 = vpop.f32.mrf.mxu0
        %v3686 = vadd.f32 %v3567, %v3685
        %3687 = vmatmul.f32.gmra.mxu0 %v3386
        %v3688 = vpop.f32.mrf.mxu0
        %v3689 = vadd.f32 %v3572, %v3688
        %3690 = vmatmul.f32.gmra.mxu0 %v3388
        %v3691 = vpop.f32.mrf.mxu0
        %v3692 = vadd.f32 %v3577, %v3691
        %3693 = vmatmul.f32.gmra.mxu0 %v3390
        %v3694 = vpop.f32.mrf.mxu0
        %v3695 = vadd.f32 %v3582, %v3694
        %3696 = vdwg.mxu0
        %3697 = vmatpush.msra.mxu0 %v3326
        %3698 = vmatpush.msra.mxu0 %v3324
        %3699 = vmatpush.msra.mxu0 %v3322
        %3700 = vmatpush.msra.mxu0 %v3320
        %3701 = vmatpush.msra.mxu0 %v3318
        %3702 = vmatpush.msra.mxu0 %v3316
        %3703 = vmatpush.msra.mxu0 %v3314
        %3704 = vmatpush.msra.mxu0 %v3312
        %3705 = vmatpush.msra.mxu0 %v3310
        %3706 = vmatpush.msra.mxu0 %v3308
        %3707 = vmatpush.msra.mxu0 %v3306
        %3708 = vmatpush.msra.mxu0 %v3304
        %3709 = vmatpush.msra.mxu0 %v3302
        %3710 = vmatpush.msra.mxu0 %v3300
        %3711 = vmatpush.msra.mxu0 %v3298
        %3712 = vmatpush.msra.mxu0 %v3296
        %3713 = vmatmul.f32.gmra.mxu0 %v3329
        %v3714 = vpop.f32.mrf.mxu0
        %v3715 = vadd.f32 %v3602, %v3714
        %3716 = vmatmul.f32.gmra.mxu0 %v3331
        %v3717 = vpop.f32.mrf.mxu0
        %v3718 = vadd.f32 %v3605, %v3717
        %3719 = vmatmul.f32.gmra.mxu0 %v3333
        %v3720 = vpop.f32.mrf.mxu0
        %v3721 = vadd.f32 %v3608, %v3720
        %3722 = vmatmul.f32.gmra.mxu0 %v3335
        %v3723 = vpop.f32.mrf.mxu0
        %v3724 = vadd.f32 %v3611, %v3723
        %3725 = vmatmul.f32.gmra.mxu0 %v3337
        %v3726 = vpop.f32.mrf.mxu0
        %v3727 = vadd.f32 %v3614, %v3726
        %3728 = vmatmul.f32.gmra.mxu0 %v3339
        %v3729 = vpop.f32.mrf.mxu0
        %v3730 = vadd.f32 %v3617, %v3729
        %3731 = vmatmul.f32.gmra.mxu0 %v3341
        %v3732 = vpop.f32.mrf.mxu0
        %v3733 = vadd.f32 %v3620, %v3732
        %3734 = vmatmul.f32.gmra.mxu0 %v3343
        %v3735 = vpop.f32.mrf.mxu0
        %v3736 = vadd.f32 %v3623, %v3735
        %3737 = vmatmul.f32.gmra.mxu0 %v3345
        %v3738 = vpop.f32.mrf.mxu0
        %v3739 = vadd.f32 %v3626, %v3738
        %3740 = vmatmul.f32.gmra.mxu0 %v3347
        %v3741 = vpop.f32.mrf.mxu0
        %v3742 = vadd.f32 %v3629, %v3741
        %3743 = vmatmul.f32.gmra.mxu0 %v3349
        %v3744 = vpop.f32.mrf.mxu0
        %v3745 = vadd.f32 %v3632, %v3744
        %3746 = vmatmul.f32.gmra.mxu0 %v3351
        %v3747 = vpop.f32.mrf.mxu0
        %v3748 = vadd.f32 %v3635, %v3747
        %3749 = vmatmul.f32.gmra.mxu0 %v3353
        %v3750 = vpop.f32.mrf.mxu0
        %v3751 = vadd.f32 %v3638, %v3750
        %3752 = vmatmul.f32.gmra.mxu0 %v3355
        %v3753 = vpop.f32.mrf.mxu0
        %v3754 = vadd.f32 %v3641, %v3753
        %3755 = vmatmul.f32.gmra.mxu0 %v3357
        %v3756 = vpop.f32.mrf.mxu0
        %v3757 = vadd.f32 %v3644, %v3756
        %3758 = vmatmul.f32.gmra.mxu0 %v3359
        %v3759 = vpop.f32.mrf.mxu0
        %v3760 = vadd.f32 %v3647, %v3759
        %3761 = vmatmul.f32.gmra.mxu0 %v3361
        %v3762 = vpop.f32.mrf.mxu0
        %v3763 = vadd.f32 %v3650, %v3762
        %3764 = vmatmul.f32.gmra.mxu0 %v3363
        %v3765 = vpop.f32.mrf.mxu0
        %v3766 = vadd.f32 %v3653, %v3765
        %3767 = vmatmul.f32.gmra.mxu0 %v3365
        %v3768 = vpop.f32.mrf.mxu0
        %v3769 = vadd.f32 %v3656, %v3768
        %3770 = vmatmul.f32.gmra.mxu0 %v3367
        %v3771 = vpop.f32.mrf.mxu0
        %v3772 = vadd.f32 %v3659, %v3771
        %3773 = vmatmul.f32.gmra.mxu0 %v3369
        %v3774 = vpop.f32.mrf.mxu0
        %v3775 = vadd.f32 %v3662, %v3774
        %3776 = vmatmul.f32.gmra.mxu0 %v3371
        %v3777 = vpop.f32.mrf.mxu0
        %v3778 = vadd.f32 %v3665, %v3777
        %3779 = vmatmul.f32.gmra.mxu0 %v3373
        %v3780 = vpop.f32.mrf.mxu0
        %v3781 = vadd.f32 %v3668, %v3780
        %3782 = vmatmul.f32.gmra.mxu0 %v3375
        %v3783 = vpop.f32.mrf.mxu0
        %v3784 = vadd.f32 %v3671, %v3783
        %3785 = vmatmul.f32.gmra.mxu0 %v3377
        %v3786 = vpop.f32.mrf.mxu0
        %v3787 = vadd.f32 %v3674, %v3786
        %3788 = vmatmul.f32.gmra.mxu0 %v3379
        %v3789 = vpop.f32.mrf.mxu0
        %v3790 = vadd.f32 %v3677, %v3789
        %3791 = vmatmul.f32.gmra.mxu0 %v3381
        %v3792 = vpop.f32.mrf.mxu0
        %v3793 = vadd.f32 %v3680, %v3792
        %3794 = vmatmul.f32.gmra.mxu0 %v3383
        %v3795 = vpop.f32.mrf.mxu0
        %v3796 = vadd.f32 %v3683, %v3795
        %3797 = vmatmul.f32.gmra.mxu0 %v3385
        %v3798 = vpop.f32.mrf.mxu0
        %v3799 = vadd.f32 %v3686, %v3798
        %3800 = vmatmul.f32.gmra.mxu0 %v3387
        %v3801 = vpop.f32.mrf.mxu0
        %v3802 = vadd.f32 %v3689, %v3801
        %3803 = vmatmul.f32.gmra.mxu0 %v3389
        %v3804 = vpop.f32.mrf.mxu0
        %v3805 = vadd.f32 %v3692, %v3804
        %3806 = vmatmul.f32.gmra.mxu0 %v3391
        %v3807 = vpop.f32.mrf.mxu0
        %v3808 = vadd.f32 %v3695, %v3807
        %3809 = vdwg.mxu0
        %3810 = vmatpush.msra.mxu0 %v3295
        %3811 = vmatpush.msra.mxu0 %v3293
        %3812 = vmatpush.msra.mxu0 %v3291
        %3813 = vmatpush.msra.mxu0 %v3289
        %3814 = vmatpush.msra.mxu0 %v3287
        %3815 = vmatpush.msra.mxu0 %v3285
        %3816 = vmatpush.msra.mxu0 %v3283
        %3817 = vmatpush.msra.mxu0 %v3281
        %3818 = vmatpush.msra.mxu0 %v3279
        %3819 = vmatpush.msra.mxu0 %v3277
        %3820 = vmatpush.msra.mxu0 %v3275
        %3821 = vmatpush.msra.mxu0 %v3273
        %3822 = vmatpush.msra.mxu0 %v3271
        %3823 = vmatpush.msra.mxu0 %v3269
        %3824 = vmatpush.msra.mxu0 %v3267
        %3825 = vmatpush.msra.mxu0 %v3265
        %3826 = vmatmul.f32.gmra.mxu0 %v3328
        %v3827 = vpop.f32.mrf.mxu0
        %v3828 = vadd.f32 %v3427, %v3827
        %3829 = vmatmul.f32.gmra.mxu0 %v3330
        %v3830 = vpop.f32.mrf.mxu0
        %v3831 = vadd.f32 %v3432, %v3830
        %3832 = vmatmul.f32.gmra.mxu0 %v3332
        %v3833 = vpop.f32.mrf.mxu0
        %v3834 = vadd.f32 %v3437, %v3833
        %3835 = vmatmul.f32.gmra.mxu0 %v3334
        %v3836 = vpop.f32.mrf.mxu0
        %v3837 = vadd.f32 %v3442, %v3836
        %3838 = vmatmul.f32.gmra.mxu0 %v3336
        %v3839 = vpop.f32.mrf.mxu0
        %v3840 = vadd.f32 %v3447, %v3839
        %3841 = vmatmul.f32.gmra.mxu0 %v3338
        %v3842 = vpop.f32.mrf.mxu0
        %v3843 = vadd.f32 %v3452, %v3842
        %3844 = vmatmul.f32.gmra.mxu0 %v3340
        %v3845 = vpop.f32.mrf.mxu0
        %v3846 = vadd.f32 %v3457, %v3845
        %3847 = vmatmul.f32.gmra.mxu0 %v3342
        %v3848 = vpop.f32.mrf.mxu0
        %v3849 = vadd.f32 %v3462, %v3848
        %3850 = vmatmul.f32.gmra.mxu0 %v3344
        %v3851 = vpop.f32.mrf.mxu0
        %v3852 = vadd.f32 %v3467, %v3851
        %3853 = vmatmul.f32.gmra.mxu0 %v3346
        %v3854 = vpop.f32.mrf.mxu0
        %v3855 = vadd.f32 %v3472, %v3854
        %3856 = vmatmul.f32.gmra.mxu0 %v3348
        %v3857 = vpop.f32.mrf.mxu0
        %v3858 = vadd.f32 %v3477, %v3857
        %3859 = vmatmul.f32.gmra.mxu0 %v3350
        %v3860 = vpop.f32.mrf.mxu0
        %v3861 = vadd.f32 %v3482, %v3860
        %3862 = vmatmul.f32.gmra.mxu0 %v3352
        %v3863 = vpop.f32.mrf.mxu0
        %v3864 = vadd.f32 %v3487, %v3863
        %3865 = vmatmul.f32.gmra.mxu0 %v3354
        %v3866 = vpop.f32.mrf.mxu0
        %v3867 = vadd.f32 %v3492, %v3866
        %3868 = vmatmul.f32.gmra.mxu0 %v3356
        %v3869 = vpop.f32.mrf.mxu0
        %v3870 = vadd.f32 %v3497, %v3869
        %3871 = vmatmul.f32.gmra.mxu0 %v3358
        %v3872 = vpop.f32.mrf.mxu0
        %v3873 = vadd.f32 %v3502, %v3872
        %3874 = vmatmul.f32.gmra.mxu0 %v3360
        %v3875 = vpop.f32.mrf.mxu0
        %v3876 = vadd.f32 %v3507, %v3875
        %3877 = vmatmul.f32.gmra.mxu0 %v3362
        %v3878 = vpop.f32.mrf.mxu0
        %v3879 = vadd.f32 %v3512, %v3878
        %3880 = vmatmul.f32.gmra.mxu0 %v3364
        %v3881 = vpop.f32.mrf.mxu0
        %v3882 = vadd.f32 %v3517, %v3881
        %3883 = vmatmul.f32.gmra.mxu0 %v3366
        %v3884 = vpop.f32.mrf.mxu0
        %v3885 = vadd.f32 %v3522, %v3884
        %3886 = vmatmul.f32.gmra.mxu0 %v3368
        %v3887 = vpop.f32.mrf.mxu0
        %v3888 = vadd.f32 %v3527, %v3887
        %3889 = vmatmul.f32.gmra.mxu0 %v3370
        %v3890 = vpop.f32.mrf.mxu0
        %v3891 = vadd.f32 %v3532, %v3890
        %3892 = vmatmul.f32.gmra.mxu0 %v3372
        %v3893 = vpop.f32.mrf.mxu0
        %v3894 = vadd.f32 %v3537, %v3893
        %3895 = vmatmul.f32.gmra.mxu0 %v3374
        %v3896 = vpop.f32.mrf.mxu0
        %v3897 = vadd.f32 %v3542, %v3896
        %3898 = vmatmul.f32.gmra.mxu0 %v3376
        %v3899 = vpop.f32.mrf.mxu0
        %v3900 = vadd.f32 %v3547, %v3899
        %3901 = vmatmul.f32.gmra.mxu0 %v3378
        %v3902 = vpop.f32.mrf.mxu0
        %v3903 = vadd.f32 %v3552, %v3902
        %3904 = vmatmul.f32.gmra.mxu0 %v3380
        %v3905 = vpop.f32.mrf.mxu0
        %v3906 = vadd.f32 %v3557, %v3905
        %3907 = vmatmul.f32.gmra.mxu0 %v3382
        %v3908 = vpop.f32.mrf.mxu0
        %v3909 = vadd.f32 %v3562, %v3908
        %3910 = vmatmul.f32.gmra.mxu0 %v3384
        %v3911 = vpop.f32.mrf.mxu0
        %v3912 = vadd.f32 %v3567, %v3911
        %3913 = vmatmul.f32.gmra.mxu0 %v3386
        %v3914 = vpop.f32.mrf.mxu0
        %v3915 = vadd.f32 %v3572, %v3914
        %3916 = vmatmul.f32.gmra.mxu0 %v3388
        %v3917 = vpop.f32.mrf.mxu0
        %v3918 = vadd.f32 %v3577, %v3917
        %3919 = vmatmul.f32.gmra.mxu0 %v3390
        %v3920 = vpop.f32.mrf.mxu0
        %v3921 = vadd.f32 %v3582, %v3920
        %3922 = vdwg.mxu0
        %3923 = vmatpush.msra.mxu0 %v3327
        %3924 = vmatpush.msra.mxu0 %v3325
        %3925 = vmatpush.msra.mxu0 %v3323
        %3926 = vmatpush.msra.mxu0 %v3321
        %3927 = vmatpush.msra.mxu0 %v3319
        %3928 = vmatpush.msra.mxu0 %v3317
        %3929 = vmatpush.msra.mxu0 %v3315
        %3930 = vmatpush.msra.mxu0 %v3313
        %3931 = vmatpush.msra.mxu0 %v3311
        %3932 = vmatpush.msra.mxu0 %v3309
        %3933 = vmatpush.msra.mxu0 %v3307
        %3934 = vmatpush.msra.mxu0 %v3305
        %3935 = vmatpush.msra.mxu0 %v3303
        %3936 = vmatpush.msra.mxu0 %v3301
        %3937 = vmatpush.msra.mxu0 %v3299
        %3938 = vmatpush.msra.mxu0 %v3297
        %3939 = vmatmul.f32.gmra.mxu0 %v3329
        %v3940 = vpop.f32.mrf.mxu0
        %v3941 = vadd.f32 %v3828, %v3940
        %3942 = vmatmul.f32.gmra.mxu0 %v3331
        %v3943 = vpop.f32.mrf.mxu0
        %v3944 = vadd.f32 %v3831, %v3943
        %3945 = vmatmul.f32.gmra.mxu0 %v3333
        %v3946 = vpop.f32.mrf.mxu0
        %v3947 = vadd.f32 %v3834, %v3946
        %3948 = vmatmul.f32.gmra.mxu0 %v3335
        %v3949 = vpop.f32.mrf.mxu0
        %v3950 = vadd.f32 %v3837, %v3949
        %3951 = vmatmul.f32.gmra.mxu0 %v3337
        %v3952 = vpop.f32.mrf.mxu0
        %v3953 = vadd.f32 %v3840, %v3952
        %3954 = vmatmul.f32.gmra.mxu0 %v3339
        %v3955 = vpop.f32.mrf.mxu0
        %v3956 = vadd.f32 %v3843, %v3955
        %3957 = vmatmul.f32.gmra.mxu0 %v3341
        %v3958 = vpop.f32.mrf.mxu0
        %v3959 = vadd.f32 %v3846, %v3958
        %3960 = vmatmul.f32.gmra.mxu0 %v3343
        %v3961 = vpop.f32.mrf.mxu0
        %v3962 = vadd.f32 %v3849, %v3961
        %3963 = vmatmul.f32.gmra.mxu0 %v3345
        %v3964 = vpop.f32.mrf.mxu0
        %v3965 = vadd.f32 %v3852, %v3964
        %3966 = vmatmul.f32.gmra.mxu0 %v3347
        %v3967 = vpop.f32.mrf.mxu0
        %v3968 = vadd.f32 %v3855, %v3967
        %3969 = vmatmul.f32.gmra.mxu0 %v3349
        %v3970 = vpop.f32.mrf.mxu0
        %v3971 = vadd.f32 %v3858, %v3970
        %3972 = vmatmul.f32.gmra.mxu0 %v3351
        %v3973 = vpop.f32.mrf.mxu0
        %v3974 = vadd.f32 %v3861, %v3973
        %3975 = vmatmul.f32.gmra.mxu0 %v3353
        %v3976 = vpop.f32.mrf.mxu0
        %v3977 = vadd.f32 %v3864, %v3976
        %3978 = vmatmul.f32.gmra.mxu0 %v3355
        %v3979 = vpop.f32.mrf.mxu0
        %v3980 = vadd.f32 %v3867, %v3979
        %3981 = vmatmul.f32.gmra.mxu0 %v3357
        %v3982 = vpop.f32.mrf.mxu0
        %v3983 = vadd.f32 %v3870, %v3982
        %3984 = vmatmul.f32.gmra.mxu0 %v3359
        %v3985 = vpop.f32.mrf.mxu0
        %v3986 = vadd.f32 %v3873, %v3985
        %3987 = vmatmul.f32.gmra.mxu0 %v3361
        %v3988 = vpop.f32.mrf.mxu0
        %v3989 = vadd.f32 %v3876, %v3988
        %3990 = vmatmul.f32.gmra.mxu0 %v3363
        %v3991 = vpop.f32.mrf.mxu0
        %v3992 = vadd.f32 %v3879, %v3991
        %3993 = vmatmul.f32.gmra.mxu0 %v3365
        %v3994 = vpop.f32.mrf.mxu0
        %v3995 = vadd.f32 %v3882, %v3994
        %3996 = vmatmul.f32.gmra.mxu0 %v3367
        %v3997 = vpop.f32.mrf.mxu0
        %v3998 = vadd.f32 %v3885, %v3997
        %3999 = vmatmul.f32.gmra.mxu0 %v3369
        %v4000 = vpop.f32.mrf.mxu0
        %v4001 = vadd.f32 %v3888, %v4000
        %4002 = vmatmul.f32.gmra.mxu0 %v3371
        %v4003 = vpop.f32.mrf.mxu0
        %v4004 = vadd.f32 %v3891, %v4003
        %4005 = vmatmul.f32.gmra.mxu0 %v3373
        %v4006 = vpop.f32.mrf.mxu0
        %v4007 = vadd.f32 %v3894, %v4006
        %4008 = vmatmul.f32.gmra.mxu0 %v3375
        %v4009 = vpop.f32.mrf.mxu0
        %v4010 = vadd.f32 %v3897, %v4009
        %4011 = vmatmul.f32.gmra.mxu0 %v3377
        %v4012 = vpop.f32.mrf.mxu0
        %v4013 = vadd.f32 %v3900, %v4012
        %4014 = vmatmul.f32.gmra.mxu0 %v3379
        %v4015 = vpop.f32.mrf.mxu0
        %v4016 = vadd.f32 %v3903, %v4015
        %4017 = vmatmul.f32.gmra.mxu0 %v3381
        %v4018 = vpop.f32.mrf.mxu0
        %v4019 = vadd.f32 %v3906, %v4018
        %4020 = vmatmul.f32.gmra.mxu0 %v3383
        %v4021 = vpop.f32.mrf.mxu0
        %v4022 = vadd.f32 %v3909, %v4021
        %4023 = vmatmul.f32.gmra.mxu0 %v3385
        %v4024 = vpop.f32.mrf.mxu0
        %v4025 = vadd.f32 %v3912, %v4024
        %4026 = vmatmul.f32.gmra.mxu0 %v3387
        %v4027 = vpop.f32.mrf.mxu0
        %v4028 = vadd.f32 %v3915, %v4027
        %4029 = vmatmul.f32.gmra.mxu0 %v3389
        %v4030 = vpop.f32.mrf.mxu0
        %v4031 = vadd.f32 %v3918, %v4030
        %4032 = vmatmul.f32.gmra.mxu0 %v3391
        %v4033 = vpop.f32.mrf.mxu0
        %v4034 = vadd.f32 %v3921, %v4033
        %4035 = vdwg.mxu0
        %4036 = vst [vmem:[%s795] sm:$0xff] %v3715
        %4037 = vst [vmem:[%s795 + $0x8] sm:$0xff] %v3941
        %4038 = vst [vmem:[%s795 + $0x10] sm:$0xff] %v3718
        %4039 = vst [vmem:[%s795 + $0x18] sm:$0xff] %v3944
        %4040 = vst [vmem:[%s795 + $0x20] sm:$0xff] %v3721
        %4041 = vst [vmem:[%s795 + $0x28] sm:$0xff] %v3947
        %4042 = vst [vmem:[%s795 + $0x30] sm:$0xff] %v3724
        %4043 = vst [vmem:[%s795 + $0x38] sm:$0xff] %v3950
        %4044 = vst [vmem:[%s795 + $0x40] sm:$0xff] %v3727
        %4045 = vst [vmem:[%s795 + $0x48] sm:$0xff] %v3953
        %4046 = vst [vmem:[%s795 + $0x50] sm:$0xff] %v3730
        %4047 = vst [vmem:[%s795 + $0x58] sm:$0xff] %v3956
        %4048 = vst [vmem:[%s795 + $0x60] sm:$0xff] %v3733
        %4049 = vst [vmem:[%s795 + $0x68] sm:$0xff] %v3959
        %4050 = vst [vmem:[%s795 + $0x70] sm:$0xff] %v3736
        %4051 = vst [vmem:[%s795 + $0x78] sm:$0xff] %v3962
        %4052 = vst [vmem:[%s795 + $0x80] sm:$0xff] %v3739
        %4053 = vst [vmem:[%s795 + $0x88] sm:$0xff] %v3965
        %4054 = vst [vmem:[%s795 + $0x90] sm:$0xff] %v3742
        %4055 = vst [vmem:[%s795 + $0x98] sm:$0xff] %v3968
        %4056 = vst [vmem:[%s795 + $0xa0] sm:$0xff] %v3745
        %4057 = vst [vmem:[%s795 + $0xa8] sm:$0xff] %v3971
        %4058 = vst [vmem:[%s795 + $0xb0] sm:$0xff] %v3748
        %4059 = vst [vmem:[%s795 + $0xb8] sm:$0xff] %v3974
        %4060 = vst [vmem:[%s795 + $0xc0] sm:$0xff] %v3751
        %4061 = vst [vmem:[%s795 + $0xc8] sm:$0xff] %v3977
        %4062 = vst [vmem:[%s795 + $0xd0] sm:$0xff] %v3754
        %4063 = vst [vmem:[%s795 + $0xd8] sm:$0xff] %v3980
        %4064 = vst [vmem:[%s795 + $0xe0] sm:$0xff] %v3757
        %4065 = vst [vmem:[%s795 + $0xe8] sm:$0xff] %v3983
        %4066 = vst [vmem:[%s795 + $0xf0] sm:$0xff] %v3760
        %4067 = vst [vmem:[%s795 + $0xf8] sm:$0xff] %v3986
        %4068 = vst [vmem:[%s795 + $0x100] sm:$0xff] %v3763
        %4069 = vst [vmem:[%s795 + $0x108] sm:$0xff] %v3989
        %4070 = vst [vmem:[%s795 + $0x110] sm:$0xff] %v3766
        %4071 = vst [vmem:[%s795 + $0x118] sm:$0xff] %v3992
        %4072 = vst [vmem:[%s795 + $0x120] sm:$0xff] %v3769
        %4073 = vst [vmem:[%s795 + $0x128] sm:$0xff] %v3995
        %4074 = vst [vmem:[%s795 + $0x130] sm:$0xff] %v3772
        %4075 = vst [vmem:[%s795 + $0x138] sm:$0xff] %v3998
        %4076 = vst [vmem:[%s795 + $0x140] sm:$0xff] %v3775
        %4077 = vst [vmem:[%s795 + $0x148] sm:$0xff] %v4001
        %4078 = vst [vmem:[%s795 + $0x150] sm:$0xff] %v3778
        %4079 = vst [vmem:[%s795 + $0x158] sm:$0xff] %v4004
        %4080 = vst [vmem:[%s795 + $0x160] sm:$0xff] %v3781
        %4081 = vst [vmem:[%s795 + $0x168] sm:$0xff] %v4007
        %4082 = vst [vmem:[%s795 + $0x170] sm:$0xff] %v3784
        %4083 = vst [vmem:[%s795 + $0x178] sm:$0xff] %v4010
        %4084 = vst [vmem:[%s795 + $0x180] sm:$0xff] %v3787
        %4085 = vst [vmem:[%s795 + $0x188] sm:$0xff] %v4013
        %4086 = vst [vmem:[%s795 + $0x190] sm:$0xff] %v3790
        %4087 = vst [vmem:[%s795 + $0x198] sm:$0xff] %v4016
        %4088 = vst [vmem:[%s795 + $0x1a0] sm:$0xff] %v3793
        %4089 = vst [vmem:[%s795 + $0x1a8] sm:$0xff] %v4019
        %4090 = vst [vmem:[%s795 + $0x1b0] sm:$0xff] %v3796
        %4091 = vst [vmem:[%s795 + $0x1b8] sm:$0xff] %v4022
        %4092 = vst [vmem:[%s795 + $0x1c0] sm:$0xff] %v3799
        %4093 = vst [vmem:[%s795 + $0x1c8] sm:$0xff] %v4025
        %4094 = vst [vmem:[%s795 + $0x1d0] sm:$0xff] %v3802
        %4095 = vst [vmem:[%s795 + $0x1d8] sm:$0xff] %v4028
        %4096 = vst [vmem:[%s795 + $0x1e0] sm:$0xff] %v3805
        %4097 = vst [vmem:[%s795 + $0x1e8] sm:$0xff] %v4031
        %4098 = vst [vmem:[%s795 + $0x1f0] sm:$0xff] %v3808
        %4099 = vst [vmem:[%s795 + $0x1f8] sm:$0xff] %v4034
        %v4100 = vmul.f32 %v3715, 0.2
        %v4101 = vmul.f32 %v3941, 0.2
        %v4102 = vmul.f32 %v3718, 0.2
        %v4103 = vmul.f32 %v3944, 0.2
        %v4104 = vmul.f32 %v3721, 0.2
        %v4105 = vmul.f32 %v3947, 0.2
        %v4106 = vmul.f32 %v3724, 0.2
        %v4107 = vmul.f32 %v3950, 0.2
        %v4108 = vmul.f32 %v3727, 0.2
        %v4109 = vmul.f32 %v3953, 0.2
        %v4110 = vmul.f32 %v3730, 0.2
        %v4111 = vmul.f32 %v3956, 0.2
        %v4112 = vmul.f32 %v3733, 0.2
        %v4113 = vmul.f32 %v3959, 0.2
        %v4114 = vmul.f32 %v3736, 0.2
        %v4115 = vmul.f32 %v3962, 0.2
        %v4116 = vmul.f32 %v3739, 0.2
        %v4117 = vmul.f32 %v3965, 0.2
        %v4118 = vmul.f32 %v3742, 0.2
        %v4119 = vmul.f32 %v3968, 0.2
        %v4120 = vmul.f32 %v3745, 0.2
        %v4121 = vmul.f32 %v3971, 0.2
        %v4122 = vmul.f32 %v3748, 0.2
        %v4123 = vmul.f32 %v3974, 0.2
        %v4124 = vmul.f32 %v3751, 0.2
        %v4125 = vmul.f32 %v3977, 0.2
        %v4126 = vmul.f32 %v3754, 0.2
        %v4127 = vmul.f32 %v3980, 0.2
        %v4128 = vmul.f32 %v3757, 0.2
        %v4129 = vmul.f32 %v3983, 0.2
        %v4130 = vmul.f32 %v3760, 0.2
        %v4131 = vmul.f32 %v3986, 0.2
        %v4132 = vmul.f32 %v3763, 0.2
        %v4133 = vmul.f32 %v3989, 0.2
        %v4134 = vmul.f32 %v3766, 0.2
        %v4135 = vmul.f32 %v3992, 0.2
        %v4136 = vmul.f32 %v3769, 0.2
        %v4137 = vmul.f32 %v3995, 0.2
        %v4138 = vmul.f32 %v3772, 0.2
        %v4139 = vmul.f32 %v3998, 0.2
        %v4140 = vmul.f32 %v3775, 0.2
        %v4141 = vmul.f32 %v4001, 0.2
        %v4142 = vmul.f32 %v3778, 0.2
        %v4143 = vmul.f32 %v4004, 0.2
        %v4144 = vmul.f32 %v3781, 0.2
        %v4145 = vmul.f32 %v4007, 0.2
        %v4146 = vmul.f32 %v3784, 0.2
        %v4147 = vmul.f32 %v4010, 0.2
        %v4148 = vmul.f32 %v3787, 0.2
        %v4149 = vmul.f32 %v4013, 0.2
        %v4150 = vmul.f32 %v3790, 0.2
        %v4151 = vmul.f32 %v4016, 0.2
        %v4152 = vmul.f32 %v3793, 0.2
        %v4153 = vmul.f32 %v4019, 0.2
        %v4154 = vmul.f32 %v3796, 0.2
        %v4155 = vmul.f32 %v4022, 0.2
        %v4156 = vmul.f32 %v3799, 0.2
        %v4157 = vmul.f32 %v4025, 0.2
        %v4158 = vmul.f32 %v3802, 0.2
        %v4159 = vmul.f32 %v4028, 0.2
        %v4160 = vmul.f32 %v3805, 0.2
        %v4161 = vmul.f32 %v4031, 0.2
        %v4162 = vmul.f32 %v3808, 0.2
        %v4163 = vmul.f32 %v4034, 0.2
        %v4164 = vmax.f32 %v3715, %v4100
        %v4165 = vmax.f32 %v3941, %v4101
        %v4166 = vmax.f32 %v3718, %v4102
        %v4167 = vmax.f32 %v3944, %v4103
        %v4168 = vmax.f32 %v3721, %v4104
        %v4169 = vmax.f32 %v3947, %v4105
        %v4170 = vmax.f32 %v3724, %v4106
        %v4171 = vmax.f32 %v3950, %v4107
        %v4172 = vmax.f32 %v3727, %v4108
        %v4173 = vmax.f32 %v3953, %v4109
        %v4174 = vmax.f32 %v3730, %v4110
        %v4175 = vmax.f32 %v3956, %v4111
        %v4176 = vmax.f32 %v3733, %v4112
        %v4177 = vmax.f32 %v3959, %v4113
        %v4178 = vmax.f32 %v3736, %v4114
        %v4179 = vmax.f32 %v3962, %v4115
        %v4180 = vmax.f32 %v3739, %v4116
        %v4181 = vmax.f32 %v3965, %v4117
        %v4182 = vmax.f32 %v3742, %v4118
        %v4183 = vmax.f32 %v3968, %v4119
        %v4184 = vmax.f32 %v3745, %v4120
        %v4185 = vmax.f32 %v3971, %v4121
        %v4186 = vmax.f32 %v3748, %v4122
        %v4187 = vmax.f32 %v3974, %v4123
        %v4188 = vmax.f32 %v3751, %v4124
        %v4189 = vmax.f32 %v3977, %v4125
        %v4190 = vmax.f32 %v3754, %v4126
        %v4191 = vmax.f32 %v3980, %v4127
        %v4192 = vmax.f32 %v3757, %v4128
        %v4193 = vmax.f32 %v3983, %v4129
        %v4194 = vmax.f32 %v3760, %v4130
        %v4195 = vmax.f32 %v3986, %v4131
        %v4196 = vmax.f32 %v3763, %v4132
        %v4197 = vmax.f32 %v3989, %v4133
        %v4198 = vmax.f32 %v3766, %v4134
        %v4199 = vmax.f32 %v3992, %v4135
        %v4200 = vmax.f32 %v3769, %v4136
        %v4201 = vmax.f32 %v3995, %v4137
        %v4202 = vmax.f32 %v3772, %v4138
        %v4203 = vmax.f32 %v3998, %v4139
        %v4204 = vmax.f32 %v3775, %v4140
        %v4205 = vmax.f32 %v4001, %v4141
        %v4206 = vmax.f32 %v3778, %v4142
        %v4207 = vmax.f32 %v4004, %v4143
        %v4208 = vmax.f32 %v3781, %v4144
        %v4209 = vmax.f32 %v4007, %v4145
        %v4210 = vmax.f32 %v3784, %v4146
        %v4211 = vmax.f32 %v4010, %v4147
        %v4212 = vmax.f32 %v3787, %v4148
        %v4213 = vmax.f32 %v4013, %v4149
        %v4214 = vmax.f32 %v3790, %v4150
        %v4215 = vmax.f32 %v4016, %v4151
        %v4216 = vmax.f32 %v3793, %v4152
        %v4217 = vmax.f32 %v4019, %v4153
        %v4218 = vmax.f32 %v3796, %v4154
        %v4219 = vmax.f32 %v4022, %v4155
        %v4220 = vmax.f32 %v3799, %v4156
        %v4221 = vmax.f32 %v4025, %v4157
        %v4222 = vmax.f32 %v3802, %v4158
        %v4223 = vmax.f32 %v4028, %v4159
        %v4224 = vmax.f32 %v3805, %v4160
        %v4225 = vmax.f32 %v4031, %v4161
        %v4226 = vmax.f32 %v3808, %v4162
        %v4227 = vmax.f32 %v4034, %v4163
        %4228 = vst [vmem:[%s802] sm:$0xff] %v4164
        %4229 = vst [vmem:[%s802 + $0x8] sm:$0xff] %v4165
        %4230 = vst [vmem:[%s802 + $0x10] sm:$0xff] %v4166
        %4231 = vst [vmem:[%s802 + $0x18] sm:$0xff] %v4167
        %4232 = vst [vmem:[%s802 + $0x20] sm:$0xff] %v4168
        %4233 = vst [vmem:[%s802 + $0x28] sm:$0xff] %v4169
        %4234 = vst [vmem:[%s802 + $0x30] sm:$0xff] %v4170
        %4235 = vst [vmem:[%s802 + $0x38] sm:$0xff] %v4171
        %4236 = vst [vmem:[%s802 + $0x40] sm:$0xff] %v4172
        %4237 = vst [vmem:[%s802 + $0x48] sm:$0xff] %v4173
        %4238 = vst [vmem:[%s802 + $0x50] sm:$0xff] %v4174
        %4239 = vst [vmem:[%s802 + $0x58] sm:$0xff] %v4175
        %4240 = vst [vmem:[%s802 + $0x60] sm:$0xff] %v4176
        %4241 = vst [vmem:[%s802 + $0x68] sm:$0xff] %v4177
        %4242 = vst [vmem:[%s802 + $0x70] sm:$0xff] %v4178
        %4243 = vst [vmem:[%s802 + $0x78] sm:$0xff] %v4179
        %4244 = vst [vmem:[%s802 + $0x80] sm:$0xff] %v4180
        %4245 = vst [vmem:[%s802 + $0x88] sm:$0xff] %v4181
        %4246 = vst [vmem:[%s802 + $0x90] sm:$0xff] %v4182
        %4247 = vst [vmem:[%s802 + $0x98] sm:$0xff] %v4183
        %4248 = vst [vmem:[%s802 + $0xa0] sm:$0xff] %v4184
        %4249 = vst [vmem:[%s802 + $0xa8] sm:$0xff] %v4185
        %4250 = vst [vmem:[%s802 + $0xb0] sm:$0xff] %v4186
        %4251 = vst [vmem:[%s802 + $0xb8] sm:$0xff] %v4187
        %4252 = vst [vmem:[%s802 + $0xc0] sm:$0xff] %v4188
        %4253 = vst [vmem:[%s802 + $0xc8] sm:$0xff] %v4189
        %4254 = vst [vmem:[%s802 + $0xd0] sm:$0xff] %v4190
        %4255 = vst [vmem:[%s802 + $0xd8] sm:$0xff] %v4191
        %4256 = vst [vmem:[%s802 + $0xe0] sm:$0xff] %v4192
        %4257 = vst [vmem:[%s802 + $0xe8] sm:$0xff] %v4193
        %4258 = vst [vmem:[%s802 + $0xf0] sm:$0xff] %v4194
        %4259 = vst [vmem:[%s802 + $0xf8] sm:$0xff] %v4195
        %4260 = vst [vmem:[%s802 + $0x100] sm:$0xff] %v4196
        %4261 = vst [vmem:[%s802 + $0x108] sm:$0xff] %v4197
        %4262 = vst [vmem:[%s802 + $0x110] sm:$0xff] %v4198
        %4263 = vst [vmem:[%s802 + $0x118] sm:$0xff] %v4199
        %4264 = vst [vmem:[%s802 + $0x120] sm:$0xff] %v4200
        %4265 = vst [vmem:[%s802 + $0x128] sm:$0xff] %v4201
        %4266 = vst [vmem:[%s802 + $0x130] sm:$0xff] %v4202
        %4267 = vst [vmem:[%s802 + $0x138] sm:$0xff] %v4203
        %4268 = vst [vmem:[%s802 + $0x140] sm:$0xff] %v4204
        %4269 = vst [vmem:[%s802 + $0x148] sm:$0xff] %v4205
        %4270 = vst [vmem:[%s802 + $0x150] sm:$0xff] %v4206
        %4271 = vst [vmem:[%s802 + $0x158] sm:$0xff] %v4207
        %4272 = vst [vmem:[%s802 + $0x160] sm:$0xff] %v4208
        %4273 = vst [vmem:[%s802 + $0x168] sm:$0xff] %v4209
        %4274 = vst [vmem:[%s802 + $0x170] sm:$0xff] %v4210
        %4275 = vst [vmem:[%s802 + $0x178] sm:$0xff] %v4211
        %4276 = vst [vmem:[%s802 + $0x180] sm:$0xff] %v4212
        %4277 = vst [vmem:[%s802 + $0x188] sm:$0xff] %v4213
        %4278 = vst [vmem:[%s802 + $0x190] sm:$0xff] %v4214
        %4279 = vst [vmem:[%s802 + $0x198] sm:$0xff] %v4215
        %4280 = vst [vmem:[%s802 + $0x1a0] sm:$0xff] %v4216
        %4281 = vst [vmem:[%s802 + $0x1a8] sm:$0xff] %v4217
        %4282 = vst [vmem:[%s802 + $0x1b0] sm:$0xff] %v4218
        %4283 = vst [vmem:[%s802 + $0x1b8] sm:$0xff] %v4219
        %4284 = vst [vmem:[%s802 + $0x1c0] sm:$0xff] %v4220
        %4285 = vst [vmem:[%s802 + $0x1c8] sm:$0xff] %v4221
        %4286 = vst [vmem:[%s802 + $0x1d0] sm:$0xff] %v4222
        %4287 = vst [vmem:[%s802 + $0x1d8] sm:$0xff] %v4223
        %4288 = vst [vmem:[%s802 + $0x1e0] sm:$0xff] %v4224
        %4289 = vst [vmem:[%s802 + $0x1e8] sm:$0xff] %v4225
        %4290 = vst [vmem:[%s802 + $0x1f0] sm:$0xff] %v4226
        %4291 = vst [vmem:[%s802 + $0x1f8] sm:$0xff] %v4227
        %v4292 = vld [vmem:[%s802] sm:$0xff]
        %v4293 = vld [vmem:[%s802 + $0x8] sm:$0xff]
        %v4294 = vld [vmem:[%s802 + $0x10] sm:$0xff]
        %v4295 = vld [vmem:[%s802 + $0x18] sm:$0xff]
        %v4296 = vld [vmem:[%s802 + $0x20] sm:$0xff]
        %v4297 = vld [vmem:[%s802 + $0x28] sm:$0xff]
        %v4298 = vld [vmem:[%s802 + $0x30] sm:$0xff]
        %v4299 = vld [vmem:[%s802 + $0x38] sm:$0xff]
        %v4300 = vld [vmem:[%s802 + $0x40] sm:$0xff]
        %v4301 = vld [vmem:[%s802 + $0x48] sm:$0xff]
        %v4302 = vld [vmem:[%s802 + $0x50] sm:$0xff]
        %v4303 = vld [vmem:[%s802 + $0x58] sm:$0xff]
        %v4304 = vld [vmem:[%s802 + $0x60] sm:$0xff]
        %v4305 = vld [vmem:[%s802 + $0x68] sm:$0xff]
        %v4306 = vld [vmem:[%s802 + $0x70] sm:$0xff]
        %v4307 = vld [vmem:[%s802 + $0x78] sm:$0xff]
        %v4308 = vld [vmem:[%s802 + $0x80] sm:$0xff]
        %v4309 = vld [vmem:[%s802 + $0x88] sm:$0xff]
        %v4310 = vld [vmem:[%s802 + $0x90] sm:$0xff]
        %v4311 = vld [vmem:[%s802 + $0x98] sm:$0xff]
        %v4312 = vld [vmem:[%s802 + $0xa0] sm:$0xff]
        %v4313 = vld [vmem:[%s802 + $0xa8] sm:$0xff]
        %v4314 = vld [vmem:[%s802 + $0xb0] sm:$0xff]
        %v4315 = vld [vmem:[%s802 + $0xb8] sm:$0xff]
        %v4316 = vld [vmem:[%s802 + $0xc0] sm:$0xff]
        %v4317 = vld [vmem:[%s802 + $0xc8] sm:$0xff]
        %v4318 = vld [vmem:[%s802 + $0xd0] sm:$0xff]
        %v4319 = vld [vmem:[%s802 + $0xd8] sm:$0xff]
        %v4320 = vld [vmem:[%s802 + $0xe0] sm:$0xff]
        %v4321 = vld [vmem:[%s802 + $0xe8] sm:$0xff]
        %v4322 = vld [vmem:[%s802 + $0xf0] sm:$0xff]
        %v4323 = vld [vmem:[%s802 + $0xf8] sm:$0xff]
        %v4324 = vld [vmem:[%s802 + $0x100] sm:$0xff]
        %v4325 = vld [vmem:[%s802 + $0x108] sm:$0xff]
        %v4326 = vld [vmem:[%s802 + $0x110] sm:$0xff]
        %v4327 = vld [vmem:[%s802 + $0x118] sm:$0xff]
        %v4328 = vld [vmem:[%s802 + $0x120] sm:$0xff]
        %v4329 = vld [vmem:[%s802 + $0x128] sm:$0xff]
        %v4330 = vld [vmem:[%s802 + $0x130] sm:$0xff]
        %v4331 = vld [vmem:[%s802 + $0x138] sm:$0xff]
        %v4332 = vld [vmem:[%s802 + $0x140] sm:$0xff]
        %v4333 = vld [vmem:[%s802 + $0x148] sm:$0xff]
        %v4334 = vld [vmem:[%s802 + $0x150] sm:$0xff]
        %v4335 = vld [vmem:[%s802 + $0x158] sm:$0xff]
        %v4336 = vld [vmem:[%s802 + $0x160] sm:$0xff]
        %v4337 = vld [vmem:[%s802 + $0x168] sm:$0xff]
        %v4338 = vld [vmem:[%s802 + $0x170] sm:$0xff]
        %v4339 = vld [vmem:[%s802 + $0x178] sm:$0xff]
        %v4340 = vld [vmem:[%s802 + $0x180] sm:$0xff]
        %v4341 = vld [vmem:[%s802 + $0x188] sm:$0xff]
        %v4342 = vld [vmem:[%s802 + $0x190] sm:$0xff]
        %v4343 = vld [vmem:[%s802 + $0x198] sm:$0xff]
        %v4344 = vld [vmem:[%s802 + $0x1a0] sm:$0xff]
        %v4345 = vld [vmem:[%s802 + $0x1a8] sm:$0xff]
        %v4346 = vld [vmem:[%s802 + $0x1b0] sm:$0xff]
        %v4347 = vld [vmem:[%s802 + $0x1b8] sm:$0xff]
        %v4348 = vld [vmem:[%s802 + $0x1c0] sm:$0xff]
        %v4349 = vld [vmem:[%s802 + $0x1c8] sm:$0xff]
        %v4350 = vld [vmem:[%s802 + $0x1d0] sm:$0xff]
        %v4351 = vld [vmem:[%s802 + $0x1d8] sm:$0xff]
        %v4352 = vld [vmem:[%s802 + $0x1e0] sm:$0xff]
        %v4353 = vld [vmem:[%s802 + $0x1e8] sm:$0xff]
        %v4354 = vld [vmem:[%s802 + $0x1f0] sm:$0xff]
        %v4355 = vld [vmem:[%s802 + $0x1f8] sm:$0xff]
        %v4356 = vld [vmem:[%s11] sm:$0x3]
        %v4357 = vld [vmem:[#allocation2] sm:$0x1]
        %4359 = vset.pattern.permute.xlu0 0
        %4360 = vperm.xlu0 %4359, %v4357
        %v4361 = vpop.permute.xlu0 %4360
        %v4363 = vperm.slane %v4361, 0
        %v4365 = vperm.slane %v4356, 0
        %v4366 = vperm.slane %v4356, 1
        %4369 = vmatpush.msra.mxu0 %v4322
        %4370 = vmatpush.msra.mxu0 %v4320
        %4371 = vmatpush.msra.mxu0 %v4318
        %4372 = vmatpush.msra.mxu0 %v4316
        %4373 = vmatpush.msra.mxu0 %v4314
        %4374 = vmatpush.msra.mxu0 %v4312
        %4375 = vmatpush.msra.mxu0 %v4310
        %4376 = vmatpush.msra.mxu0 %v4308
        %4377 = vmatpush.msra.mxu0 %v4306
        %4378 = vmatpush.msra.mxu0 %v4304
        %4379 = vmatpush.msra.mxu0 %v4302
        %4380 = vmatpush.msra.mxu0 %v4300
        %4381 = vmatpush.msra.mxu0 %v4298
        %4382 = vmatpush.msra.mxu0 %v4296
        %4383 = vmatpush.msra.mxu0 %v4294
        %4384 = vmatpush.msra.mxu0 %v4292
        %4385 = vmatmul.f32.gmra.mxu0 %v4365
        %v4386 = vpop.f32.mrf.mxu0
        %v4387 = vadd.f32 %v4363, %v4386
        %4388 = vdwg.mxu0
        %4389 = vmatpush.msra.mxu0 %v4354
        %4390 = vmatpush.msra.mxu0 %v4352
        %4391 = vmatpush.msra.mxu0 %v4350
        %4392 = vmatpush.msra.mxu0 %v4348
        %4393 = vmatpush.msra.mxu0 %v4346
        %4394 = vmatpush.msra.mxu0 %v4344
        %4395 = vmatpush.msra.mxu0 %v4342
        %4396 = vmatpush.msra.mxu0 %v4340
        %4397 = vmatpush.msra.mxu0 %v4338
        %4398 = vmatpush.msra.mxu0 %v4336
        %4399 = vmatpush.msra.mxu0 %v4334
        %4400 = vmatpush.msra.mxu0 %v4332
        %4401 = vmatpush.msra.mxu0 %v4330
        %4402 = vmatpush.msra.mxu0 %v4328
        %4403 = vmatpush.msra.mxu0 %v4326
        %4404 = vmatpush.msra.mxu0 %v4324
        %4405 = vmatmul.f32.gmra.mxu0 %v4366
        %v4406 = vpop.f32.mrf.mxu0
        %v4407 = vadd.f32 %v4387, %v4406
        %4408 = vdwg.mxu0
        %4409 = vmatpush.msra.mxu0 %v4323
        %4410 = vmatpush.msra.mxu0 %v4321
        %4411 = vmatpush.msra.mxu0 %v4319
        %4412 = vmatpush.msra.mxu0 %v4317
        %4413 = vmatpush.msra.mxu0 %v4315
        %4414 = vmatpush.msra.mxu0 %v4313
        %4415 = vmatpush.msra.mxu0 %v4311
        %4416 = vmatpush.msra.mxu0 %v4309
        %4417 = vmatpush.msra.mxu0 %v4307
        %4418 = vmatpush.msra.mxu0 %v4305
        %4419 = vmatpush.msra.mxu0 %v4303
        %4420 = vmatpush.msra.mxu0 %v4301
        %4421 = vmatpush.msra.mxu0 %v4299
        %4422 = vmatpush.msra.mxu0 %v4297
        %4423 = vmatpush.msra.mxu0 %v4295
        %4424 = vmatpush.msra.mxu0 %v4293
        %4425 = vmatmul.f32.gmra.mxu0 %v4365
        %v4426 = vpop.f32.mrf.mxu0
        %v4427 = vadd.f32 %v4363, %v4426
        %4428 = vdwg.mxu0
        %4429 = vmatpush.msra.mxu0 %v4355
        %4430 = vmatpush.msra.mxu0 %v4353
        %4431 = vmatpush.msra.mxu0 %v4351
        %4432 = vmatpush.msra.mxu0 %v4349
        %4433 = vmatpush.msra.mxu0 %v4347
        %4434 = vmatpush.msra.mxu0 %v4345
        %4435 = vmatpush.msra.mxu0 %v4343
        %4436 = vmatpush.msra.mxu0 %v4341
        %4437 = vmatpush.msra.mxu0 %v4339
        %4438 = vmatpush.msra.mxu0 %v4337
        %4439 = vmatpush.msra.mxu0 %v4335
        %4440 = vmatpush.msra.mxu0 %v4333
        %4441 = vmatpush.msra.mxu0 %v4331
        %4442 = vmatpush.msra.mxu0 %v4329
        %4443 = vmatpush.msra.mxu0 %v4327
        %4444 = vmatpush.msra.mxu0 %v4325
        %4445 = vmatmul.f32.gmra.mxu0 %v4366
        %v4446 = vpop.f32.mrf.mxu0
        %v4447 = vadd.f32 %v4427, %v4446
        %4448 = vdwg.mxu0
        %v4451 = vrot.slane %v4447, 7
        %vm4452 = vcmask 1040384
        %v4453 = vsel %vm4452, %v4407, %v4451
        %v4455 = vlaneseq
        %vm4456 = vcmp.ge.s32.totalorder %v4455, 0
        %vm4457 = vcmp.lt.s32.totalorder %v4455, 256
        %vm4458 = vmand %vm4456, %vm4457
        %4459 = vst.msk [vmem:[%s809] sm:$0x3] %vm4458, %v4453
        %s4460 = sand.u32 %s342, 1
        %s4461 = scalar_lea.sflag [#allocation5], %s4460
        %s4462 = sand.u32 %s342, 1
        %s4463 = smul.addr %s4462, 128
        %s4464 = scalar_lea.vmem [#allocation6], %s4463
        %s4465 = sand.u32 %s56, 1
        %s4466 = scalar_lea.sflag [#allocation8], %s4465
        %s4467 = sand.u32 %s368, 1
        %s4468 = smul.addr %s4467, 128
        %s4469 = scalar_lea.vmem [#allocation7], %s4468
        %s4470 = sand.u32 %s56, 1
        %s4471 = scalar_lea.sflag [#allocation8], %s4470
        %s4472 = sand.u32 %s394, 1
        %s4473 = smul.addr %s4472, 256
        %s4474 = scalar_lea.vmem [#allocation9], %s4473
        %s4475 = sand.u32 %s56, 1
        %s4476 = scalar_lea.sflag [#allocation11], %s4475
        %s4477 = sand.u32 %s420, 1
        %s4478 = smul.addr %s4477, 256
        %s4479 = scalar_lea.vmem [#allocation10], %s4478
        %s4480 = sand.u32 %s56, 1
        %s4481 = scalar_lea.sflag [#allocation11], %s4480
        %s4482 = sand.u32 %s446, 1
        %s4483 = smul.addr %s4482, 512
        %s4484 = scalar_lea.vmem [#allocation12], %s4483
        %s4485 = sand.u32 %s56, 1
        %s4486 = scalar_lea.sflag [#allocation14], %s4485
        %s4487 = sand.u32 %s472, 1
        %s4488 = smul.addr %s4487, 512
        %s4489 = scalar_lea.vmem [#allocation13], %s4488
        %s4490 = sand.u32 %s56, 1
        %s4491 = scalar_lea.sflag [#allocation14], %s4490
        %s4492 = sand.u32 %s498, 1
        %s4493 = smul.addr %s4492, 512
        %s4494 = scalar_lea.vmem [#allocation15], %s4493
        %s4495 = sand.u32 %s56, 1
        %s4496 = scalar_lea.sflag [#allocation17], %s4495
        %s4497 = sand.u32 %s524, 1
        %s4498 = smul.addr %s4497, 512
        %s4499 = scalar_lea.vmem [#allocation16], %s4498
        %s4500 = sand.u32 %s56, 1
        %s4501 = scalar_lea.sflag [#allocation17], %s4500
        %s4502 = sand.u32 %s550, 1
        %s4503 = smul.addr %s4502, 512
        %s4504 = scalar_lea.vmem [#allocation18], %s4503
        %s4505 = sand.u32 %s56, 1
        %s4506 = scalar_lea.sflag [#allocation20], %s4505
        %s4507 = sand.u32 %s576, 1
        %s4508 = smul.addr %s4507, 512
        %s4509 = scalar_lea.vmem [#allocation19], %s4508
        %s4510 = sand.u32 %s56, 1
        %s4511 = scalar_lea.sflag [#allocation20], %s4510
        %s4512 = sand.u32 %s602, 1
        %s4513 = smul.addr %s4512, 2
        %s4514 = scalar_lea.vmem [#allocation21], %s4513
        // Predicated region
        $region77: #{tpu_custom_call.1} parent=71 // pred_check
          %p4515 = pneg %p352
        $region78: #{tpu_custom_call.1} parent=71 // pred_check_branch
          %4517 = sbr.rel (%p4515) target = $region80
        $region79: #{tpu_custom_call.1} parent=71 // pred_region
          %s4518 = smul.u32 2, %s56
          %4520 = vsyncadd %s4461, 0
          %s4521 = smul.addr %s4518, 8
          %s4522 = scalar_lea.hbm %s13, %s4521
          %s4523 = sshll.u32 %s4464, 4
          %s4524 = int_to_ptr.vmem [resolvable:$true] %s4523
          %s4525 = sshll.u32 %s4522, 4
          %s4526 = int_to_ptr.hbm [resolvable:$true] %s4525
          %4531 = dma.vmem_to_hbm [thread:$0]  %s4524, 2048, %s4526, %s4461, 256, 512, 16
        $region80: #{tpu_custom_call.1} parent=71 // pred_fallthru
          _
        // Predicated region
        $region81: #{tpu_custom_call.1} parent=71 // pred_check
          %p4532 = pneg %p378
        $region82: #{tpu_custom_call.1} parent=71 // pred_check_branch
          %4534 = sbr.rel (%p4532) target = $region84
        $region83: #{tpu_custom_call.1} parent=71 // pred_region
          %s4535 = smul.u32 2, %s56
          %4537 = vsyncadd %s4466, 0
          %s4538 = smul.addr %s4535, 8
          %s4539 = scalar_lea.hbm %s14, %s4538
          %s4540 = sshll.u32 %s4469, 4
          %s4541 = int_to_ptr.vmem [resolvable:$true] %s4540
          %s4542 = sshll.u32 %s4539, 4
          %s4543 = int_to_ptr.hbm [resolvable:$true] %s4542
          %4548 = dma.vmem_to_hbm [thread:$0]  %s4541, 2048, %s4543, %s4466, 256, 512, 16
        $region84: #{tpu_custom_call.1} parent=71 // pred_fallthru
          _
        // Predicated region
        $region85: #{tpu_custom_call.1} parent=71 // pred_check
          %p4549 = pneg %p404
        $region86: #{tpu_custom_call.1} parent=71 // pred_check_branch
          %4551 = sbr.rel (%p4549) target = $region88
        $region87: #{tpu_custom_call.1} parent=71 // pred_region
          %s4552 = smul.u32 2, %s56
          %4554 = vsyncadd %s4471, 0
          %s4555 = smul.addr %s4552, 8
          %s4556 = scalar_lea.hbm %s15, %s4555
          %s4557 = sshll.u32 %s4474, 4
          %s4558 = int_to_ptr.vmem [resolvable:$true] %s4557
          %s4559 = sshll.u32 %s4556, 4
          %s4560 = int_to_ptr.hbm [resolvable:$true] %s4559
          %4565 = dma.vmem_to_hbm [thread:$0]  %s4558, 4096, %s4560, %s4471, 256, 512, 16
        $region88: #{tpu_custom_call.1} parent=71 // pred_fallthru
          _
        // Predicated region
        $region89: #{tpu_custom_call.1} parent=71 // pred_check
          %p4566 = pneg %p430
        $region90: #{tpu_custom_call.1} parent=71 // pred_check_branch
          %4568 = sbr.rel (%p4566) target = $region92
        $region91: #{tpu_custom_call.1} parent=71 // pred_region
          %s4569 = smul.u32 2, %s56
          %4571 = vsyncadd %s4476, 0
          %s4572 = smul.addr %s4569, 8
          %s4573 = scalar_lea.hbm %s16, %s4572
          %s4574 = sshll.u32 %s4479, 4
          %s4575 = int_to_ptr.vmem [resolvable:$true] %s4574
          %s4576 = sshll.u32 %s4573, 4
          %s4577 = int_to_ptr.hbm [resolvable:$true] %s4576
          %4582 = dma.vmem_to_hbm [thread:$0]  %s4575, 4096, %s4577, %s4476, 256, 512, 16
        $region92: #{tpu_custom_call.1} parent=71 // pred_fallthru
          _
        // Predicated region
        $region93: #{tpu_custom_call.1} parent=71 // pred_check
          %p4583 = pneg %p456
        $region94: #{tpu_custom_call.1} parent=71 // pred_check_branch
          %4585 = sbr.rel (%p4583) target = $region96
        $region95: #{tpu_custom_call.1} parent=71 // pred_region
          %s4586 = smul.u32 2, %s56
          %4588 = vsyncadd %s4481, 0
          %s4589 = smul.addr %s4586, 8
          %s4590 = scalar_lea.hbm %s17, %s4589
          %s4591 = sshll.u32 %s4484, 4
          %s4592 = int_to_ptr.vmem [resolvable:$true] %s4591
          %s4593 = sshll.u32 %s4590, 4
          %s4594 = int_to_ptr.hbm [resolvable:$true] %s4593
          %4599 = dma.vmem_to_hbm [thread:$0]  %s4592, 8192, %s4594, %s4481, 256, 512, 16
        $region96: #{tpu_custom_call.1} parent=71 // pred_fallthru
          _
        // Predicated region
        $region97: #{tpu_custom_call.1} parent=71 // pred_check
          %p4600 = pneg %p482
        $region98: #{tpu_custom_call.1} parent=71 // pred_check_branch
          %4602 = sbr.rel (%p4600) target = $region100
        $region99: #{tpu_custom_call.1} parent=71 // pred_region
          %s4603 = smul.u32 2, %s56
          %4605 = vsyncadd %s4486, 0
          %s4606 = smul.addr %s4603, 8
          %s4607 = scalar_lea.hbm %s18, %s4606
          %s4608 = sshll.u32 %s4489, 4
          %s4609 = int_to_ptr.vmem [resolvable:$true] %s4608
          %s4610 = sshll.u32 %s4607, 4
          %s4611 = int_to_ptr.hbm [resolvable:$true] %s4610
          %4616 = dma.vmem_to_hbm [thread:$0]  %s4609, 8192, %s4611, %s4486, 256, 512, 16
        $region100: #{tpu_custom_call.1} parent=71 // pred_fallthru
          _
        // Predicated region
        $region101: #{tpu_custom_call.1} parent=71 // pred_check
          %p4617 = pneg %p508
        $region102: #{tpu_custom_call.1} parent=71 // pred_check_branch
          %4619 = sbr.rel (%p4617) target = $region104
        $region103: #{tpu_custom_call.1} parent=71 // pred_region
          %s4620 = smul.u32 2, %s56
          %4622 = vsyncadd %s4491, 0
          %s4623 = smul.addr %s4620, 8
          %s4624 = scalar_lea.hbm %s19, %s4623
          %s4625 = sshll.u32 %s4494, 4
          %s4626 = int_to_ptr.vmem [resolvable:$true] %s4625
          %s4627 = sshll.u32 %s4624, 4
          %s4628 = int_to_ptr.hbm [resolvable:$true] %s4627
          %4633 = dma.vmem_to_hbm [thread:$0]  %s4626, 8192, %s4628, %s4491, 256, 512, 16
        $region104: #{tpu_custom_call.1} parent=71 // pred_fallthru
          _
        // Predicated region
        $region105: #{tpu_custom_call.1} parent=71 // pred_check
          %p4634 = pneg %p534
        $region106: #{tpu_custom_call.1} parent=71 // pred_check_branch
          %4636 = sbr.rel (%p4634) target = $region108
        $region107: #{tpu_custom_call.1} parent=71 // pred_region
          %s4637 = smul.u32 2, %s56
          %4639 = vsyncadd %s4496, 0
          %s4640 = smul.addr %s4637, 8
          %s4641 = scalar_lea.hbm %s20, %s4640
          %s4642 = sshll.u32 %s4499, 4
          %s4643 = int_to_ptr.vmem [resolvable:$true] %s4642
          %s4644 = sshll.u32 %s4641, 4
          %s4645 = int_to_ptr.hbm [resolvable:$true] %s4644
          %4650 = dma.vmem_to_hbm [thread:$0]  %s4643, 8192, %s4645, %s4496, 256, 512, 16
        $region108: #{tpu_custom_call.1} parent=71 // pred_fallthru
          _
        // Predicated region
        $region109: #{tpu_custom_call.1} parent=71 // pred_check
          %p4651 = pneg %p560
        $region110: #{tpu_custom_call.1} parent=71 // pred_check_branch
          %4653 = sbr.rel (%p4651) target = $region112
        $region111: #{tpu_custom_call.1} parent=71 // pred_region
          %s4654 = smul.u32 2, %s56
          %4656 = vsyncadd %s4501, 0
          %s4657 = smul.addr %s4654, 8
          %s4658 = scalar_lea.hbm %s21, %s4657
          %s4659 = sshll.u32 %s4504, 4
          %s4660 = int_to_ptr.vmem [resolvable:$true] %s4659
          %s4661 = sshll.u32 %s4658, 4
          %s4662 = int_to_ptr.hbm [resolvable:$true] %s4661
          %4667 = dma.vmem_to_hbm [thread:$0]  %s4660, 8192, %s4662, %s4501, 256, 512, 16
        $region112: #{tpu_custom_call.1} parent=71 // pred_fallthru
          _
        // Predicated region
        $region113: #{tpu_custom_call.1} parent=71 // pred_check
          %p4668 = pneg %p586
        $region114: #{tpu_custom_call.1} parent=71 // pred_check_branch
          %4670 = sbr.rel (%p4668) target = $region116
        $region115: #{tpu_custom_call.1} parent=71 // pred_region
          %s4671 = smul.u32 2, %s56
          %4673 = vsyncadd %s4506, 0
          %s4674 = smul.addr %s4671, 8
          %s4675 = scalar_lea.hbm %s22, %s4674
          %s4676 = sshll.u32 %s4509, 4
          %s4677 = int_to_ptr.vmem [resolvable:$true] %s4676
          %s4678 = sshll.u32 %s4675, 4
          %s4679 = int_to_ptr.hbm [resolvable:$true] %s4678
          %4684 = dma.vmem_to_hbm [thread:$0]  %s4677, 8192, %s4679, %s4506, 256, 512, 16
        $region116: #{tpu_custom_call.1} parent=71 // pred_fallthru
          _
        // Predicated region
        $region117: #{tpu_custom_call.1} parent=71 // pred_check
          %p4685 = pneg %p612
        $region118: #{tpu_custom_call.1} parent=71 // pred_check_branch
          %4687 = sbr.rel (%p4685) target = $region120
        $region119: #{tpu_custom_call.1} parent=71 // pred_region
          %s4688 = smul.u32 2, %s56
          %4690 = vsyncadd %s4511, 0
          %s4691 = scalar_lea.hbm %s23, %s4688
          %s4693 = sshll.u32 %s4514, 4
          %s4694 = int_to_ptr.vmem [resolvable:$true] %s4693
          %s4695 = sshll.u32 %s4691, 4
          %s4696 = int_to_ptr.hbm [resolvable:$true] %s4695
          %4698 = dma.vmem_to_hbm [thread:$0]  %s4694, 32, %s4696, %s4511
        $region120: #{tpu_custom_call.1} parent=71 // pred_fallthru
          _
      $region72: #{tpu_custom_call.1} parent=5 // pred_fallthru
        _
      %p4699 = scmp.le.s32.totalorder 2, %s51
      // Predicated region
      $region121: #{tpu_custom_call.1} parent=5 // pred_check
        %p4700 = pneg %p4699
      $region122: #{tpu_custom_call.1} parent=5 // pred_check_branch
        %4702 = sbr.rel (%p4700) target = $region124
      $region123: #{tpu_custom_call.1} parent=5 // pred_region
        %s4703 = ssub.s32 %s51, 2
        // Predicated region
        $region125: #{tpu_custom_call.1} parent=123 // pred_check
          %p4704 = pneg %p358
        $region126: #{tpu_custom_call.1} parent=123 // pred_check_branch
          %4706 = sbr.rel (%p4704) target = $region128
        $region127: #{tpu_custom_call.1} parent=123 // pred_region
          %s4707 = sand.u32 %s343, 1
          %s4708 = scalar_lea.sflag [#allocation5], %s4707
          %s4709 = sand.u32 %s343, 1
          %s4710 = smul.addr %s4709, 128
          %s4711 = scalar_lea.vmem [#allocation6], %s4710
          %4713 = dma.done %s4708, 2048
        $region128: #{tpu_custom_call.1} parent=123 // pred_fallthru
          _
        // Predicated region
        $region129: #{tpu_custom_call.1} parent=123 // pred_check
          %p4714 = pneg %p384
        $region130: #{tpu_custom_call.1} parent=123 // pred_check_branch
          %4716 = sbr.rel (%p4714) target = $region132
        $region131: #{tpu_custom_call.1} parent=123 // pred_region
          %s4717 = sand.u32 %s57, 1
          %s4718 = scalar_lea.sflag [#allocation8], %s4717
          %s4719 = sand.u32 %s369, 1
          %s4720 = smul.addr %s4719, 128
          %s4721 = scalar_lea.vmem [#allocation7], %s4720
          %4723 = dma.done %s4718, 2048
        $region132: #{tpu_custom_call.1} parent=123 // pred_fallthru
          _
        // Predicated region
        $region133: #{tpu_custom_call.1} parent=123 // pred_check
          %p4724 = pneg %p410
        $region134: #{tpu_custom_call.1} parent=123 // pred_check_branch
          %4726 = sbr.rel (%p4724) target = $region136
        $region135: #{tpu_custom_call.1} parent=123 // pred_region
          %s4727 = sand.u32 %s57, 1
          %s4728 = scalar_lea.sflag [#allocation8], %s4727
          %s4729 = sand.u32 %s395, 1
          %s4730 = smul.addr %s4729, 256
          %s4731 = scalar_lea.vmem [#allocation9], %s4730
          %4733 = dma.done %s4728, 4096
        $region136: #{tpu_custom_call.1} parent=123 // pred_fallthru
          _
        // Predicated region
        $region137: #{tpu_custom_call.1} parent=123 // pred_check
          %p4734 = pneg %p436
        $region138: #{tpu_custom_call.1} parent=123 // pred_check_branch
          %4736 = sbr.rel (%p4734) target = $region140
        $region139: #{tpu_custom_call.1} parent=123 // pred_region
          %s4737 = sand.u32 %s57, 1
          %s4738 = scalar_lea.sflag [#allocation11], %s4737
          %s4739 = sand.u32 %s421, 1
          %s4740 = smul.addr %s4739, 256
          %s4741 = scalar_lea.vmem [#allocation10], %s4740
          %4743 = dma.done %s4738, 4096
        $region140: #{tpu_custom_call.1} parent=123 // pred_fallthru
          _
        // Predicated region
        $region141: #{tpu_custom_call.1} parent=123 // pred_check
          %p4744 = pneg %p462
        $region142: #{tpu_custom_call.1} parent=123 // pred_check_branch
          %4746 = sbr.rel (%p4744) target = $region144
        $region143: #{tpu_custom_call.1} parent=123 // pred_region
          %s4747 = sand.u32 %s57, 1
          %s4748 = scalar_lea.sflag [#allocation11], %s4747
          %s4749 = sand.u32 %s447, 1
          %s4750 = smul.addr %s4749, 512
          %s4751 = scalar_lea.vmem [#allocation12], %s4750
          %4753 = dma.done %s4748, 8192
        $region144: #{tpu_custom_call.1} parent=123 // pred_fallthru
          _
        // Predicated region
        $region145: #{tpu_custom_call.1} parent=123 // pred_check
          %p4754 = pneg %p488
        $region146: #{tpu_custom_call.1} parent=123 // pred_check_branch
          %4756 = sbr.rel (%p4754) target = $region148
        $region147: #{tpu_custom_call.1} parent=123 // pred_region
          %s4757 = sand.u32 %s57, 1
          %s4758 = scalar_lea.sflag [#allocation14], %s4757
          %s4759 = sand.u32 %s473, 1
          %s4760 = smul.addr %s4759, 512
          %s4761 = scalar_lea.vmem [#allocation13], %s4760
          %4763 = dma.done %s4758, 8192
        $region148: #{tpu_custom_call.1} parent=123 // pred_fallthru
          _
        // Predicated region
        $region149: #{tpu_custom_call.1} parent=123 // pred_check
          %p4764 = pneg %p514
        $region150: #{tpu_custom_call.1} parent=123 // pred_check_branch
          %4766 = sbr.rel (%p4764) target = $region152
        $region151: #{tpu_custom_call.1} parent=123 // pred_region
          %s4767 = sand.u32 %s57, 1
          %s4768 = scalar_lea.sflag [#allocation14], %s4767
          %s4769 = sand.u32 %s499, 1
          %s4770 = smul.addr %s4769, 512
          %s4771 = scalar_lea.vmem [#allocation15], %s4770
          %4773 = dma.done %s4768, 8192
        $region152: #{tpu_custom_call.1} parent=123 // pred_fallthru
          _
        // Predicated region
        $region153: #{tpu_custom_call.1} parent=123 // pred_check
          %p4774 = pneg %p540
        $region154: #{tpu_custom_call.1} parent=123 // pred_check_branch
          %4776 = sbr.rel (%p4774) target = $region156
        $region155: #{tpu_custom_call.1} parent=123 // pred_region
          %s4777 = sand.u32 %s57, 1
          %s4778 = scalar_lea.sflag [#allocation17], %s4777
          %s4779 = sand.u32 %s525, 1
          %s4780 = smul.addr %s4779, 512
          %s4781 = scalar_lea.vmem [#allocation16], %s4780
          %4783 = dma.done %s4778, 8192
        $region156: #{tpu_custom_call.1} parent=123 // pred_fallthru
          _
        // Predicated region
        $region157: #{tpu_custom_call.1} parent=123 // pred_check
          %p4784 = pneg %p566
        $region158: #{tpu_custom_call.1} parent=123 // pred_check_branch
          %4786 = sbr.rel (%p4784) target = $region160
        $region159: #{tpu_custom_call.1} parent=123 // pred_region
          %s4787 = sand.u32 %s57, 1
          %s4788 = scalar_lea.sflag [#allocation17], %s4787
          %s4789 = sand.u32 %s551, 1
          %s4790 = smul.addr %s4789, 512
          %s4791 = scalar_lea.vmem [#allocation18], %s4790
          %4793 = dma.done %s4788, 8192
        $region160: #{tpu_custom_call.1} parent=123 // pred_fallthru
          _
        // Predicated region
        $region161: #{tpu_custom_call.1} parent=123 // pred_check
          %p4794 = pneg %p592
        $region162: #{tpu_custom_call.1} parent=123 // pred_check_branch
          %4796 = sbr.rel (%p4794) target = $region164
        $region163: #{tpu_custom_call.1} parent=123 // pred_region
          %s4797 = sand.u32 %s57, 1
          %s4798 = scalar_lea.sflag [#allocation20], %s4797
          %s4799 = sand.u32 %s577, 1
          %s4800 = smul.addr %s4799, 512
          %s4801 = scalar_lea.vmem [#allocation19], %s4800
          %4803 = dma.done %s4798, 8192
        $region164: #{tpu_custom_call.1} parent=123 // pred_fallthru
          _
        // Predicated region
        $region165: #{tpu_custom_call.1} parent=123 // pred_check
          %p4804 = pneg %p618
        $region166: #{tpu_custom_call.1} parent=123 // pred_check_branch
          %4806 = sbr.rel (%p4804) target = $region168
        $region167: #{tpu_custom_call.1} parent=123 // pred_region
          %s4807 = sand.u32 %s57, 1
          %s4808 = scalar_lea.sflag [#allocation20], %s4807
          %s4809 = sand.u32 %s603, 1
          %s4810 = smul.addr %s4809, 2
          %s4811 = scalar_lea.vmem [#allocation21], %s4810
          %4813 = dma.done %s4808, 32
        $region168: #{tpu_custom_call.1} parent=123 // pred_fallthru
          _
      $region124: #{tpu_custom_call.1} parent=5 // pred_fallthru
        _
    $region6: #{tpu_custom_call.1} parent=1 // loop_footer
      %s55 = sadd.s32 1, %s51
    $region7: #{tpu_custom_call.1} parent=1 // loop_footer_branch
      %50 = sbr.rel target = $region3
    $region8: #{tpu_custom_call.1} parent=1 // loop_exit
      _
    %4814 = vsyncpa [#allocation4], 1
    %s4815 = scalar_lea.sflag [#allocation4], 1
    %4816 = vsyncpa %s4815, 1
    %4817 = vsyncpa [#allocation5], 1
    %s4818 = scalar_lea.sflag [#allocation5], 1
    %4819 = vsyncpa %s4818, 1
    %4820 = vsyncpa [#allocation8], 1
    %s4821 = scalar_lea.sflag [#allocation8], 1
    %4822 = vsyncpa %s4821, 1
    %4823 = vsyncpa [#allocation11], 1
    %s4824 = scalar_lea.sflag [#allocation11], 1
    %4825 = vsyncpa %s4824, 1
    %4826 = vsyncpa [#allocation14], 1
    %s4827 = scalar_lea.sflag [#allocation14], 1
    %4828 = vsyncpa %s4827, 1
    %4829 = vsyncpa [#allocation17], 1
    %s4830 = scalar_lea.sflag [#allocation17], 1
    %4831 = vsyncpa %s4830, 1
    %4832 = vsyncpa [#allocation20], 1
    %s4833 = scalar_lea.sflag [#allocation20], 1
    %4834 = vsyncpa %s4833, 1

</llo_original>
